<compile_context>
chip_gen: v7x
topology: tpu7x:2x2x1
jax: 0.10.0
libtpu: 0.0.40
codegen_flags: <defaults>
</compile_context>

<pallas_src>
import functools
import math

import jax
import jax.numpy as jnp
from jax.experimental import pallas as pl
from jax.experimental.pallas import tpu as pltpu

# ------------------------- model config -------------------------
D_MODEL = 32
D_K = 8
D_V = 8
N_HEADS = 4
D_FF = 128
FEA_V = 20
FEA_S = 24
VIS_LEN = 16
SEN_LEN = 8
BATCH = 2

# packed (kernel-facing) parameter names
PACKED_ORDER = ["Win_v", "Win_s", "Wqkv", "Wp", "W1", "W2", "small"]

# rows of the "small" blob (biases / LayerNorm params, lane-padded f32)
(_R_BIN_V, _R_BIN_S, _R_BQKV_V, _R_BQKV_S, _R_BP_V, _R_BP_S,
 _R_G1_V, _R_B1LN_V, _R_G1_S, _R_B1LN_S,
 _R_FB1_V, _R_FB1_S, _R_FB2_V, _R_FB2_S,
 _R_G2_V, _R_B2LN_V, _R_G2_S, _R_B2LN_S, _N_SMALL_ROWS) = range(19)


# ------------------------- kernel helpers (traced inside the kernel) -------------------------
def _mm(x, w):
    # MXU matmul: operands in the packed weight dtype (bf16 -> single-pass MXU),
    # f32 accumulation.
    return jnp.dot(x.astype(w.dtype), w, preferred_element_type=jnp.float32)


def _layer_norm(x, gamma, beta, eps=1e-6):
    # LayerNormalization: (x - mean) / (unbiased std + eps) * gamma + beta  (exact, f32)
    n = x.shape[-1]
    mean = jnp.mean(x, axis=-1, keepdims=True)
    d = x - mean
    var = jnp.sum(d * d, axis=-1, keepdims=True) * (1.0 / (n - 1))
    return gamma * (d / (jnp.sqrt(var) + eps)) + beta


def _ffn(x, w1, b1, w2, b2, gamma, beta):
    # PoswiseFeedForwardNet: conv1d(k=1) == linear on the (lane) feature axis
    h = jnp.maximum(_mm(x, w1) + b1, 0.0)
    o = _mm(h, w2) + b2
    return _layer_norm(x + o, gamma, beta)


# ------------------------- the Pallas kernel (one batch block per grid step) -------------------------
def co_attention_kernel(d_k, d_v, n_heads,
                        v_ref, s_ref,
                        win_v_ref, win_s_ref, wqkv_ref, wp_ref, w1_ref, w2_ref,
                        small_ref, out_ref):
    bt, Lv, fv = v_ref.shape
    _, Ls, fs = s_ref.shape
    D = wp_ref.shape[1]
    d_ff = w1_ref.shape[1]
    hk, hv = n_heads * d_k, n_heads * d_v
    cdt = wqkv_ref.dtype          # matmul compute dtype (bf16 by default)
    f32 = jnp.float32

    # --- small parameters (biases / LN gamma,beta): one blob, loaded once ---
    small = small_ref[...]                      # (18, 128) f32

    def srow(r, width):
        return small[r:r + 1, 0:width]

    bin_v, bin_s = srow(_R_BIN_V, D), srow(_R_BIN_S, D)
    bqkv_v, bqkv_s = srow(_R_BQKV_V, 2 * hk + hv), srow(_R_BQKV_S, 2 * hk + hv)
    bp_v, bp_s = srow(_R_BP_V, D), srow(_R_BP_S, D)
    g1_v, be1_v = srow(_R_G1_V, D), srow(_R_B1LN_V, D)
    g1_s, be1_s = srow(_R_G1_S, D), srow(_R_B1LN_S, D)
    fb1_v, fb1_s = srow(_R_FB1_V, d_ff), srow(_R_FB1_S, d_ff)
    fb2_v, fb2_s = srow(_R_FB2_V, D), srow(_R_FB2_S, D)
    g2_v, be2_v = srow(_R_G2_V, D), srow(_R_B2LN_V, D)
    g2_s, be2_s = srow(_R_G2_S, D), srow(_R_B2LN_S, D)

    # --- input feature projections (nn.Linear); batch block stacked into M ---
    v = _mm(v_ref[...].reshape(bt * Lv, fv), win_v_ref[...]) + bin_v      # (bt*Lv, D) f32
    s = _mm(s_ref[...].reshape(bt * Ls, fs), win_s_ref[...]) + bin_s      # (bt*Ls, D) f32
    res_v, res_s = v, s            # pos=False -> residual is the projected input

    # --- fused Q|K|V projection: one matmul per modality for the whole block ---
    qkv_v = (_mm(v, wqkv_ref[0:D, :]) + bqkv_v).reshape(bt, Lv, 2 * hk + hv)
    qkv_s = (_mm(s, wqkv_ref[D:2 * D, :]) + bqkv_s).reshape(bt, Ls, 2 * hk + hv)

    # --- cross (co-) attention: per-head, batched over the batch block ---
    scale = 1.0 / math.sqrt(d_k)

    def co_attn(qkv_q, qkv_kv, Lq):
        ctxs = []
        for h in range(n_heads):
            qh = qkv_q[:, :, h * d_k:(h + 1) * d_k].astype(cdt)
            kh = qkv_kv[:, :, hk + h * d_k:hk + (h + 1) * d_k].astype(cdt)
            vh = qkv_kv[:, :, 2 * hk + h * d_v:2 * hk + (h + 1) * d_v].astype(cdt)
            sc = jnp.einsum("bqd,bkd->bqk", qh, kh,
                            preferred_element_type=f32) * scale
            sc = sc - jnp.max(sc, axis=-1, keepdims=True)
            e = jnp.exp(sc)
            p = e / jnp.sum(e, axis=-1, keepdims=True)          # exact divide, f32
            ctxs.append(jnp.einsum("bqk,bkd->bqd", p.astype(cdt), vh,
                                   preferred_element_type=f32))
        return jnp.concatenate(ctxs, axis=-1).reshape(bt * Lq, hv)

    ctx_v = co_attn(qkv_v, qkv_s, Lv)    # visual queries attend to text K/V
    ctx_s = co_attn(qkv_s, qkv_v, Ls)    # text queries attend to visual K/V

    # --- head merge + projection (single matmul), residual + LayerNorm ---
    o_v = _mm(ctx_v, wp_ref[0:hv, :]) + bp_v
    o_s = _mm(ctx_s, wp_ref[hv:2 * hv, :]) + bp_s
    v = _layer_norm(res_v + o_v, g1_v, be1_v)
    s = _layer_norm(res_s + o_s, g1_s, be1_s)

    # --- position-wise FFN, residual + LayerNorm ---
    v = _ffn(v, w1_ref[0:D, :], fb1_v, w2_ref[0:d_ff, :], fb2_v, g2_v, be2_v)
    s = _ffn(s, w1_ref[D:2 * D, :], fb1_s, w2_ref[d_ff:2 * d_ff, :], fb2_s, g2_s, be2_s)

    # --- single fused output buffer: rows [0,Lv) visual, [Lv,Lv+Ls) text ---
    out_ref[:, 0:Lv, :] = v.reshape(bt, Lv, D)
    out_ref[:, Lv:Lv + Ls, :] = s.reshape(bt, Ls, D)


# ------------------------- host-side weight packing -------------------------
def pack_params(p, *, d_k, d_v, n_heads, matmul_dtype=jnp.bfloat16):
    D = p["Wlv"].shape[1]
    d_ff = p["W1_v"].shape[1]
    hk, hv = n_heads * d_k, n_heads * d_v
    lane = int(math.ceil(max(128, d_ff, 2 * hk + hv, D) / 128) * 128)

    def qkv_w(m):
        return jnp.concatenate([p[f"Wq_{m}"].reshape(D, hk),
                                p[f"Wk_{m}"].reshape(D, hk),
                                p[f"Wv_{m}"].reshape(D, hv)], axis=1)   # (D, 2*hk+hv)

    def qkv_b(m):
        return jnp.concatenate([p[f"bq_{m}"].reshape(1, hk),
                                p[f"bk_{m}"].reshape(1, hk),
                                p[f"bv_{m}"].reshape(1, hv)], axis=1)   # (1, 2*hk+hv)

    def row(x):
        x = jnp.asarray(x, jnp.float32).reshape(1, -1)
        return jnp.pad(x, ((0, 0), (0, lane - x.shape[1])))

    small = jnp.concatenate([
        row(p["blv"]), row(p["bls"]),
        row(qkv_b("v")), row(qkv_b("s")),
        row(p["bp_v"]), row(p["bp_s"]),
        row(p["g_ln_v"]), row(p["b_ln_v"]), row(p["g_ln_s"]), row(p["b_ln_s"]),
        row(p["b1_v"]), row(p["b1_s"]),
        row(p["b2_v"]), row(p["b2_s"]),
        row(p["g_f_v"]), row(p["b_f_v"]), row(p["g_f_s"]), row(p["b_f_s"]),
    ], axis=0)
    assert small.shape[0] == _N_SMALL_ROWS

    wd = matmul_dtype
    return {
        "Win_v": p["Wlv"].astype(wd),
        "Win_s": p["Wls"].astype(wd),
        "Wqkv": jnp.concatenate([qkv_w("v"), qkv_w("s")], axis=0).astype(wd),   # (2D, 96)
        "Wp": jnp.concatenate([p["Wp_v"].reshape(hv, D),
                               p["Wp_s"].reshape(hv, D)], axis=0).astype(wd),   # (2*hv, D)
        "W1": jnp.concatenate([p["W1_v"], p["W1_s"]], axis=0).astype(wd),       # (2D, d_ff)
        "W2": jnp.concatenate([p["W2_v"], p["W2_s"]], axis=0).astype(wd),       # (2*d_ff, D)
        "small": small,                                                          # (18, 128) f32
    }


# ------------------------- wrapper -------------------------
def _default_batch_block(B):
    # Single-TensorCore chips (v5e / v6e): one grid step (bt = B) -> no pipelining
    # overhead, weights loaded once.  2-TC chips (v7x; also v4/v5p megacore): keep
    # >= 2 grid steps so the "parallel" batch axis shards across both cores.
    try:
        kind = jax.devices()[0].device_kind.lower()
    except Exception:
        kind = ""
    two_tc = any(t in kind for t in ("v7", "7x", "v4", "v5p"))
    if two_tc and B >= 2:
        for bt in range(B // 2, 0, -1):        # largest divisor giving >= 2 steps
            if B % bt == 0:
                return bt
    return B


def co_attention_forward(v, s, v_len, s_len, packed, *, d_k, d_v, n_heads,
                         batch_block=None):
    del v_len, s_len   # pos=False: positional encodings unused; module does no length masking
    B, Lv, fv = v.shape
    _, Ls, fs = s.shape
    D = packed["Wp"].shape[1]
    cdt = packed["Wqkv"].dtype

    bt = _default_batch_block(B) if batch_block is None else batch_block
    assert B % bt == 0

    weights = [packed[k] for k in PACKED_ORDER]

    in_specs = [
        pl.BlockSpec((bt, Lv, fv), lambda i: (i, 0, 0)),
        pl.BlockSpec((bt, Ls, fs), lambda i: (i, 0, 0)),
    ] + [pl.BlockSpec(w.shape, lambda i: (0, 0)) for w in weights]

    out_specs = pl.BlockSpec((bt, Lv + Ls, D), lambda i: (i, 0, 0))
    out_shape = jax.ShapeDtypeStruct((B, Lv + Ls, D), jnp.float32)

    kernel = functools.partial(co_attention_kernel, d_k, d_v, n_heads)
    out = pl.pallas_call(
        kernel,
        grid=(B // bt,),
        in_specs=in_specs,
        out_specs=out_specs,
        out_shape=out_shape,
        compiler_params=pltpu.CompilerParams(
            dimension_semantics=("parallel",)),     # batch blocks are independent
    )(v.astype(cdt), s.astype(cdt), *weights)

    return out[:, :Lv, :], out[:, Lv:, :]


# ------------------------- deterministic parameter init (module layout) -------------------------
def init_params(key):
    keys = iter(jax.random.split(key, 64))

    def w(shape, scale=0.05):
        return (scale * jax.random.normal(next(keys), shape)).astype(jnp.float32)

    D, H, dk, dv = D_MODEL, N_HEADS, D_K, D_V
    p = {}
    p["Wlv"], p["blv"] = w((FEA_V, D)), w((1, D), 0.01)
    p["Wls"], p["bls"] = w((FEA_S, D)), w((1, D), 0.01)
    for m in ("v", "s"):
        p[f"Wq_{m}"], p[f"bq_{m}"] = w((D, H, dk)), w((H, 1, dk), 0.01)
        p[f"Wk_{m}"], p[f"bk_{m}"] = w((D, H, dk)), w((H, 1, dk), 0.01)
        p[f"Wv_{m}"], p[f"bv_{m}"] = w((D, H, dv)), w((H, 1, dv), 0.01)
        p[f"Wp_{m}"], p[f"bp_{m}"] = w((H, dv, D)), w((1, D), 0.01)
        p[f"g_ln_{m}"], p[f"b_ln_{m}"] = jnp.ones((1, D), jnp.float32), jnp.zeros((1, D), jnp.float32)
        p[f"W1_{m}"], p[f"b1_{m}"] = w((D, D_FF)), w((1, D_FF), 0.01)
        p[f"W2_{m}"], p[f"b2_{m}"] = w((D_FF, D)), w((1, D), 0.01)
        p[f"g_f_{m}"], p[f"b_f_{m}"] = jnp.ones((1, D), jnp.float32), jnp.zeros((1, D), jnp.float32)
    return p


# ------------------------- pure-JAX reference (f32, module semantics) -------------------------
def reference_forward(v, s, p, *, d_k):
    def ln(x, g, b, eps=1e-6):
        mean = jnp.mean(x, -1, keepdims=True)
        d = x - mean
        var = jnp.sum(d * d, -1, keepdims=True) / (x.shape[-1] - 1)
        return g * (d / (jnp.sqrt(var) + eps)) + b

    v = v @ p["Wlv"] + p["blv"]
    s = s @ p["Wls"] + p["bls"]
    rv, rs = v, s

    def heads(x, W, b):
        return jnp.einsum("bld,dhk->bhlk", x, W) + b[None]

    qv, kv, vv = heads(v, p["Wq_v"], p["bq_v"]), heads(v, p["Wk_v"], p["bk_v"]), heads(v, p["Wv_v"], p["bv_v"])
    qs, ks, vs = heads(s, p["Wq_s"], p["bq_s"]), heads(s, p["Wk_s"], p["bk_s"]), heads(s, p["Wv_s"], p["bv_s"])

    def attn(q, k, val):
        sc = jnp.einsum("bhqd,bhkd->bhqk", q, k) / math.sqrt(d_k)
        a = jax.nn.softmax(sc, axis=-1)
        return jnp.einsum("bhqk,bhkv->bhqv", a, val)

    cv, cs = attn(qv, ks, vs), attn(qs, kv, vv)
    ov = jnp.einsum("bhlv,hvd->bld", cv, p["Wp_v"]) + p["bp_v"]
    os_ = jnp.einsum("bhlv,hvd->bld", cs, p["Wp_s"]) + p["bp_s"]
    v = ln(rv + ov, p["g_ln_v"], p["b_ln_v"])
    s = ln(rs + os_, p["g_ln_s"], p["b_ln_s"])

    def ffn(x, W1, b1, W2, b2, g, bt):
        h = jax.nn.relu(x @ W1 + b1)
        return ln(x + h @ W2 + b2, g, bt)

    v = ffn(v, p["W1_v"], p["b1_v"], p["W2_v"], p["b2_v"], p["g_f_v"], p["b_f_v"])
    s = ffn(s, p["W1_s"], p["b1_s"], p["W2_s"], p["b2_s"], p["g_f_s"], p["b_f_s"])
    return v, s


# ------------------------- main -------------------------
if __name__ == "__main__":
    key = jax.random.PRNGKey(0)
    k_v, k_s, k_p = jax.random.split(key, 3)

    v_in = jax.random.normal(k_v, (BATCH, VIS_LEN, FEA_V), jnp.float32)
    s_in = jax.random.normal(k_s, (BATCH, SEN_LEN, FEA_S), jnp.float32)
    v_len = jnp.full((BATCH,), VIS_LEN, jnp.int32)
    s_len = jnp.full((BATCH,), SEN_LEN, jnp.int32)

    params = init_params(k_p)
    packed = pack_params(params, d_k=D_K, d_v=D_V, n_heads=N_HEADS)

    out_v, out_s = co_attention_forward(
        v_in, s_in, v_len, s_len, packed, d_k=D_K, d_v=D_V, n_heads=N_HEADS)
    out_v = jax.block_until_ready(out_v)
    out_s = jax.block_until_ready(out_s)

    ref_v, ref_s = reference_forward(v_in, s_in, params, d_k=D_K)
    assert out_v.shape == (BATCH, VIS_LEN, D_MODEL)
    assert out_s.shape == (BATCH, SEN_LEN, D_MODEL)
    # Kernel uses bf16 single-pass MXU matmuls (f32 accumulation) vs. the f32
    # reference -> compare with a bf16-appropriate tolerance.
    assert jnp.allclose(out_v, ref_v, atol=2e-2, rtol=2e-2)
    assert jnp.allclose(out_s, ref_s, atol=2e-2, rtol=2e-2)

    print("KERNEL_OK")
</pallas_src>

<mosaic_0001>
module attributes {stable_mosaic.version = 11 : i64} {
  func.func @co_attention_kernel(%arg0: i32, %arg1: memref<2x16x20xbf16, #tpu.memory_space<vmem>>, %arg2: memref<2x8x24xbf16, #tpu.memory_space<vmem>>, %arg3: memref<20x32xbf16, #tpu.memory_space<vmem>>, %arg4: memref<24x32xbf16, #tpu.memory_space<vmem>>, %arg5: memref<64x96xbf16, #tpu.memory_space<vmem>>, %arg6: memref<64x32xbf16, #tpu.memory_space<vmem>>, %arg7: memref<64x128xbf16, #tpu.memory_space<vmem>>, %arg8: memref<256x32xbf16, #tpu.memory_space<vmem>>, %arg9: memref<18x128xf32, #tpu.memory_space<vmem>>, %arg10: memref<2x24x32xf32, #tpu.memory_space<vmem>>) attributes {dimension_semantics = [#tpu.dimension_semantics<parallel>], iteration_bounds = array<i64: 1>, scalar_prefetch = 0 : i64, scratch_operands = 0 : i64, tpu.core_type = #tpu.core_type<tc>, window_params = [{transform_indices = @transform_0, window_bounds = array<i64: 2, 16, 20>}, {transform_indices = @transform_1, window_bounds = array<i64: 2, 8, 24>}, {pipeline_mode = #tpu.pipeline_mode<synchronous>, transform_indices = @transform_2, window_bounds = array<i64: 20, 32>}, {pipeline_mode = #tpu.pipeline_mode<synchronous>, transform_indices = @transform_3, window_bounds = array<i64: 24, 32>}, {pipeline_mode = #tpu.pipeline_mode<synchronous>, transform_indices = @transform_4, window_bounds = array<i64: 64, 96>}, {pipeline_mode = #tpu.pipeline_mode<synchronous>, transform_indices = @transform_5, window_bounds = array<i64: 64, 32>}, {pipeline_mode = #tpu.pipeline_mode<synchronous>, transform_indices = @transform_6, window_bounds = array<i64: 64, 128>}, {pipeline_mode = #tpu.pipeline_mode<synchronous>, transform_indices = @transform_7, window_bounds = array<i64: 256, 32>}, {pipeline_mode = #tpu.pipeline_mode<synchronous>, transform_indices = @transform_8, window_bounds = array<i64: 18, 128>}, {transform_indices = @transform_9, window_bounds = array<i64: 2, 24, 32>}]} {
    %c0 = arith.constant 0 : index
    %c0_0 = arith.constant 0 : index
    %0 = vector.load %arg9[%c0, %c0_0] : memref<18x128xf32, #tpu.memory_space<vmem>>, vector<18x128xf32>
    %1 = vector.extract_strided_slice %0 {offsets = [0, 0], sizes = [1, 32], strides = [1, 1]} : vector<18x128xf32> to vector<1x32xf32>
    %2 = vector.extract_strided_slice %0 {offsets = [1, 0], sizes = [1, 32], strides = [1, 1]} : vector<18x128xf32> to vector<1x32xf32>
    %3 = vector.extract_strided_slice %0 {offsets = [2, 0], sizes = [1, 96], strides = [1, 1]} : vector<18x128xf32> to vector<1x96xf32>
    %4 = vector.extract_strided_slice %0 {offsets = [3, 0], sizes = [1, 96], strides = [1, 1]} : vector<18x128xf32> to vector<1x96xf32>
    %5 = vector.extract_strided_slice %0 {offsets = [4, 0], sizes = [1, 32], strides = [1, 1]} : vector<18x128xf32> to vector<1x32xf32>
    %6 = vector.extract_strided_slice %0 {offsets = [5, 0], sizes = [1, 32], strides = [1, 1]} : vector<18x128xf32> to vector<1x32xf32>
    %7 = vector.extract_strided_slice %0 {offsets = [6, 0], sizes = [1, 32], strides = [1, 1]} : vector<18x128xf32> to vector<1x32xf32>
    %8 = vector.extract_strided_slice %0 {offsets = [7, 0], sizes = [1, 32], strides = [1, 1]} : vector<18x128xf32> to vector<1x32xf32>
    %9 = vector.extract_strided_slice %0 {offsets = [8, 0], sizes = [1, 32], strides = [1, 1]} : vector<18x128xf32> to vector<1x32xf32>
    %10 = vector.extract_strided_slice %0 {offsets = [9, 0], sizes = [1, 32], strides = [1, 1]} : vector<18x128xf32> to vector<1x32xf32>
    %11 = vector.extract_strided_slice %0 {offsets = [10, 0], sizes = [1, 128], strides = [1, 1]} : vector<18x128xf32> to vector<1x128xf32>
    %12 = vector.extract_strided_slice %0 {offsets = [11, 0], sizes = [1, 128], strides = [1, 1]} : vector<18x128xf32> to vector<1x128xf32>
    %13 = vector.extract_strided_slice %0 {offsets = [12, 0], sizes = [1, 32], strides = [1, 1]} : vector<18x128xf32> to vector<1x32xf32>
    %14 = vector.extract_strided_slice %0 {offsets = [13, 0], sizes = [1, 32], strides = [1, 1]} : vector<18x128xf32> to vector<1x32xf32>
    %15 = vector.extract_strided_slice %0 {offsets = [14, 0], sizes = [1, 32], strides = [1, 1]} : vector<18x128xf32> to vector<1x32xf32>
    %16 = vector.extract_strided_slice %0 {offsets = [15, 0], sizes = [1, 32], strides = [1, 1]} : vector<18x128xf32> to vector<1x32xf32>
    %17 = vector.extract_strided_slice %0 {offsets = [16, 0], sizes = [1, 32], strides = [1, 1]} : vector<18x128xf32> to vector<1x32xf32>
    %18 = vector.extract_strided_slice %0 {offsets = [17, 0], sizes = [1, 32], strides = [1, 1]} : vector<18x128xf32> to vector<1x32xf32>
    %c0_1 = arith.constant 0 : index
    %c0_2 = arith.constant 0 : index
    %c0_3 = arith.constant 0 : index
    %19 = vector.load %arg1[%c0_1, %c0_2, %c0_3] : memref<2x16x20xbf16, #tpu.memory_space<vmem>>, vector<2x16x20xbf16>
    %20 = vector.shape_cast %19 : vector<2x16x20xbf16> to vector<32x20xbf16>
    %c0_4 = arith.constant 0 : index
    %c0_5 = arith.constant 0 : index
    %21 = vector.load %arg3[%c0_4, %c0_5] : memref<20x32xbf16, #tpu.memory_space<vmem>>, vector<20x32xbf16>
    %cst = arith.constant dense<0.000000e+00> : vector<32x32xf32>
    %22 = tpu.matmul %20, %21, %cst {dimension_numbers = #tpu.dot_dimension_numbers<[1], [0], [0], [1], [0, 0, 1, 1], [], []>} : vector<32x20xbf16>, vector<20x32xbf16>, vector<32x32xf32> -> vector<32x32xf32>
    %23 = vector.broadcast %1 : vector<1x32xf32> to vector<32x32xf32>
    %24 = arith.addf %22, %23 : vector<32x32xf32>
    %c0_6 = arith.constant 0 : index
    %c0_7 = arith.constant 0 : index
    %c0_8 = arith.constant 0 : index
    %25 = vector.load %arg2[%c0_6, %c0_7, %c0_8] : memref<2x8x24xbf16, #tpu.memory_space<vmem>>, vector<2x8x24xbf16>
    %26 = vector.shape_cast %25 : vector<2x8x24xbf16> to vector<16x24xbf16>
    %c0_9 = arith.constant 0 : index
    %c0_10 = arith.constant 0 : index
    %27 = vector.load %arg4[%c0_9, %c0_10] : memref<24x32xbf16, #tpu.memory_space<vmem>>, vector<24x32xbf16>
    %cst_11 = arith.constant dense<0.000000e+00> : vector<16x32xf32>
    %28 = tpu.matmul %26, %27, %cst_11 {dimension_numbers = #tpu.dot_dimension_numbers<[1], [0], [0], [1], [0, 0, 1, 1], [], []>} : vector<16x24xbf16>, vector<24x32xbf16>, vector<16x32xf32> -> vector<16x32xf32>
    %29 = vector.broadcast %2 : vector<1x32xf32> to vector<16x32xf32>
    %30 = arith.addf %28, %29 : vector<16x32xf32>
    %c0_12 = arith.constant 0 : index
    %c0_13 = arith.constant 0 : index
    %31 = vector.load %arg5[%c0_12, %c0_13] : memref<64x96xbf16, #tpu.memory_space<vmem>>, vector<32x96xbf16>
    %32 = arith.truncf %24 : vector<32x32xf32> to vector<32x32xbf16>
    %cst_14 = arith.constant dense<0.000000e+00> : vector<32x96xf32>
    %33 = tpu.matmul %32, %31, %cst_14 {dimension_numbers = #tpu.dot_dimension_numbers<[1], [0], [0], [1], [0, 0, 1, 1], [], []>} : vector<32x32xbf16>, vector<32x96xbf16>, vector<32x96xf32> -> vector<32x96xf32>
    %34 = vector.broadcast %3 : vector<1x96xf32> to vector<32x96xf32>
    %35 = arith.addf %33, %34 : vector<32x96xf32>
    %36 = vector.shape_cast %35 : vector<32x96xf32> to vector<2x16x96xf32>
    %c32 = arith.constant 32 : index
    %c0_15 = arith.constant 0 : index
    %37 = vector.load %arg5[%c32, %c0_15] : memref<64x96xbf16, #tpu.memory_space<vmem>>, vector<32x96xbf16>
    %38 = arith.truncf %30 : vector<16x32xf32> to vector<16x32xbf16>
    %cst_16 = arith.constant dense<0.000000e+00> : vector<16x96xf32>
    %39 = tpu.matmul %38, %37, %cst_16 {dimension_numbers = #tpu.dot_dimension_numbers<[1], [0], [0], [1], [0, 0, 1, 1], [], []>} : vector<16x32xbf16>, vector<32x96xbf16>, vector<16x96xf32> -> vector<16x96xf32>
    %40 = vector.broadcast %4 : vector<1x96xf32> to vector<16x96xf32>
    %41 = arith.addf %39, %40 : vector<16x96xf32>
    %42 = vector.shape_cast %41 : vector<16x96xf32> to vector<2x8x96xf32>
    %43 = vector.extract_strided_slice %36 {offsets = [0, 0, 0], sizes = [2, 16, 8], strides = [1, 1, 1]} : vector<2x16x96xf32> to vector<2x16x8xf32>
    %44 = arith.truncf %43 : vector<2x16x8xf32> to vector<2x16x8xbf16>
    %45 = vector.extract_strided_slice %42 {offsets = [0, 0, 32], sizes = [2, 8, 8], strides = [1, 1, 1]} : vector<2x8x96xf32> to vector<2x8x8xf32>
    %46 = arith.truncf %45 : vector<2x8x8xf32> to vector<2x8x8xbf16>
    %47 = vector.extract_strided_slice %42 {offsets = [0, 0, 64], sizes = [2, 8, 8], strides = [1, 1, 1]} : vector<2x8x96xf32> to vector<2x8x8xf32>
    %48 = arith.truncf %47 : vector<2x8x8xf32> to vector<2x8x8xbf16>
    "tpu.trace_start"() <{level = 10 : i32, message = "bqd,bkd->bqk"}> : () -> ()
    %cst_17 = arith.constant dense<0.000000e+00> : vector<2x16x8xf32>
    %49 = tpu.matmul %44, %46, %cst_17 {dimension_numbers = #tpu.dot_dimension_numbers<[2], [2], [1], [1], [0, 0, 0, 1, 1, 1], [0], [0]>} : vector<2x16x8xbf16>, vector<2x8x8xbf16>, vector<2x16x8xf32> -> vector<2x16x8xf32>
    "tpu.trace_stop"() : () -> ()
    %cst_18 = arith.constant 0.353553385 : f32
    %50 = vector.broadcast %cst_18 : f32 to vector<2x16x8xf32>
    %51 = arith.mulf %49, %50 : vector<2x16x8xf32>
    %cst_19 = arith.constant dense<0xFF800000> : vector<2x16xf32>
    %52 = vector.multi_reduction <maximumf>, %51, %cst_19 [2] : vector<2x16x8xf32> to vector<2x16xf32>
    %53 = vector.shape_cast %52 : vector<2x16xf32> to vector<2x16x1xf32>
    %54 = vector.broadcast %53 : vector<2x16x1xf32> to vector<2x16x8xf32>
    %55 = arith.subf %51, %54 : vector<2x16x8xf32>
    %56 = math.exp %55 : vector<2x16x8xf32>
    %cst_20 = arith.constant dense<0.000000e+00> : vector<2x16xf32>
    %57 = vector.multi_reduction <add>, %56, %cst_20 [2] : vector<2x16x8xf32> to vector<2x16xf32>
    %58 = vector.shape_cast %57 : vector<2x16xf32> to vector<2x16x1xf32>
    %59 = vector.broadcast %58 : vector<2x16x1xf32> to vector<2x16x8xf32>
    %60 = arith.divf %56, %59 : vector<2x16x8xf32>
    %61 = arith.truncf %60 : vector<2x16x8xf32> to vector<2x16x8xbf16>
    "tpu.trace_start"() <{level = 10 : i32, message = "bqk,bkd->bqd"}> : () -> ()
    %cst_21 = arith.constant dense<0.000000e+00> : vector<2x16x8xf32>
    %62 = tpu.matmul %61, %48, %cst_21 {dimension_numbers = #tpu.dot_dimension_numbers<[2], [1], [1], [2], [0, 0, 0, 1, 1, 2], [0], [0]>} : vector<2x16x8xbf16>, vector<2x8x8xbf16>, vector<2x16x8xf32> -> vector<2x16x8xf32>
    "tpu.trace_stop"() : () -> ()
    %63 = vector.extract_strided_slice %36 {offsets = [0, 0, 8], sizes = [2, 16, 8], strides = [1, 1, 1]} : vector<2x16x96xf32> to vector<2x16x8xf32>
    %64 = arith.truncf %63 : vector<2x16x8xf32> to vector<2x16x8xbf16>
    %65 = vector.extract_strided_slice %42 {offsets = [0, 0, 40], sizes = [2, 8, 8], strides = [1, 1, 1]} : vector<2x8x96xf32> to vector<2x8x8xf32>
    %66 = arith.truncf %65 : vector<2x8x8xf32> to vector<2x8x8xbf16>
    %67 = vector.extract_strided_slice %42 {offsets = [0, 0, 72], sizes = [2, 8, 8], strides = [1, 1, 1]} : vector<2x8x96xf32> to vector<2x8x8xf32>
    %68 = arith.truncf %67 : vector<2x8x8xf32> to vector<2x8x8xbf16>
    "tpu.trace_start"() <{level = 10 : i32, message = "bqd,bkd->bqk"}> : () -> ()
    %cst_22 = arith.constant dense<0.000000e+00> : vector<2x16x8xf32>
    %69 = tpu.matmul %64, %66, %cst_22 {dimension_numbers = #tpu.dot_dimension_numbers<[2], [2], [1], [1], [0, 0, 0, 1, 1, 1], [0], [0]>} : vector<2x16x8xbf16>, vector<2x8x8xbf16>, vector<2x16x8xf32> -> vector<2x16x8xf32>
    "tpu.trace_stop"() : () -> ()
    %cst_23 = arith.constant 0.353553385 : f32
    %70 = vector.broadcast %cst_23 : f32 to vector<2x16x8xf32>
    %71 = arith.mulf %69, %70 : vector<2x16x8xf32>
    %cst_24 = arith.constant dense<0xFF800000> : vector<2x16xf32>
    %72 = vector.multi_reduction <maximumf>, %71, %cst_24 [2] : vector<2x16x8xf32> to vector<2x16xf32>
    %73 = vector.shape_cast %72 : vector<2x16xf32> to vector<2x16x1xf32>
    %74 = vector.broadcast %73 : vector<2x16x1xf32> to vector<2x16x8xf32>
    %75 = arith.subf %71, %74 : vector<2x16x8xf32>
    %76 = math.exp %75 : vector<2x16x8xf32>
    %cst_25 = arith.constant dense<0.000000e+00> : vector<2x16xf32>
    %77 = vector.multi_reduction <add>, %76, %cst_25 [2] : vector<2x16x8xf32> to vector<2x16xf32>
    %78 = vector.shape_cast %77 : vector<2x16xf32> to vector<2x16x1xf32>
    %79 = vector.broadcast %78 : vector<2x16x1xf32> to vector<2x16x8xf32>
    %80 = arith.divf %76, %79 : vector<2x16x8xf32>
    %81 = arith.truncf %80 : vector<2x16x8xf32> to vector<2x16x8xbf16>
    "tpu.trace_start"() <{level = 10 : i32, message = "bqk,bkd->bqd"}> : () -> ()
    %cst_26 = arith.constant dense<0.000000e+00> : vector<2x16x8xf32>
    %82 = tpu.matmul %81, %68, %cst_26 {dimension_numbers = #tpu.dot_dimension_numbers<[2], [1], [1], [2], [0, 0, 0, 1, 1, 2], [0], [0]>} : vector<2x16x8xbf16>, vector<2x8x8xbf16>, vector<2x16x8xf32> -> vector<2x16x8xf32>
    "tpu.trace_stop"() : () -> ()
    %83 = vector.extract_strided_slice %36 {offsets = [0, 0, 16], sizes = [2, 16, 8], strides = [1, 1, 1]} : vector<2x16x96xf32> to vector<2x16x8xf32>
    %84 = arith.truncf %83 : vector<2x16x8xf32> to vector<2x16x8xbf16>
    %85 = vector.extract_strided_slice %42 {offsets = [0, 0, 48], sizes = [2, 8, 8], strides = [1, 1, 1]} : vector<2x8x96xf32> to vector<2x8x8xf32>
    %86 = arith.truncf %85 : vector<2x8x8xf32> to vector<2x8x8xbf16>
    %87 = vector.extract_strided_slice %42 {offsets = [0, 0, 80], sizes = [2, 8, 8], strides = [1, 1, 1]} : vector<2x8x96xf32> to vector<2x8x8xf32>
    %88 = arith.truncf %87 : vector<2x8x8xf32> to vector<2x8x8xbf16>
    "tpu.trace_start"() <{level = 10 : i32, message = "bqd,bkd->bqk"}> : () -> ()
    %cst_27 = arith.constant dense<0.000000e+00> : vector<2x16x8xf32>
    %89 = tpu.matmul %84, %86, %cst_27 {dimension_numbers = #tpu.dot_dimension_numbers<[2], [2], [1], [1], [0, 0, 0, 1, 1, 1], [0], [0]>} : vector<2x16x8xbf16>, vector<2x8x8xbf16>, vector<2x16x8xf32> -> vector<2x16x8xf32>
    "tpu.trace_stop"() : () -> ()
    %cst_28 = arith.constant 0.353553385 : f32
    %90 = vector.broadcast %cst_28 : f32 to vector<2x16x8xf32>
    %91 = arith.mulf %89, %90 : vector<2x16x8xf32>
    %cst_29 = arith.constant dense<0xFF800000> : vector<2x16xf32>
    %92 = vector.multi_reduction <maximumf>, %91, %cst_29 [2] : vector<2x16x8xf32> to vector<2x16xf32>
    %93 = vector.shape_cast %92 : vector<2x16xf32> to vector<2x16x1xf32>
    %94 = vector.broadcast %93 : vector<2x16x1xf32> to vector<2x16x8xf32>
    %95 = arith.subf %91, %94 : vector<2x16x8xf32>
    %96 = math.exp %95 : vector<2x16x8xf32>
    %cst_30 = arith.constant dense<0.000000e+00> : vector<2x16xf32>
    %97 = vector.multi_reduction <add>, %96, %cst_30 [2] : vector<2x16x8xf32> to vector<2x16xf32>
    %98 = vector.shape_cast %97 : vector<2x16xf32> to vector<2x16x1xf32>
    %99 = vector.broadcast %98 : vector<2x16x1xf32> to vector<2x16x8xf32>
    %100 = arith.divf %96, %99 : vector<2x16x8xf32>
    %101 = arith.truncf %100 : vector<2x16x8xf32> to vector<2x16x8xbf16>
    "tpu.trace_start"() <{level = 10 : i32, message = "bqk,bkd->bqd"}> : () -> ()
    %cst_31 = arith.constant dense<0.000000e+00> : vector<2x16x8xf32>
    %102 = tpu.matmul %101, %88, %cst_31 {dimension_numbers = #tpu.dot_dimension_numbers<[2], [1], [1], [2], [0, 0, 0, 1, 1, 2], [0], [0]>} : vector<2x16x8xbf16>, vector<2x8x8xbf16>, vector<2x16x8xf32> -> vector<2x16x8xf32>
    "tpu.trace_stop"() : () -> ()
    %103 = vector.extract_strided_slice %36 {offsets = [0, 0, 24], sizes = [2, 16, 8], strides = [1, 1, 1]} : vector<2x16x96xf32> to vector<2x16x8xf32>
    %104 = arith.truncf %103 : vector<2x16x8xf32> to vector<2x16x8xbf16>
    %105 = vector.extract_strided_slice %42 {offsets = [0, 0, 56], sizes = [2, 8, 8], strides = [1, 1, 1]} : vector<2x8x96xf32> to vector<2x8x8xf32>
    %106 = arith.truncf %105 : vector<2x8x8xf32> to vector<2x8x8xbf16>
    %107 = vector.extract_strided_slice %42 {offsets = [0, 0, 88], sizes = [2, 8, 8], strides = [1, 1, 1]} : vector<2x8x96xf32> to vector<2x8x8xf32>
    %108 = arith.truncf %107 : vector<2x8x8xf32> to vector<2x8x8xbf16>
    "tpu.trace_start"() <{level = 10 : i32, message = "bqd,bkd->bqk"}> : () -> ()
    %cst_32 = arith.constant dense<0.000000e+00> : vector<2x16x8xf32>
    %109 = tpu.matmul %104, %106, %cst_32 {dimension_numbers = #tpu.dot_dimension_numbers<[2], [2], [1], [1], [0, 0, 0, 1, 1, 1], [0], [0]>} : vector<2x16x8xbf16>, vector<2x8x8xbf16>, vector<2x16x8xf32> -> vector<2x16x8xf32>
    "tpu.trace_stop"() : () -> ()
    %cst_33 = arith.constant 0.353553385 : f32
    %110 = vector.broadcast %cst_33 : f32 to vector<2x16x8xf32>
    %111 = arith.mulf %109, %110 : vector<2x16x8xf32>
    %cst_34 = arith.constant dense<0xFF800000> : vector<2x16xf32>
    %112 = vector.multi_reduction <maximumf>, %111, %cst_34 [2] : vector<2x16x8xf32> to vector<2x16xf32>
    %113 = vector.shape_cast %112 : vector<2x16xf32> to vector<2x16x1xf32>
    %114 = vector.broadcast %113 : vector<2x16x1xf32> to vector<2x16x8xf32>
    %115 = arith.subf %111, %114 : vector<2x16x8xf32>
    %116 = math.exp %115 : vector<2x16x8xf32>
    %cst_35 = arith.constant dense<0.000000e+00> : vector<2x16xf32>
    %117 = vector.multi_reduction <add>, %116, %cst_35 [2] : vector<2x16x8xf32> to vector<2x16xf32>
    %118 = vector.shape_cast %117 : vector<2x16xf32> to vector<2x16x1xf32>
    %119 = vector.broadcast %118 : vector<2x16x1xf32> to vector<2x16x8xf32>
    %120 = arith.divf %116, %119 : vector<2x16x8xf32>
    %121 = arith.truncf %120 : vector<2x16x8xf32> to vector<2x16x8xbf16>
    "tpu.trace_start"() <{level = 10 : i32, message = "bqk,bkd->bqd"}> : () -> ()
    %cst_36 = arith.constant dense<0.000000e+00> : vector<2x16x8xf32>
    %122 = tpu.matmul %121, %108, %cst_36 {dimension_numbers = #tpu.dot_dimension_numbers<[2], [1], [1], [2], [0, 0, 0, 1, 1, 2], [0], [0]>} : vector<2x16x8xbf16>, vector<2x8x8xbf16>, vector<2x16x8xf32> -> vector<2x16x8xf32>
    "tpu.trace_stop"() : () -> ()
    %123 = tpu.concatenate %62, %82, %102, %122 in 2 : vector<2x16x8xf32>, vector<2x16x8xf32>, vector<2x16x8xf32>, vector<2x16x8xf32> -> vector<2x16x32xf32>
    %124 = vector.shape_cast %123 : vector<2x16x32xf32> to vector<32x32xf32>
    %125 = vector.extract_strided_slice %42 {offsets = [0, 0, 0], sizes = [2, 8, 8], strides = [1, 1, 1]} : vector<2x8x96xf32> to vector<2x8x8xf32>
    %126 = arith.truncf %125 : vector<2x8x8xf32> to vector<2x8x8xbf16>
    %127 = vector.extract_strided_slice %36 {offsets = [0, 0, 32], sizes = [2, 16, 8], strides = [1, 1, 1]} : vector<2x16x96xf32> to vector<2x16x8xf32>
    %128 = arith.truncf %127 : vector<2x16x8xf32> to vector<2x16x8xbf16>
    %129 = vector.extract_strided_slice %36 {offsets = [0, 0, 64], sizes = [2, 16, 8], strides = [1, 1, 1]} : vector<2x16x96xf32> to vector<2x16x8xf32>
    %130 = arith.truncf %129 : vector<2x16x8xf32> to vector<2x16x8xbf16>
    "tpu.trace_start"() <{level = 10 : i32, message = "bqd,bkd->bqk"}> : () -> ()
    %cst_37 = arith.constant dense<0.000000e+00> : vector<2x8x16xf32>
    %131 = tpu.matmul %126, %128, %cst_37 {dimension_numbers = #tpu.dot_dimension_numbers<[2], [2], [1], [1], [0, 0, 0, 1, 1, 1], [0], [0]>} : vector<2x8x8xbf16>, vector<2x16x8xbf16>, vector<2x8x16xf32> -> vector<2x8x16xf32>
    "tpu.trace_stop"() : () -> ()
    %cst_38 = arith.constant 0.353553385 : f32
    %132 = vector.broadcast %cst_38 : f32 to vector<2x8x16xf32>
    %133 = arith.mulf %131, %132 : vector<2x8x16xf32>
    %cst_39 = arith.constant dense<0xFF800000> : vector<2x8xf32>
    %134 = vector.multi_reduction <maximumf>, %133, %cst_39 [2] : vector<2x8x16xf32> to vector<2x8xf32>
    %135 = vector.shape_cast %134 : vector<2x8xf32> to vector<2x8x1xf32>
    %136 = vector.broadcast %135 : vector<2x8x1xf32> to vector<2x8x16xf32>
    %137 = arith.subf %133, %136 : vector<2x8x16xf32>
    %138 = math.exp %137 : vector<2x8x16xf32>
    %cst_40 = arith.constant dense<0.000000e+00> : vector<2x8xf32>
    %139 = vector.multi_reduction <add>, %138, %cst_40 [2] : vector<2x8x16xf32> to vector<2x8xf32>
    %140 = vector.shape_cast %139 : vector<2x8xf32> to vector<2x8x1xf32>
    %141 = vector.broadcast %140 : vector<2x8x1xf32> to vector<2x8x16xf32>
    %142 = arith.divf %138, %141 : vector<2x8x16xf32>
    %143 = arith.truncf %142 : vector<2x8x16xf32> to vector<2x8x16xbf16>
    "tpu.trace_start"() <{level = 10 : i32, message = "bqk,bkd->bqd"}> : () -> ()
    %cst_41 = arith.constant dense<0.000000e+00> : vector<2x8x8xf32>
    %144 = tpu.matmul %143, %130, %cst_41 {dimension_numbers = #tpu.dot_dimension_numbers<[2], [1], [1], [2], [0, 0, 0, 1, 1, 2], [0], [0]>} : vector<2x8x16xbf16>, vector<2x16x8xbf16>, vector<2x8x8xf32> -> vector<2x8x8xf32>
    "tpu.trace_stop"() : () -> ()
    %145 = vector.extract_strided_slice %42 {offsets = [0, 0, 8], sizes = [2, 8, 8], strides = [1, 1, 1]} : vector<2x8x96xf32> to vector<2x8x8xf32>
    %146 = arith.truncf %145 : vector<2x8x8xf32> to vector<2x8x8xbf16>
    %147 = vector.extract_strided_slice %36 {offsets = [0, 0, 40], sizes = [2, 16, 8], strides = [1, 1, 1]} : vector<2x16x96xf32> to vector<2x16x8xf32>
    %148 = arith.truncf %147 : vector<2x16x8xf32> to vector<2x16x8xbf16>
    %149 = vector.extract_strided_slice %36 {offsets = [0, 0, 72], sizes = [2, 16, 8], strides = [1, 1, 1]} : vector<2x16x96xf32> to vector<2x16x8xf32>
    %150 = arith.truncf %149 : vector<2x16x8xf32> to vector<2x16x8xbf16>
    "tpu.trace_start"() <{level = 10 : i32, message = "bqd,bkd->bqk"}> : () -> ()
    %cst_42 = arith.constant dense<0.000000e+00> : vector<2x8x16xf32>
    %151 = tpu.matmul %146, %148, %cst_42 {dimension_numbers = #tpu.dot_dimension_numbers<[2], [2], [1], [1], [0, 0, 0, 1, 1, 1], [0], [0]>} : vector<2x8x8xbf16>, vector<2x16x8xbf16>, vector<2x8x16xf32> -> vector<2x8x16xf32>
    "tpu.trace_stop"() : () -> ()
    %cst_43 = arith.constant 0.353553385 : f32
    %152 = vector.broadcast %cst_43 : f32 to vector<2x8x16xf32>
    %153 = arith.mulf %151, %152 : vector<2x8x16xf32>
    %cst_44 = arith.constant dense<0xFF800000> : vector<2x8xf32>
    %154 = vector.multi_reduction <maximumf>, %153, %cst_44 [2] : vector<2x8x16xf32> to vector<2x8xf32>
    %155 = vector.shape_cast %154 : vector<2x8xf32> to vector<2x8x1xf32>
    %156 = vector.broadcast %155 : vector<2x8x1xf32> to vector<2x8x16xf32>
    %157 = arith.subf %153, %156 : vector<2x8x16xf32>
    %158 = math.exp %157 : vector<2x8x16xf32>
    %cst_45 = arith.constant dense<0.000000e+00> : vector<2x8xf32>
    %159 = vector.multi_reduction <add>, %158, %cst_45 [2] : vector<2x8x16xf32> to vector<2x8xf32>
    %160 = vector.shape_cast %159 : vector<2x8xf32> to vector<2x8x1xf32>
    %161 = vector.broadcast %160 : vector<2x8x1xf32> to vector<2x8x16xf32>
    %162 = arith.divf %158, %161 : vector<2x8x16xf32>
    %163 = arith.truncf %162 : vector<2x8x16xf32> to vector<2x8x16xbf16>
    "tpu.trace_start"() <{level = 10 : i32, message = "bqk,bkd->bqd"}> : () -> ()
    %cst_46 = arith.constant dense<0.000000e+00> : vector<2x8x8xf32>
    %164 = tpu.matmul %163, %150, %cst_46 {dimension_numbers = #tpu.dot_dimension_numbers<[2], [1], [1], [2], [0, 0, 0, 1, 1, 2], [0], [0]>} : vector<2x8x16xbf16>, vector<2x16x8xbf16>, vector<2x8x8xf32> -> vector<2x8x8xf32>
    "tpu.trace_stop"() : () -> ()
    %165 = vector.extract_strided_slice %42 {offsets = [0, 0, 16], sizes = [2, 8, 8], strides = [1, 1, 1]} : vector<2x8x96xf32> to vector<2x8x8xf32>
    %166 = arith.truncf %165 : vector<2x8x8xf32> to vector<2x8x8xbf16>
    %167 = vector.extract_strided_slice %36 {offsets = [0, 0, 48], sizes = [2, 16, 8], strides = [1, 1, 1]} : vector<2x16x96xf32> to vector<2x16x8xf32>
    %168 = arith.truncf %167 : vector<2x16x8xf32> to vector<2x16x8xbf16>
    %169 = vector.extract_strided_slice %36 {offsets = [0, 0, 80], sizes = [2, 16, 8], strides = [1, 1, 1]} : vector<2x16x96xf32> to vector<2x16x8xf32>
    %170 = arith.truncf %169 : vector<2x16x8xf32> to vector<2x16x8xbf16>
    "tpu.trace_start"() <{level = 10 : i32, message = "bqd,bkd->bqk"}> : () -> ()
    %cst_47 = arith.constant dense<0.000000e+00> : vector<2x8x16xf32>
    %171 = tpu.matmul %166, %168, %cst_47 {dimension_numbers = #tpu.dot_dimension_numbers<[2], [2], [1], [1], [0, 0, 0, 1, 1, 1], [0], [0]>} : vector<2x8x8xbf16>, vector<2x16x8xbf16>, vector<2x8x16xf32> -> vector<2x8x16xf32>
    "tpu.trace_stop"() : () -> ()
    %cst_48 = arith.constant 0.353553385 : f32
    %172 = vector.broadcast %cst_48 : f32 to vector<2x8x16xf32>
    %173 = arith.mulf %171, %172 : vector<2x8x16xf32>
    %cst_49 = arith.constant dense<0xFF800000> : vector<2x8xf32>
    %174 = vector.multi_reduction <maximumf>, %173, %cst_49 [2] : vector<2x8x16xf32> to vector<2x8xf32>
    %175 = vector.shape_cast %174 : vector<2x8xf32> to vector<2x8x1xf32>
    %176 = vector.broadcast %175 : vector<2x8x1xf32> to vector<2x8x16xf32>
    %177 = arith.subf %173, %176 : vector<2x8x16xf32>
    %178 = math.exp %177 : vector<2x8x16xf32>
    %cst_50 = arith.constant dense<0.000000e+00> : vector<2x8xf32>
    %179 = vector.multi_reduction <add>, %178, %cst_50 [2] : vector<2x8x16xf32> to vector<2x8xf32>
    %180 = vector.shape_cast %179 : vector<2x8xf32> to vector<2x8x1xf32>
    %181 = vector.broadcast %180 : vector<2x8x1xf32> to vector<2x8x16xf32>
    %182 = arith.divf %178, %181 : vector<2x8x16xf32>
    %183 = arith.truncf %182 : vector<2x8x16xf32> to vector<2x8x16xbf16>
    "tpu.trace_start"() <{level = 10 : i32, message = "bqk,bkd->bqd"}> : () -> ()
    %cst_51 = arith.constant dense<0.000000e+00> : vector<2x8x8xf32>
    %184 = tpu.matmul %183, %170, %cst_51 {dimension_numbers = #tpu.dot_dimension_numbers<[2], [1], [1], [2], [0, 0, 0, 1, 1, 2], [0], [0]>} : vector<2x8x16xbf16>, vector<2x16x8xbf16>, vector<2x8x8xf32> -> vector<2x8x8xf32>
    "tpu.trace_stop"() : () -> ()
    %185 = vector.extract_strided_slice %42 {offsets = [0, 0, 24], sizes = [2, 8, 8], strides = [1, 1, 1]} : vector<2x8x96xf32> to vector<2x8x8xf32>
    %186 = arith.truncf %185 : vector<2x8x8xf32> to vector<2x8x8xbf16>
    %187 = vector.extract_strided_slice %36 {offsets = [0, 0, 56], sizes = [2, 16, 8], strides = [1, 1, 1]} : vector<2x16x96xf32> to vector<2x16x8xf32>
    %188 = arith.truncf %187 : vector<2x16x8xf32> to vector<2x16x8xbf16>
    %189 = vector.extract_strided_slice %36 {offsets = [0, 0, 88], sizes = [2, 16, 8], strides = [1, 1, 1]} : vector<2x16x96xf32> to vector<2x16x8xf32>
    %190 = arith.truncf %189 : vector<2x16x8xf32> to vector<2x16x8xbf16>
    "tpu.trace_start"() <{level = 10 : i32, message = "bqd,bkd->bqk"}> : () -> ()
    %cst_52 = arith.constant dense<0.000000e+00> : vector<2x8x16xf32>
    %191 = tpu.matmul %186, %188, %cst_52 {dimension_numbers = #tpu.dot_dimension_numbers<[2], [2], [1], [1], [0, 0, 0, 1, 1, 1], [0], [0]>} : vector<2x8x8xbf16>, vector<2x16x8xbf16>, vector<2x8x16xf32> -> vector<2x8x16xf32>
    "tpu.trace_stop"() : () -> ()
    %cst_53 = arith.constant 0.353553385 : f32
    %192 = vector.broadcast %cst_53 : f32 to vector<2x8x16xf32>
    %193 = arith.mulf %191, %192 : vector<2x8x16xf32>
    %cst_54 = arith.constant dense<0xFF800000> : vector<2x8xf32>
    %194 = vector.multi_reduction <maximumf>, %193, %cst_54 [2] : vector<2x8x16xf32> to vector<2x8xf32>
    %195 = vector.shape_cast %194 : vector<2x8xf32> to vector<2x8x1xf32>
    %196 = vector.broadcast %195 : vector<2x8x1xf32> to vector<2x8x16xf32>
    %197 = arith.subf %193, %196 : vector<2x8x16xf32>
    %198 = math.exp %197 : vector<2x8x16xf32>
    %cst_55 = arith.constant dense<0.000000e+00> : vector<2x8xf32>
    %199 = vector.multi_reduction <add>, %198, %cst_55 [2] : vector<2x8x16xf32> to vector<2x8xf32>
    %200 = vector.shape_cast %199 : vector<2x8xf32> to vector<2x8x1xf32>
    %201 = vector.broadcast %200 : vector<2x8x1xf32> to vector<2x8x16xf32>
    %202 = arith.divf %198, %201 : vector<2x8x16xf32>
    %203 = arith.truncf %202 : vector<2x8x16xf32> to vector<2x8x16xbf16>
    "tpu.trace_start"() <{level = 10 : i32, message = "bqk,bkd->bqd"}> : () -> ()
    %cst_56 = arith.constant dense<0.000000e+00> : vector<2x8x8xf32>
    %204 = tpu.matmul %203, %190, %cst_56 {dimension_numbers = #tpu.dot_dimension_numbers<[2], [1], [1], [2], [0, 0, 0, 1, 1, 2], [0], [0]>} : vector<2x8x16xbf16>, vector<2x16x8xbf16>, vector<2x8x8xf32> -> vector<2x8x8xf32>
    "tpu.trace_stop"() : () -> ()
    %205 = tpu.concatenate %144, %164, %184, %204 in 2 : vector<2x8x8xf32>, vector<2x8x8xf32>, vector<2x8x8xf32>, vector<2x8x8xf32> -> vector<2x8x32xf32>
    %206 = vector.shape_cast %205 : vector<2x8x32xf32> to vector<16x32xf32>
    %c0_57 = arith.constant 0 : index
    %c0_58 = arith.constant 0 : index
    %207 = vector.load %arg6[%c0_57, %c0_58] : memref<64x32xbf16, #tpu.memory_space<vmem>>, vector<32x32xbf16>
    %208 = arith.truncf %124 : vector<32x32xf32> to vector<32x32xbf16>
    %cst_59 = arith.constant dense<0.000000e+00> : vector<32x32xf32>
    %209 = tpu.matmul %208, %207, %cst_59 {dimension_numbers = #tpu.dot_dimension_numbers<[1], [0], [0], [1], [0, 0, 1, 1], [], []>} : vector<32x32xbf16>, vector<32x32xbf16>, vector<32x32xf32> -> vector<32x32xf32>
    %210 = vector.broadcast %5 : vector<1x32xf32> to vector<32x32xf32>
    %211 = arith.addf %209, %210 : vector<32x32xf32>
    %c32_60 = arith.constant 32 : index
    %c0_61 = arith.constant 0 : index
    %212 = vector.load %arg6[%c32_60, %c0_61] : memref<64x32xbf16, #tpu.memory_space<vmem>>, vector<32x32xbf16>
    %213 = arith.truncf %206 : vector<16x32xf32> to vector<16x32xbf16>
    %cst_62 = arith.constant dense<0.000000e+00> : vector<16x32xf32>
    %214 = tpu.matmul %213, %212, %cst_62 {dimension_numbers = #tpu.dot_dimension_numbers<[1], [0], [0], [1], [0, 0, 1, 1], [], []>} : vector<16x32xbf16>, vector<32x32xbf16>, vector<16x32xf32> -> vector<16x32xf32>
    %215 = vector.broadcast %6 : vector<1x32xf32> to vector<16x32xf32>
    %216 = arith.addf %214, %215 : vector<16x32xf32>
    %217 = arith.addf %24, %211 : vector<32x32xf32>
    %cst_63 = arith.constant dense<0.000000e+00> : vector<32xf32>
    %218 = vector.multi_reduction <add>, %217, %cst_63 [1] : vector<32x32xf32> to vector<32xf32>
    %219 = vector.shape_cast %218 : vector<32xf32> to vector<32x1xf32>
    %cst_64 = arith.constant 3.200000e+01 : f32
    %220 = vector.broadcast %cst_64 : f32 to vector<32x1xf32>
    %221 = arith.divf %219, %220 : vector<32x1xf32>
    %222 = vector.broadcast %221 : vector<32x1xf32> to vector<32x32xf32>
    %223 = arith.subf %217, %222 : vector<32x32xf32>
    %224 = arith.mulf %223, %223 : vector<32x32xf32>
    %cst_65 = arith.constant dense<0.000000e+00> : vector<32xf32>
    %225 = vector.multi_reduction <add>, %224, %cst_65 [1] : vector<32x32xf32> to vector<32xf32>
    %226 = vector.shape_cast %225 : vector<32xf32> to vector<32x1xf32>
    %cst_66 = arith.constant 0.0322580636 : f32
    %227 = vector.broadcast %cst_66 : f32 to vector<32x1xf32>
    %228 = arith.mulf %226, %227 : vector<32x1xf32>
    %229 = math.sqrt %228 : vector<32x1xf32>
    %cst_67 = arith.constant 9.99999997E-7 : f32
    %230 = vector.broadcast %cst_67 : f32 to vector<32x1xf32>
    %231 = arith.addf %229, %230 : vector<32x1xf32>
    %232 = vector.broadcast %231 : vector<32x1xf32> to vector<32x32xf32>
    %233 = arith.divf %223, %232 : vector<32x32xf32>
    %234 = vector.broadcast %7 : vector<1x32xf32> to vector<32x32xf32>
    %235 = arith.mulf %234, %233 : vector<32x32xf32>
    %236 = vector.broadcast %8 : vector<1x32xf32> to vector<32x32xf32>
    %237 = arith.addf %235, %236 : vector<32x32xf32>
    %238 = arith.addf %30, %216 : vector<16x32xf32>
    %cst_68 = arith.constant dense<0.000000e+00> : vector<16xf32>
    %239 = vector.multi_reduction <add>, %238, %cst_68 [1] : vector<16x32xf32> to vector<16xf32>
    %240 = vector.shape_cast %239 : vector<16xf32> to vector<16x1xf32>
    %cst_69 = arith.constant 3.200000e+01 : f32
    %241 = vector.broadcast %cst_69 : f32 to vector<16x1xf32>
    %242 = arith.divf %240, %241 : vector<16x1xf32>
    %243 = vector.broadcast %242 : vector<16x1xf32> to vector<16x32xf32>
    %244 = arith.subf %238, %243 : vector<16x32xf32>
    %245 = arith.mulf %244, %244 : vector<16x32xf32>
    %cst_70 = arith.constant dense<0.000000e+00> : vector<16xf32>
    %246 = vector.multi_reduction <add>, %245, %cst_70 [1] : vector<16x32xf32> to vector<16xf32>
    %247 = vector.shape_cast %246 : vector<16xf32> to vector<16x1xf32>
    %cst_71 = arith.constant 0.0322580636 : f32
    %248 = vector.broadcast %cst_71 : f32 to vector<16x1xf32>
    %249 = arith.mulf %247, %248 : vector<16x1xf32>
    %250 = math.sqrt %249 : vector<16x1xf32>
    %cst_72 = arith.constant 9.99999997E-7 : f32
    %251 = vector.broadcast %cst_72 : f32 to vector<16x1xf32>
    %252 = arith.addf %250, %251 : vector<16x1xf32>
    %253 = vector.broadcast %252 : vector<16x1xf32> to vector<16x32xf32>
    %254 = arith.divf %244, %253 : vector<16x32xf32>
    %255 = vector.broadcast %9 : vector<1x32xf32> to vector<16x32xf32>
    %256 = arith.mulf %255, %254 : vector<16x32xf32>
    %257 = vector.broadcast %10 : vector<1x32xf32> to vector<16x32xf32>
    %258 = arith.addf %256, %257 : vector<16x32xf32>
    %c0_73 = arith.constant 0 : index
    %c0_74 = arith.constant 0 : index
    %259 = vector.load %arg7[%c0_73, %c0_74] : memref<64x128xbf16, #tpu.memory_space<vmem>>, vector<32x128xbf16>
    %c0_75 = arith.constant 0 : index
    %c0_76 = arith.constant 0 : index
    %260 = vector.load %arg8[%c0_75, %c0_76] : memref<256x32xbf16, #tpu.memory_space<vmem>>, vector<128x32xbf16>
    %261 = arith.truncf %237 : vector<32x32xf32> to vector<32x32xbf16>
    %cst_77 = arith.constant dense<0.000000e+00> : vector<32x128xf32>
    %262 = tpu.matmul %261, %259, %cst_77 {dimension_numbers = #tpu.dot_dimension_numbers<[1], [0], [0], [1], [0, 0, 1, 1], [], []>} : vector<32x32xbf16>, vector<32x128xbf16>, vector<32x128xf32> -> vector<32x128xf32>
    %263 = vector.broadcast %11 : vector<1x128xf32> to vector<32x128xf32>
    %264 = arith.addf %262, %263 : vector<32x128xf32>
    %cst_78 = arith.constant 0.000000e+00 : f32
    %265 = vector.broadcast %cst_78 : f32 to vector<32x128xf32>
    %266 = arith.maximumf %264, %265 : vector<32x128xf32>
    %267 = arith.truncf %266 : vector<32x128xf32> to vector<32x128xbf16>
    %cst_79 = arith.constant dense<0.000000e+00> : vector<32x32xf32>
    %268 = tpu.matmul %267, %260, %cst_79 {dimension_numbers = #tpu.dot_dimension_numbers<[1], [0], [0], [1], [0, 0, 1, 1], [], []>} : vector<32x128xbf16>, vector<128x32xbf16>, vector<32x32xf32> -> vector<32x32xf32>
    %269 = vector.broadcast %13 : vector<1x32xf32> to vector<32x32xf32>
    %270 = arith.addf %268, %269 : vector<32x32xf32>
    %271 = arith.addf %237, %270 : vector<32x32xf32>
    %cst_80 = arith.constant dense<0.000000e+00> : vector<32xf32>
    %272 = vector.multi_reduction <add>, %271, %cst_80 [1] : vector<32x32xf32> to vector<32xf32>
    %273 = vector.shape_cast %272 : vector<32xf32> to vector<32x1xf32>
    %cst_81 = arith.constant 3.200000e+01 : f32
    %274 = vector.broadcast %cst_81 : f32 to vector<32x1xf32>
    %275 = arith.divf %273, %274 : vector<32x1xf32>
    %276 = vector.broadcast %275 : vector<32x1xf32> to vector<32x32xf32>
    %277 = arith.subf %271, %276 : vector<32x32xf32>
    %278 = arith.mulf %277, %277 : vector<32x32xf32>
    %cst_82 = arith.constant dense<0.000000e+00> : vector<32xf32>
    %279 = vector.multi_reduction <add>, %278, %cst_82 [1] : vector<32x32xf32> to vector<32xf32>
    %280 = vector.shape_cast %279 : vector<32xf32> to vector<32x1xf32>
    %cst_83 = arith.constant 0.0322580636 : f32
    %281 = vector.broadcast %cst_83 : f32 to vector<32x1xf32>
    %282 = arith.mulf %280, %281 : vector<32x1xf32>
    %283 = math.sqrt %282 : vector<32x1xf32>
    %cst_84 = arith.constant 9.99999997E-7 : f32
    %284 = vector.broadcast %cst_84 : f32 to vector<32x1xf32>
    %285 = arith.addf %283, %284 : vector<32x1xf32>
    %286 = vector.broadcast %285 : vector<32x1xf32> to vector<32x32xf32>
    %287 = arith.divf %277, %286 : vector<32x32xf32>
    %288 = vector.broadcast %15 : vector<1x32xf32> to vector<32x32xf32>
    %289 = arith.mulf %288, %287 : vector<32x32xf32>
    %290 = vector.broadcast %16 : vector<1x32xf32> to vector<32x32xf32>
    %291 = arith.addf %289, %290 : vector<32x32xf32>
    %c32_85 = arith.constant 32 : index
    %c0_86 = arith.constant 0 : index
    %292 = vector.load %arg7[%c32_85, %c0_86] : memref<64x128xbf16, #tpu.memory_space<vmem>>, vector<32x128xbf16>
    %c128 = arith.constant 128 : index
    %c0_87 = arith.constant 0 : index
    %293 = vector.load %arg8[%c128, %c0_87] : memref<256x32xbf16, #tpu.memory_space<vmem>>, vector<128x32xbf16>
    %294 = arith.truncf %258 : vector<16x32xf32> to vector<16x32xbf16>
    %cst_88 = arith.constant dense<0.000000e+00> : vector<16x128xf32>
    %295 = tpu.matmul %294, %292, %cst_88 {dimension_numbers = #tpu.dot_dimension_numbers<[1], [0], [0], [1], [0, 0, 1, 1], [], []>} : vector<16x32xbf16>, vector<32x128xbf16>, vector<16x128xf32> -> vector<16x128xf32>
    %296 = vector.broadcast %12 : vector<1x128xf32> to vector<16x128xf32>
    %297 = arith.addf %295, %296 : vector<16x128xf32>
    %cst_89 = arith.constant 0.000000e+00 : f32
    %298 = vector.broadcast %cst_89 : f32 to vector<16x128xf32>
    %299 = arith.maximumf %297, %298 : vector<16x128xf32>
    %300 = arith.truncf %299 : vector<16x128xf32> to vector<16x128xbf16>
    %cst_90 = arith.constant dense<0.000000e+00> : vector<16x32xf32>
    %301 = tpu.matmul %300, %293, %cst_90 {dimension_numbers = #tpu.dot_dimension_numbers<[1], [0], [0], [1], [0, 0, 1, 1], [], []>} : vector<16x128xbf16>, vector<128x32xbf16>, vector<16x32xf32> -> vector<16x32xf32>
    %302 = vector.broadcast %14 : vector<1x32xf32> to vector<16x32xf32>
    %303 = arith.addf %301, %302 : vector<16x32xf32>
    %304 = arith.addf %258, %303 : vector<16x32xf32>
    %cst_91 = arith.constant dense<0.000000e+00> : vector<16xf32>
    %305 = vector.multi_reduction <add>, %304, %cst_91 [1] : vector<16x32xf32> to vector<16xf32>
    %306 = vector.shape_cast %305 : vector<16xf32> to vector<16x1xf32>
    %cst_92 = arith.constant 3.200000e+01 : f32
    %307 = vector.broadcast %cst_92 : f32 to vector<16x1xf32>
    %308 = arith.divf %306, %307 : vector<16x1xf32>
    %309 = vector.broadcast %308 : vector<16x1xf32> to vector<16x32xf32>
    %310 = arith.subf %304, %309 : vector<16x32xf32>
    %311 = arith.mulf %310, %310 : vector<16x32xf32>
    %cst_93 = arith.constant dense<0.000000e+00> : vector<16xf32>
    %312 = vector.multi_reduction <add>, %311, %cst_93 [1] : vector<16x32xf32> to vector<16xf32>
    %313 = vector.shape_cast %312 : vector<16xf32> to vector<16x1xf32>
    %cst_94 = arith.constant 0.0322580636 : f32
    %314 = vector.broadcast %cst_94 : f32 to vector<16x1xf32>
    %315 = arith.mulf %313, %314 : vector<16x1xf32>
    %316 = math.sqrt %315 : vector<16x1xf32>
    %cst_95 = arith.constant 9.99999997E-7 : f32
    %317 = vector.broadcast %cst_95 : f32 to vector<16x1xf32>
    %318 = arith.addf %316, %317 : vector<16x1xf32>
    %319 = vector.broadcast %318 : vector<16x1xf32> to vector<16x32xf32>
    %320 = arith.divf %310, %319 : vector<16x32xf32>
    %321 = vector.broadcast %17 : vector<1x32xf32> to vector<16x32xf32>
    %322 = arith.mulf %321, %320 : vector<16x32xf32>
    %323 = vector.broadcast %18 : vector<1x32xf32> to vector<16x32xf32>
    %324 = arith.addf %322, %323 : vector<16x32xf32>
    %325 = vector.shape_cast %291 : vector<32x32xf32> to vector<2x16x32xf32>
    %c0_96 = arith.constant 0 : index
    %c0_97 = arith.constant 0 : index
    %c0_98 = arith.constant 0 : index
    %326 = vector.load %arg10[%c0_96, %c0_97, %c0_98] : memref<2x24x32xf32, #tpu.memory_space<vmem>>, vector<2x16x32xf32>
    tpu.vector_store %arg10[%c0_96, %c0_97, %c0_98], %325 {strides = array<i32>} : memref<2x24x32xf32, #tpu.memory_space<vmem>>, vector<2x16x32xf32>,
    %327 = vector.shape_cast %324 : vector<16x32xf32> to vector<2x8x32xf32>
    %c0_99 = arith.constant 0 : index
    %c16 = arith.constant 16 : index
    %c0_100 = arith.constant 0 : index
    %328 = vector.load %arg10[%c0_99, %c16, %c0_100] : memref<2x24x32xf32, #tpu.memory_space<vmem>>, vector<2x8x32xf32>
    tpu.vector_store %arg10[%c0_99, %c16, %c0_100], %327 {strides = array<i32>} : memref<2x24x32xf32, #tpu.memory_space<vmem>>, vector<2x8x32xf32>,
    return
  }
  func.func @transform_0(%arg0: i32) -> (i32, i32, i32) {
    %c0_i32 = arith.constant 0 : i32
    %c0_i32_0 = arith.constant 0 : i32
    %c0_i32_1 = arith.constant 0 : i32
    return %arg0, %c0_i32, %c0_i32_0 : i32, i32, i32
  }
  func.func @transform_1(%arg0: i32) -> (i32, i32, i32) {
    %c0_i32 = arith.constant 0 : i32
    %c0_i32_0 = arith.constant 0 : i32
    %c0_i32_1 = arith.constant 0 : i32
    return %arg0, %c0_i32, %c0_i32_0 : i32, i32, i32
  }
  func.func @transform_2(%arg0: i32) -> (i32, i32) {
    %c0_i32 = arith.constant 0 : i32
    %c0_i32_0 = arith.constant 0 : i32
    %c0_i32_1 = arith.constant 0 : i32
    return %c0_i32, %c0_i32_0 : i32, i32
  }
  func.func @transform_3(%arg0: i32) -> (i32, i32) {
    %c0_i32 = arith.constant 0 : i32
    %c0_i32_0 = arith.constant 0 : i32
    %c0_i32_1 = arith.constant 0 : i32
    return %c0_i32, %c0_i32_0 : i32, i32
  }
  func.func @transform_4(%arg0: i32) -> (i32, i32) {
    %c0_i32 = arith.constant 0 : i32
    %c0_i32_0 = arith.constant 0 : i32
    %c0_i32_1 = arith.constant 0 : i32
    return %c0_i32, %c0_i32_0 : i32, i32
  }
  func.func @transform_5(%arg0: i32) -> (i32, i32) {
    %c0_i32 = arith.constant 0 : i32
    %c0_i32_0 = arith.constant 0 : i32
    %c0_i32_1 = arith.constant 0 : i32
    return %c0_i32, %c0_i32_0 : i32, i32
  }
  func.func @transform_6(%arg0: i32) -> (i32, i32) {
    %c0_i32 = arith.constant 0 : i32
    %c0_i32_0 = arith.constant 0 : i32
    %c0_i32_1 = arith.constant 0 : i32
    return %c0_i32, %c0_i32_0 : i32, i32
  }
  func.func @transform_7(%arg0: i32) -> (i32, i32) {
    %c0_i32 = arith.constant 0 : i32
    %c0_i32_0 = arith.constant 0 : i32
    %c0_i32_1 = arith.constant 0 : i32
    return %c0_i32, %c0_i32_0 : i32, i32
  }
  func.func @transform_8(%arg0: i32) -> (i32, i32) {
    %c0_i32 = arith.constant 0 : i32
    %c0_i32_0 = arith.constant 0 : i32
    %c0_i32_1 = arith.constant 0 : i32
    return %c0_i32, %c0_i32_0 : i32, i32
  }
  func.func @transform_9(%arg0: i32) -> (i32, i32, i32) {
    %c0_i32 = arith.constant 0 : i32
    %c0_i32_0 = arith.constant 0 : i32
    %c0_i32_1 = arith.constant 0 : i32
    return %arg0, %c0_i32, %c0_i32_0 : i32, i32, i32
  }
}

</mosaic_0001>

<llo_original>
// kernel: tpu_custom_call.1
$region0: #{tpu_custom_call.1}
  #allocation0 [shape = 'u32[]', space=smem, size = 0x4, offset = 0x4, fixed_abs, tag = 'smem constant byte address 0x4 - core index']
  #allocation1 [shape = 'u32[144,128]{1,0:T(1,128)}', space=vmem, size = 0x12000, scoped, tag = 'internal scratch']
  %s0 = inlined_call_operand.vmem [shape: bf16[2,16,20], index: 0, kind: input, shape index: {}]
  %s1 = inlined_call_operand.vmem [shape: bf16[2,8,24], index: 1, kind: input, shape index: {}]
  %s2 = inlined_call_operand.vmem [shape: bf16[20,32], index: 2, kind: input, shape index: {}]
  %s3 = inlined_call_operand.vmem [shape: bf16[24,32], index: 3, kind: input, shape index: {}]
  %s4 = inlined_call_operand.vmem [shape: bf16[64,96], index: 4, kind: input, shape index: {}]
  %s5 = inlined_call_operand.vmem [shape: bf16[64,32], index: 5, kind: input, shape index: {}]
  %s6 = inlined_call_operand.vmem [shape: bf16[64,128], index: 6, kind: input, shape index: {}]
  %s7 = inlined_call_operand.vmem [shape: bf16[256,32], index: 7, kind: input, shape index: {}]
  %s8 = inlined_call_operand.vmem [shape: f32[18,128], index: 8, kind: input, shape index: {}]
  %s9 = inlined_call_operand.hbm [shape: f32[2,24,32], index: 9, kind: output, shape index: {}]
  %s10 = sld [smem:[#allocation0]]
  $region46: #{tpu_custom_call.1} parent=0
    _
  %s12 = ssub.s32 1, %s10
  %s13 = scalar_select 0, %s12, %s10
  $region1: #{tpu_custom_call.1} parent=0
    #allocation2 [shape = 'u8[24576]{0}', space=vmem, size = 0x6000, scoped, tag = 'output window, operand 0, single buffered']
    #allocation3 [shape = 's32[1]{0}', space=sflag, size = 0x4, scoped, tag = 'scoped memory for tpu_custom_call.1']
    %14 = vsyncpa [#allocation3], 0
    // Predicated region
    $region2: #{tpu_custom_call.1} parent=1 // pred_check
      _
    $region3: #{tpu_custom_call.1} parent=1 // pred_check_branch
      %16 = sbr.rel (0) target = $region5
    $region4: #{tpu_custom_call.1} parent=1 // pred_region
      _
    $region5: #{tpu_custom_call.1} parent=1 // pred_fallthru
      _
    // Predicated region
    $region6: #{tpu_custom_call.1} parent=1 // pred_check
      _
    $region7: #{tpu_custom_call.1} parent=1 // pred_check_branch
      %18 = sbr.rel (0) target = $region9
    $region8: #{tpu_custom_call.1} parent=1 // pred_region
      _
    $region9: #{tpu_custom_call.1} parent=1 // pred_fallthru
      _
    // Predicated region
    $region10: #{tpu_custom_call.1} parent=1 // pred_check
      _
    $region11: #{tpu_custom_call.1} parent=1 // pred_check_branch
      %20 = sbr.rel (0) target = $region13
    $region12: #{tpu_custom_call.1} parent=1 // pred_region
      _
    $region13: #{tpu_custom_call.1} parent=1 // pred_fallthru
      _
    // Predicated region
    $region14: #{tpu_custom_call.1} parent=1 // pred_check
      _
    $region15: #{tpu_custom_call.1} parent=1 // pred_check_branch
      %22 = sbr.rel (0) target = $region17
    $region16: #{tpu_custom_call.1} parent=1 // pred_region
      _
    $region17: #{tpu_custom_call.1} parent=1 // pred_fallthru
      _
    // Predicated region
    $region18: #{tpu_custom_call.1} parent=1 // pred_check
      _
    $region19: #{tpu_custom_call.1} parent=1 // pred_check_branch
      %24 = sbr.rel (0) target = $region21
    $region20: #{tpu_custom_call.1} parent=1 // pred_region
      _
    $region21: #{tpu_custom_call.1} parent=1 // pred_fallthru
      _
    // Predicated region
    $region22: #{tpu_custom_call.1} parent=1 // pred_check
      _
    $region23: #{tpu_custom_call.1} parent=1 // pred_check_branch
      %26 = sbr.rel (0) target = $region25
    $region24: #{tpu_custom_call.1} parent=1 // pred_region
      _
    $region25: #{tpu_custom_call.1} parent=1 // pred_fallthru
      _
    // Predicated region
    $region26: #{tpu_custom_call.1} parent=1 // pred_check
      _
    $region27: #{tpu_custom_call.1} parent=1 // pred_check_branch
      %28 = sbr.rel (0) target = $region29
    $region28: #{tpu_custom_call.1} parent=1 // pred_region
      _
    $region29: #{tpu_custom_call.1} parent=1 // pred_fallthru
      _
    // Predicated region
    $region30: #{tpu_custom_call.1} parent=1 // pred_check
      _
    $region31: #{tpu_custom_call.1} parent=1 // pred_check_branch
      %30 = sbr.rel (0) target = $region33
    $region32: #{tpu_custom_call.1} parent=1 // pred_region
      _
    $region33: #{tpu_custom_call.1} parent=1 // pred_fallthru
      _
    // Predicated region
    $region34: #{tpu_custom_call.1} parent=1 // pred_check
      _
    $region35: #{tpu_custom_call.1} parent=1 // pred_check_branch
      %32 = sbr.rel (0) target = $region37
    $region36: #{tpu_custom_call.1} parent=1 // pred_region
      _
    $region37: #{tpu_custom_call.1} parent=1 // pred_fallthru
      _
    %v34 = vld [vmem:[%s8] sm:$0xff]
    %v35 = vld [vmem:[%s8 + $0x8] sm:$0xff]
    %v36 = vld [vmem:[%s8 + $0x10] sm:$0x3]
    %v37 = vld [vmem:[%s0] sm:$0xf]
    %v38 = vld [vmem:[%s0 + $0x4] sm:$0xf]
    %v39 = vld [vmem:[%s0 + $0x8] sm:$0xf]
    %v40 = vld [vmem:[%s0 + $0xc] sm:$0xf]
    %v41 = vld [vmem:[%s2] sm:$0xf]
    %v42 = vld [vmem:[%s2 + $0x4] sm:$0xf]
    %v43 = vld [vmem:[%s2 + $0x8] sm:$0x3]
    %v44 = vlaneseq
    %v45 = vshrl.u32 %v44, 7
    %v46 = vsub.s32 0, %v45
    %v47 = vrot.slane %v34, %v46
    %v52 = vunpack.c.l.b16 %v37
    %v53 = vunpack.c.l.b16 %v38
    %v54 = vunpack.c.l.b16 %v39
    %v55 = vunpack.c.l.b16 %v40
    %v56 = vpack.c.b16 %v53, %v52
    %v57 = vpack.c.b16 %v55, %v54
    %v61 = vunpack.c.l.b16 %v41
    %v62 = vunpack.c.l.b16 %v42
    %v63 = vunpack.c.l.b16 %v43
    %v64 = vpack.c.b16 %v62, %v61
    %v65 = vpack.c.b16 %v63, %v63
    %vm67 = vcmask 162816
    %v69 = vsel %vm67, %v56, 0
    %v72 = vsel %vm67, %v57, 0
    %vm74 = vcmask 1041408
    %v76 = vsel %vm74, %v65, 0
    %78 = vmatprep.subr.bf16.mxu0 0
    %79 = vmatpush1.bf16.msra.mxu0 %v64
    %80 = vmatprep.subr.bf16.mxu0 0
    %81 = vmatpush1.bf16.msra.mxu0 %v76
    %82 = vmatprep.subr.bf16.mxu0 0
    %83 = vmatpush1.bf16.msra.mxu0 0
    %84 = vmatprep.subr.bf16.mxu0 0
    %85 = vmatpush1.bf16.msra.mxu0 0
    %86 = vmatprep.subr.bf16.mxu0 0
    %87 = vmatpush1.bf16.msra.mxu0 0
    %88 = vmatprep.subr.bf16.mxu0 0
    %89 = vmatpush1.bf16.msra.mxu0 0
    %90 = vmatprep.subr.bf16.mxu0 0
    %91 = vmatpush1.bf16.msra.mxu0 0
    %92 = vmatprep.subr.bf16.mxu0 0
    %93 = vmatpush1.bf16.msra.mxu0 0
    %94 = vmatprep.subr.bf16.mxu0 0
    %95 = vmatpush1.bf16.msra.mxu0 0
    %96 = vmatprep.subr.bf16.mxu0 0
    %97 = vmatpush1.bf16.msra.mxu0 0
    %98 = vmatprep.subr.bf16.mxu0 0
    %99 = vmatpush1.bf16.msra.mxu0 0
    %100 = vmatprep.subr.bf16.mxu0 0
    %101 = vmatpush1.bf16.msra.mxu0 0
    %102 = vmatprep.subr.bf16.mxu0 0
    %103 = vmatpush1.bf16.msra.mxu0 0
    %104 = vmatprep.subr.bf16.mxu0 0
    %105 = vmatpush1.bf16.msra.mxu0 0
    %106 = vmatprep.subr.bf16.mxu0 0
    %107 = vmatpush1.bf16.msra.mxu0 0
    %108 = vmatprep.subr.bf16.mxu0 0
    %109 = vmatpush1.bf16.msra.mxu0 0
    %110 = vmatprep.mubr.bf16.mxu0 0
    %111 = vmatmul.mubr.bf16.gmra.mrb[0].mxu0 %v69
    %v112 = vpop.f32.mrb[0].mxu0
    %v113 = vadd.f32 %v47, %v112
    %v114 = vpop.f32.mrb[0].mxu0
    %v115 = vpop.f32.mrb[0].mxu0
    %v116 = vadd.f32 %v47, %v115
    %v117 = vpop.f32.mrb[0].mxu0
    %118 = vmatprep.mubr.bf16.mxu0 0
    %119 = vmatmul.mubr.bf16.gmra.mrb[0].mxu0 %v72
    %v120 = vpop.f32.mrb[0].mxu0
    %v121 = vadd.f32 %v47, %v120
    %v122 = vpop.f32.mrb[0].mxu0
    %v123 = vpop.f32.mrb[0].mxu0
    %v124 = vadd.f32 %v47, %v123
    %v125 = vpop.f32.mrb[0].mxu0
    %126 = vdwg.mxu0
    %v127 = vld [vmem:[%s1] sm:$0xf]
    %v128 = vld [vmem:[%s1 + $0x4] sm:$0xf]
    %v129 = vld [vmem:[%s3] sm:$0xf]
    %v130 = vld [vmem:[%s3 + $0x4] sm:$0xf]
    %v131 = vld [vmem:[%s3 + $0x8] sm:$0xf]
    %v132 = vlaneseq
    %v133 = vshrl.u32 %v132, 7
    %v134 = vsub.s32 1, %v133
    %v135 = vrot.slane %v34, %v134
    %v138 = vunpack.c.l.b16 %v127
    %v139 = vunpack.c.l.b16 %v128
    %v140 = vpack.c.b16 %v139, %v138
    %v144 = vunpack.c.l.b16 %v129
    %v145 = vunpack.c.l.b16 %v130
    %v146 = vunpack.c.l.b16 %v131
    %v147 = vpack.c.b16 %v145, %v144
    %v148 = vpack.c.b16 %v146, %v146
    %vm150 = vcmask 195584
    %v152 = vsel %vm150, %v140, 0
    %vm154 = vcmask 1043456
    %v156 = vsel %vm154, %v148, 0
    %158 = vmatprep.subr.bf16.mxu0 0
    %159 = vmatpush1.bf16.msra.mxu0 %v147
    %160 = vmatprep.subr.bf16.mxu0 0
    %161 = vmatpush1.bf16.msra.mxu0 %v156
    %162 = vmatprep.subr.bf16.mxu0 0
    %163 = vmatpush1.bf16.msra.mxu0 0
    %164 = vmatprep.subr.bf16.mxu0 0
    %165 = vmatpush1.bf16.msra.mxu0 0
    %166 = vmatprep.subr.bf16.mxu0 0
    %167 = vmatpush1.bf16.msra.mxu0 0
    %168 = vmatprep.subr.bf16.mxu0 0
    %169 = vmatpush1.bf16.msra.mxu0 0
    %170 = vmatprep.subr.bf16.mxu0 0
    %171 = vmatpush1.bf16.msra.mxu0 0
    %172 = vmatprep.subr.bf16.mxu0 0
    %173 = vmatpush1.bf16.msra.mxu0 0
    %174 = vmatprep.subr.bf16.mxu0 0
    %175 = vmatpush1.bf16.msra.mxu0 0
    %176 = vmatprep.subr.bf16.mxu0 0
    %177 = vmatpush1.bf16.msra.mxu0 0
    %178 = vmatprep.subr.bf16.mxu0 0
    %179 = vmatpush1.bf16.msra.mxu0 0
    %180 = vmatprep.subr.bf16.mxu0 0
    %181 = vmatpush1.bf16.msra.mxu0 0
    %182 = vmatprep.subr.bf16.mxu0 0
    %183 = vmatpush1.bf16.msra.mxu0 0
    %184 = vmatprep.subr.bf16.mxu0 0
    %185 = vmatpush1.bf16.msra.mxu0 0
    %186 = vmatprep.subr.bf16.mxu0 0
    %187 = vmatpush1.bf16.msra.mxu0 0
    %188 = vmatprep.subr.bf16.mxu0 0
    %189 = vmatpush1.bf16.msra.mxu0 0
    %190 = vmatprep.mubr.bf16.mxu0 0
    %191 = vmatmul.mubr.bf16.gmra.mrb[0].mxu0 %v152
    %v192 = vpop.f32.mrb[0].mxu0
    %v193 = vadd.f32 %v135, %v192
    %v194 = vpop.f32.mrb[0].mxu0
    %v195 = vpop.f32.mrb[0].mxu0
    %v196 = vadd.f32 %v135, %v195
    %v197 = vpop.f32.mrb[0].mxu0
    %198 = vdwg.mxu0
    %v199 = vld [vmem:[%s4] sm:$0xf]
    %v200 = vld [vmem:[%s4 + $0x4] sm:$0xf]
    %v201 = vld [vmem:[%s4 + $0x8] sm:$0xf]
    %v202 = vld [vmem:[%s4 + $0xc] sm:$0xf]
    %v203 = vpack.c.bf16 %v116, %v113
    %v204 = vpack.c.bf16 %v124, %v121
    %v205 = vlaneseq
    %v206 = vshrl.u32 %v205, 7
    %v207 = vsub.s32 2, %v206
    %v208 = vrot.slane %v34, %v207
    %v213 = vunpack.c.l.b16 %v199
    %v214 = vunpack.c.l.b16 %v200
    %v215 = vunpack.c.l.b16 %v201
    %v216 = vunpack.c.l.b16 %v202
    %v217 = vpack.c.b16 %v214, %v213
    %v218 = vpack.c.b16 %v216, %v215
    %vm221 = vcmask 261120
    %v223 = vsel %vm221, %v203, 0
    %v226 = vsel %vm221, %v204, 0
    %228 = vmatprep.subr.bf16.mxu0 0
    %229 = vmatpush1.bf16.msra.mxu0 %v217
    %230 = vmatprep.subr.bf16.mxu0 0
    %231 = vmatpush1.bf16.msra.mxu0 %v218
    %232 = vmatprep.subr.bf16.mxu0 0
    %233 = vmatpush1.bf16.msra.mxu0 0
    %234 = vmatprep.subr.bf16.mxu0 0
    %235 = vmatpush1.bf16.msra.mxu0 0
    %236 = vmatprep.subr.bf16.mxu0 0
    %237 = vmatpush1.bf16.msra.mxu0 0
    %238 = vmatprep.subr.bf16.mxu0 0
    %239 = vmatpush1.bf16.msra.mxu0 0
    %240 = vmatprep.subr.bf16.mxu0 0
    %241 = vmatpush1.bf16.msra.mxu0 0
    %242 = vmatprep.subr.bf16.mxu0 0
    %243 = vmatpush1.bf16.msra.mxu0 0
    %244 = vmatprep.subr.bf16.mxu0 0
    %245 = vmatpush1.bf16.msra.mxu0 0
    %246 = vmatprep.subr.bf16.mxu0 0
    %247 = vmatpush1.bf16.msra.mxu0 0
    %248 = vmatprep.subr.bf16.mxu0 0
    %249 = vmatpush1.bf16.msra.mxu0 0
    %250 = vmatprep.subr.bf16.mxu0 0
    %251 = vmatpush1.bf16.msra.mxu0 0
    %252 = vmatprep.subr.bf16.mxu0 0
    %253 = vmatpush1.bf16.msra.mxu0 0
    %254 = vmatprep.subr.bf16.mxu0 0
    %255 = vmatpush1.bf16.msra.mxu0 0
    %256 = vmatprep.subr.bf16.mxu0 0
    %257 = vmatpush1.bf16.msra.mxu0 0
    %258 = vmatprep.subr.bf16.mxu0 0
    %259 = vmatpush1.bf16.msra.mxu0 0
    %260 = vmatprep.mubr.bf16.mxu0 0
    %261 = vmatmul.mubr.bf16.gmra.mrb[0].mxu0 %v223
    %v262 = vpop.f32.mrb[0].mxu0
    %v263 = vadd.f32 %v208, %v262
    %v264 = vpop.f32.mrb[0].mxu0
    %v265 = vpop.f32.mrb[0].mxu0
    %v266 = vadd.f32 %v208, %v265
    %v267 = vpop.f32.mrb[0].mxu0
    %268 = vmatprep.mubr.bf16.mxu0 0
    %269 = vmatmul.mubr.bf16.gmra.mrb[0].mxu0 %v226
    %v270 = vpop.f32.mrb[0].mxu0
    %v271 = vadd.f32 %v208, %v270
    %v272 = vpop.f32.mrb[0].mxu0
    %v273 = vpop.f32.mrb[0].mxu0
    %v274 = vadd.f32 %v208, %v273
    %v275 = vpop.f32.mrb[0].mxu0
    %276 = vdwg.mxu0
    %v277 = vld [vmem:[%s4 + $0x10] sm:$0xf]
    %v278 = vld [vmem:[%s4 + $0x14] sm:$0xf]
    %v279 = vld [vmem:[%s4 + $0x18] sm:$0xf]
    %v280 = vld [vmem:[%s4 + $0x1c] sm:$0xf]
    %v281 = vpack.c.bf16 %v196, %v193
    %v282 = vlaneseq
    %v283 = vshrl.u32 %v282, 7
    %v284 = vsub.s32 3, %v283
    %v285 = vrot.slane %v34, %v284
    %v290 = vunpack.c.l.b16 %v277
    %v291 = vunpack.c.l.b16 %v278
    %v292 = vunpack.c.l.b16 %v279
    %v293 = vunpack.c.l.b16 %v280
    %v294 = vpack.c.b16 %v291, %v290
    %v295 = vpack.c.b16 %v293, %v292
    %v299 = vsel %vm221, %v281, 0
    %301 = vmatprep.subr.bf16.mxu0 0
    %302 = vmatpush1.bf16.msra.mxu0 %v294
    %303 = vmatprep.subr.bf16.mxu0 0
    %304 = vmatpush1.bf16.msra.mxu0 %v295
    %305 = vmatprep.subr.bf16.mxu0 0
    %306 = vmatpush1.bf16.msra.mxu0 0
    %307 = vmatprep.subr.bf16.mxu0 0
    %308 = vmatpush1.bf16.msra.mxu0 0
    %309 = vmatprep.subr.bf16.mxu0 0
    %310 = vmatpush1.bf16.msra.mxu0 0
    %311 = vmatprep.subr.bf16.mxu0 0
    %312 = vmatpush1.bf16.msra.mxu0 0
    %313 = vmatprep.subr.bf16.mxu0 0
    %314 = vmatpush1.bf16.msra.mxu0 0
    %315 = vmatprep.subr.bf16.mxu0 0
    %316 = vmatpush1.bf16.msra.mxu0 0
    %317 = vmatprep.subr.bf16.mxu0 0
    %318 = vmatpush1.bf16.msra.mxu0 0
    %319 = vmatprep.subr.bf16.mxu0 0
    %320 = vmatpush1.bf16.msra.mxu0 0
    %321 = vmatprep.subr.bf16.mxu0 0
    %322 = vmatpush1.bf16.msra.mxu0 0
    %323 = vmatprep.subr.bf16.mxu0 0
    %324 = vmatpush1.bf16.msra.mxu0 0
    %325 = vmatprep.subr.bf16.mxu0 0
    %326 = vmatpush1.bf16.msra.mxu0 0
    %327 = vmatprep.subr.bf16.mxu0 0
    %328 = vmatpush1.bf16.msra.mxu0 0
    %329 = vmatprep.subr.bf16.mxu0 0
    %330 = vmatpush1.bf16.msra.mxu0 0
    %331 = vmatprep.subr.bf16.mxu0 0
    %332 = vmatpush1.bf16.msra.mxu0 0
    %333 = vmatprep.mubr.bf16.mxu0 0
    %334 = vmatmul.mubr.bf16.gmra.mrb[0].mxu0 %v299
    %v335 = vpop.f32.mrb[0].mxu0
    %v336 = vadd.f32 %v285, %v335
    %v337 = vpop.f32.mrb[0].mxu0
    %v338 = vpop.f32.mrb[0].mxu0
    %v339 = vadd.f32 %v285, %v338
    %v340 = vpop.f32.mrb[0].mxu0
    %341 = vdwg.mxu0
    %v342 = vpack.c.bf16 %v266, %v263
    %v343 = vpack.c.bf16 %v274, %v271
    %v344 = vpack.c.bf16 %v336, %v336
    %v345 = vpack.c.bf16 %v339, %v339
    %347 = vrot.lane.b32.xlu0 %v344, 96
    %v348 = vpop.permute.xlu0 %347
    %vm349 = vcmask 64512
    %v351 = vsel %vm349, %v342, 0
    %v354 = vsel %vm349, %v348, 0
    %356 = vmatprep.subr.bf16.mxu0 0
    %357 = vmatpush1.bf16.xpose.msra.mxu0 %v354
    %358 = vmatprep.subr.bf16.mxu0 0
    %359 = vmatpush1.bf16.xpose.msra.mxu0 0
    %360 = vmatprep.subr.bf16.mxu0 0
    %361 = vmatpush1.bf16.xpose.msra.mxu0 0
    %362 = vmatprep.subr.bf16.mxu0 0
    %363 = vmatpush1.bf16.xpose.msra.mxu0 0
    %364 = vmatprep.subr.bf16.mxu0 0
    %365 = vmatpush1.bf16.xpose.msra.mxu0 0
    %366 = vmatprep.subr.bf16.mxu0 0
    %367 = vmatpush1.bf16.xpose.msra.mxu0 0
    %368 = vmatprep.subr.bf16.mxu0 0
    %369 = vmatpush1.bf16.xpose.msra.mxu0 0
    %370 = vmatprep.subr.bf16.mxu0 0
    %371 = vmatpush1.bf16.xpose.msra.mxu0 0
    %372 = vmatprep.subr.bf16.mxu0 0
    %373 = vmatpush1.bf16.xpose.msra.mxu0 0
    %374 = vmatprep.subr.bf16.mxu0 0
    %375 = vmatpush1.bf16.xpose.msra.mxu0 0
    %376 = vmatprep.subr.bf16.mxu0 0
    %377 = vmatpush1.bf16.xpose.msra.mxu0 0
    %378 = vmatprep.subr.bf16.mxu0 0
    %379 = vmatpush1.bf16.xpose.msra.mxu0 0
    %380 = vmatprep.subr.bf16.mxu0 0
    %381 = vmatpush1.bf16.xpose.msra.mxu0 0
    %382 = vmatprep.subr.bf16.mxu0 0
    %383 = vmatpush1.bf16.xpose.msra.mxu0 0
    %384 = vmatprep.subr.bf16.mxu0 0
    %385 = vmatpush1.bf16.xpose.msra.mxu0 0
    %386 = vmatprep.subr.bf16.mxu0 0
    %387 = vmatpush1.bf16.xpose.msra.mxu0 0
    %388 = vmatprep.mubr.bf16.mxu0 0
    %389 = vmatmul.mubr.bf16.gmra.mrb[0].mxu0 %v351
    %v390 = vpop.f32.mrb[0].mxu0
    %v391 = vadd.f32 0.0, %v390
    %v392 = vpop.f32.mrb[0].mxu0
    %v393 = vpop.f32.mrb[0].mxu0
    %v394 = vadd.f32 0.0, %v393
    %v395 = vpop.f32.mrb[0].mxu0
    %396 = vdwg.mxu0
    %398 = vrot.lane.b32.xlu0 %v345, 96
    %v399 = vpop.permute.xlu0 %398
    %v401 = vsel %vm349, %v343, 0
    %v404 = vsel %vm349, %v399, 0
    %406 = vmatprep.subr.bf16.mxu0 0
    %407 = vmatpush1.bf16.xpose.msra.mxu0 %v404
    %408 = vmatprep.subr.bf16.mxu0 0
    %409 = vmatpush1.bf16.xpose.msra.mxu0 0
    %410 = vmatprep.subr.bf16.mxu0 0
    %411 = vmatpush1.bf16.xpose.msra.mxu0 0
    %412 = vmatprep.subr.bf16.mxu0 0
    %413 = vmatpush1.bf16.xpose.msra.mxu0 0
    %414 = vmatprep.subr.bf16.mxu0 0
    %415 = vmatpush1.bf16.xpose.msra.mxu0 0
    %416 = vmatprep.subr.bf16.mxu0 0
    %417 = vmatpush1.bf16.xpose.msra.mxu0 0
    %418 = vmatprep.subr.bf16.mxu0 0
    %419 = vmatpush1.bf16.xpose.msra.mxu0 0
    %420 = vmatprep.subr.bf16.mxu0 0
    %421 = vmatpush1.bf16.xpose.msra.mxu0 0
    %422 = vmatprep.subr.bf16.mxu0 0
    %423 = vmatpush1.bf16.xpose.msra.mxu0 0
    %424 = vmatprep.subr.bf16.mxu0 0
    %425 = vmatpush1.bf16.xpose.msra.mxu0 0
    %426 = vmatprep.subr.bf16.mxu0 0
    %427 = vmatpush1.bf16.xpose.msra.mxu0 0
    %428 = vmatprep.subr.bf16.mxu0 0
    %429 = vmatpush1.bf16.xpose.msra.mxu0 0
    %430 = vmatprep.subr.bf16.mxu0 0
    %431 = vmatpush1.bf16.xpose.msra.mxu0 0
    %432 = vmatprep.subr.bf16.mxu0 0
    %433 = vmatpush1.bf16.xpose.msra.mxu0 0
    %434 = vmatprep.subr.bf16.mxu0 0
    %435 = vmatpush1.bf16.xpose.msra.mxu0 0
    %436 = vmatprep.subr.bf16.mxu0 0
    %437 = vmatpush1.bf16.xpose.msra.mxu0 0
    %438 = vmatprep.mubr.bf16.mxu0 0
    %439 = vmatmul.mubr.bf16.gmra.mrb[0].mxu0 %v401
    %v440 = vpop.f32.mrb[0].mxu0
    %v441 = vadd.f32 0.0, %v440
    %v442 = vpop.f32.mrb[0].mxu0
    %v443 = vpop.f32.mrb[0].mxu0
    %v444 = vadd.f32 0.0, %v443
    %v445 = vpop.f32.mrb[0].mxu0
    %446 = vdwg.mxu0
    %v447 = vmul.f32 %v391, 0.35355338
    %v448 = vmul.f32 %v394, 0.35355338
    %v449 = vmul.f32 %v441, 0.35355338
    %v450 = vmul.f32 %v444, 0.35355338
    %v451 = vsel %vm349, %v447, -inf
    %452 = vmax.xlane.f32.xlu0 %v451
    %v453 = vpop.xlane.xlu0 %452
    %v454 = vsel %vm349, %v448, -inf
    %455 = vmax.xlane.f32.xlu0 %v454
    %v456 = vpop.xlane.xlu0 %455
    %v457 = vsel %vm349, %v449, -inf
    %458 = vmax.xlane.f32.xlu0 %v457
    %v459 = vpop.xlane.xlu0 %458
    %v460 = vsel %vm349, %v450, -inf
    %461 = vmax.xlane.f32.xlu0 %v460
    %v462 = vpop.xlane.xlu0 %461
    %v463 = vsub.f32 %v447, %v453
    %v464 = vsub.f32 %v448, %v456
    %v465 = vsub.f32 %v449, %v459
    %v466 = vsub.f32 %v450, %v462
    %v467 = vmul.f32 %v463, 1.442695
    %v468 = vpow.pop %v467
    %v469 = vmul.f32 %v464, 1.442695
    %v470 = vpow.pop %v469
    %v471 = vmul.f32 %v465, 1.442695
    %v472 = vpow.pop %v471
    %v473 = vmul.f32 %v466, 1.442695
    %v474 = vpow.pop %v473
    %v475 = vsel %vm349, %v468, 0.0
    %476 = vadd.xlane.f32.xlu0 %v475
    %v477 = vpop.xlane.xlu0 %476
    %v478 = vsel %vm349, %v470, 0.0
    %479 = vadd.xlane.f32.xlu0 %v478
    %v480 = vpop.xlane.xlu0 %479
    %v481 = vsel %vm349, %v472, 0.0
    %482 = vadd.xlane.f32.xlu0 %v481
    %v483 = vpop.xlane.xlu0 %482
    %v484 = vsel %vm349, %v474, 0.0
    %485 = vadd.xlane.f32.xlu0 %v484
    %v486 = vpop.xlane.xlu0 %485
    %v487 = vrcp.pop %v477
    %v488 = vmul.f32 %v468, %v487
    %v489 = vrcp.pop %v480
    %v490 = vmul.f32 %v470, %v489
    %v491 = vrcp.pop %v483
    %v492 = vmul.f32 %v472, %v491
    %v493 = vrcp.pop %v486
    %v494 = vmul.f32 %v474, %v493
    %v495 = vpack.c.bf16 %v490, %v488
    %v496 = vpack.c.bf16 %v494, %v492
    %497 = vrot.lane.b32.xlu0 %v344, 64
    %v498 = vpop.permute.xlu0 %497
    %v500 = vsel %vm349, %v495, 0
    %v503 = vsel %vm154, %v498, 0
    %505 = vmatprep.subr.bf16.mxu0 0
    %506 = vmatpush1.bf16.msra.mxu0 %v503
    %507 = vmatprep.subr.bf16.mxu0 0
    %508 = vmatpush1.bf16.msra.mxu0 0
    %509 = vmatprep.subr.bf16.mxu0 0
    %510 = vmatpush1.bf16.msra.mxu0 0
    %511 = vmatprep.subr.bf16.mxu0 0
    %512 = vmatpush1.bf16.msra.mxu0 0
    %513 = vmatprep.subr.bf16.mxu0 0
    %514 = vmatpush1.bf16.msra.mxu0 0
    %515 = vmatprep.subr.bf16.mxu0 0
    %516 = vmatpush1.bf16.msra.mxu0 0
    %517 = vmatprep.subr.bf16.mxu0 0
    %518 = vmatpush1.bf16.msra.mxu0 0
    %519 = vmatprep.subr.bf16.mxu0 0
    %520 = vmatpush1.bf16.msra.mxu0 0
    %521 = vmatprep.subr.bf16.mxu0 0
    %522 = vmatpush1.bf16.msra.mxu0 0
    %523 = vmatprep.subr.bf16.mxu0 0
    %524 = vmatpush1.bf16.msra.mxu0 0
    %525 = vmatprep.subr.bf16.mxu0 0
    %526 = vmatpush1.bf16.msra.mxu0 0
    %527 = vmatprep.subr.bf16.mxu0 0
    %528 = vmatpush1.bf16.msra.mxu0 0
    %529 = vmatprep.subr.bf16.mxu0 0
    %530 = vmatpush1.bf16.msra.mxu0 0
    %531 = vmatprep.subr.bf16.mxu0 0
    %532 = vmatpush1.bf16.msra.mxu0 0
    %533 = vmatprep.subr.bf16.mxu0 0
    %534 = vmatpush1.bf16.msra.mxu0 0
    %535 = vmatprep.subr.bf16.mxu0 0
    %536 = vmatpush1.bf16.msra.mxu0 0
    %537 = vmatprep.mubr.bf16.mxu0 0
    %538 = vmatmul.mubr.bf16.gmra.mrb[0].mxu0 %v500
    %v539 = vpop.f32.mrb[0].mxu0
    %v540 = vadd.f32 0.0, %v539
    %v541 = vpop.f32.mrb[0].mxu0
    %v542 = vpop.f32.mrb[0].mxu0
    %v543 = vadd.f32 0.0, %v542
    %v544 = vpop.f32.mrb[0].mxu0
    %545 = vdwg.mxu0
    %546 = vrot.lane.b32.xlu0 %v345, 64
    %v547 = vpop.permute.xlu0 %546
    %v549 = vsel %vm349, %v496, 0
    %v552 = vsel %vm154, %v547, 0
    %554 = vmatprep.subr.bf16.mxu0 0
    %555 = vmatpush1.bf16.msra.mxu0 %v552
    %556 = vmatprep.subr.bf16.mxu0 0
    %557 = vmatpush1.bf16.msra.mxu0 0
    %558 = vmatprep.subr.bf16.mxu0 0
    %559 = vmatpush1.bf16.msra.mxu0 0
    %560 = vmatprep.subr.bf16.mxu0 0
    %561 = vmatpush1.bf16.msra.mxu0 0
    %562 = vmatprep.subr.bf16.mxu0 0
    %563 = vmatpush1.bf16.msra.mxu0 0
    %564 = vmatprep.subr.bf16.mxu0 0
    %565 = vmatpush1.bf16.msra.mxu0 0
    %566 = vmatprep.subr.bf16.mxu0 0
    %567 = vmatpush1.bf16.msra.mxu0 0
    %568 = vmatprep.subr.bf16.mxu0 0
    %569 = vmatpush1.bf16.msra.mxu0 0
    %570 = vmatprep.subr.bf16.mxu0 0
    %571 = vmatpush1.bf16.msra.mxu0 0
    %572 = vmatprep.subr.bf16.mxu0 0
    %573 = vmatpush1.bf16.msra.mxu0 0
    %574 = vmatprep.subr.bf16.mxu0 0
    %575 = vmatpush1.bf16.msra.mxu0 0
    %576 = vmatprep.subr.bf16.mxu0 0
    %577 = vmatpush1.bf16.msra.mxu0 0
    %578 = vmatprep.subr.bf16.mxu0 0
    %579 = vmatpush1.bf16.msra.mxu0 0
    %580 = vmatprep.subr.bf16.mxu0 0
    %581 = vmatpush1.bf16.msra.mxu0 0
    %582 = vmatprep.subr.bf16.mxu0 0
    %583 = vmatpush1.bf16.msra.mxu0 0
    %584 = vmatprep.subr.bf16.mxu0 0
    %585 = vmatpush1.bf16.msra.mxu0 0
    %586 = vmatprep.mubr.bf16.mxu0 0
    %587 = vmatmul.mubr.bf16.gmra.mrb[0].mxu0 %v549
    %v588 = vpop.f32.mrb[0].mxu0
    %v589 = vadd.f32 0.0, %v588
    %v590 = vpop.f32.mrb[0].mxu0
    %v591 = vpop.f32.mrb[0].mxu0
    %v592 = vadd.f32 0.0, %v591
    %v593 = vpop.f32.mrb[0].mxu0
    %594 = vdwg.mxu0
    %596 = vrot.lane.b32.xlu0 %v342, 120
    %v597 = vpop.permute.xlu0 %596
    %598 = vrot.lane.b32.xlu0 %v344, 88
    %v599 = vpop.permute.xlu0 %598
    %v601 = vsel %vm349, %v597, 0
    %v604 = vsel %vm349, %v599, 0
    %606 = vmatprep.subr.bf16.mxu0 0
    %607 = vmatpush1.bf16.xpose.msra.mxu0 %v604
    %608 = vmatprep.subr.bf16.mxu0 0
    %609 = vmatpush1.bf16.xpose.msra.mxu0 0
    %610 = vmatprep.subr.bf16.mxu0 0
    %611 = vmatpush1.bf16.xpose.msra.mxu0 0
    %612 = vmatprep.subr.bf16.mxu0 0
    %613 = vmatpush1.bf16.xpose.msra.mxu0 0
    %614 = vmatprep.subr.bf16.mxu0 0
    %615 = vmatpush1.bf16.xpose.msra.mxu0 0
    %616 = vmatprep.subr.bf16.mxu0 0
    %617 = vmatpush1.bf16.xpose.msra.mxu0 0
    %618 = vmatprep.subr.bf16.mxu0 0
    %619 = vmatpush1.bf16.xpose.msra.mxu0 0
    %620 = vmatprep.subr.bf16.mxu0 0
    %621 = vmatpush1.bf16.xpose.msra.mxu0 0
    %622 = vmatprep.subr.bf16.mxu0 0
    %623 = vmatpush1.bf16.xpose.msra.mxu0 0
    %624 = vmatprep.subr.bf16.mxu0 0
    %625 = vmatpush1.bf16.xpose.msra.mxu0 0
    %626 = vmatprep.subr.bf16.mxu0 0
    %627 = vmatpush1.bf16.xpose.msra.mxu0 0
    %628 = vmatprep.subr.bf16.mxu0 0
    %629 = vmatpush1.bf16.xpose.msra.mxu0 0
    %630 = vmatprep.subr.bf16.mxu0 0
    %631 = vmatpush1.bf16.xpose.msra.mxu0 0
    %632 = vmatprep.subr.bf16.mxu0 0
    %633 = vmatpush1.bf16.xpose.msra.mxu0 0
    %634 = vmatprep.subr.bf16.mxu0 0
    %635 = vmatpush1.bf16.xpose.msra.mxu0 0
    %636 = vmatprep.subr.bf16.mxu0 0
    %637 = vmatpush1.bf16.xpose.msra.mxu0 0
    %638 = vmatprep.mubr.bf16.mxu0 0
    %639 = vmatmul.mubr.bf16.gmra.mrb[0].mxu0 %v601
    %v640 = vpop.f32.mrb[0].mxu0
    %v641 = vadd.f32 0.0, %v640
    %v642 = vpop.f32.mrb[0].mxu0
    %v643 = vpop.f32.mrb[0].mxu0
    %v644 = vadd.f32 0.0, %v643
    %v645 = vpop.f32.mrb[0].mxu0
    %646 = vdwg.mxu0
    %648 = vrot.lane.b32.xlu0 %v343, 120
    %v649 = vpop.permute.xlu0 %648
    %650 = vrot.lane.b32.xlu0 %v345, 88
    %v651 = vpop.permute.xlu0 %650
    %v653 = vsel %vm349, %v649, 0
    %v656 = vsel %vm349, %v651, 0
    %658 = vmatprep.subr.bf16.mxu0 0
    %659 = vmatpush1.bf16.xpose.msra.mxu0 %v656
    %660 = vmatprep.subr.bf16.mxu0 0
    %661 = vmatpush1.bf16.xpose.msra.mxu0 0
    %662 = vmatprep.subr.bf16.mxu0 0
    %663 = vmatpush1.bf16.xpose.msra.mxu0 0
    %664 = vmatprep.subr.bf16.mxu0 0
    %665 = vmatpush1.bf16.xpose.msra.mxu0 0
    %666 = vmatprep.subr.bf16.mxu0 0
    %667 = vmatpush1.bf16.xpose.msra.mxu0 0
    %668 = vmatprep.subr.bf16.mxu0 0
    %669 = vmatpush1.bf16.xpose.msra.mxu0 0
    %670 = vmatprep.subr.bf16.mxu0 0
    %671 = vmatpush1.bf16.xpose.msra.mxu0 0
    %672 = vmatprep.subr.bf16.mxu0 0
    %673 = vmatpush1.bf16.xpose.msra.mxu0 0
    %674 = vmatprep.subr.bf16.mxu0 0
    %675 = vmatpush1.bf16.xpose.msra.mxu0 0
    %676 = vmatprep.subr.bf16.mxu0 0
    %677 = vmatpush1.bf16.xpose.msra.mxu0 0
    %678 = vmatprep.subr.bf16.mxu0 0
    %679 = vmatpush1.bf16.xpose.msra.mxu0 0
    %680 = vmatprep.subr.bf16.mxu0 0
    %681 = vmatpush1.bf16.xpose.msra.mxu0 0
    %682 = vmatprep.subr.bf16.mxu0 0
    %683 = vmatpush1.bf16.xpose.msra.mxu0 0
    %684 = vmatprep.subr.bf16.mxu0 0
    %685 = vmatpush1.bf16.xpose.msra.mxu0 0
    %686 = vmatprep.subr.bf16.mxu0 0
    %687 = vmatpush1.bf16.xpose.msra.mxu0 0
    %688 = vmatprep.subr.bf16.mxu0 0
    %689 = vmatpush1.bf16.xpose.msra.mxu0 0
    %690 = vmatprep.mubr.bf16.mxu0 0
    %691 = vmatmul.mubr.bf16.gmra.mrb[0].mxu0 %v653
    %v692 = vpop.f32.mrb[0].mxu0
    %v693 = vadd.f32 0.0, %v692
    %v694 = vpop.f32.mrb[0].mxu0
    %v695 = vpop.f32.mrb[0].mxu0
    %v696 = vadd.f32 0.0, %v695
    %v697 = vpop.f32.mrb[0].mxu0
    %698 = vdwg.mxu0
    %v699 = vmul.f32 %v641, 0.35355338
    %v700 = vmul.f32 %v644, 0.35355338
    %v701 = vmul.f32 %v693, 0.35355338
    %v702 = vmul.f32 %v696, 0.35355338
    %v703 = vsel %vm349, %v699, -inf
    %704 = vmax.xlane.f32.xlu0 %v703
    %v705 = vpop.xlane.xlu0 %704
    %v706 = vsel %vm349, %v700, -inf
    %707 = vmax.xlane.f32.xlu0 %v706
    %v708 = vpop.xlane.xlu0 %707
    %v709 = vsel %vm349, %v701, -inf
    %710 = vmax.xlane.f32.xlu0 %v709
    %v711 = vpop.xlane.xlu0 %710
    %v712 = vsel %vm349, %v702, -inf
    %713 = vmax.xlane.f32.xlu0 %v712
    %v714 = vpop.xlane.xlu0 %713
    %v715 = vsub.f32 %v699, %v705
    %v716 = vsub.f32 %v700, %v708
    %v717 = vsub.f32 %v701, %v711
    %v718 = vsub.f32 %v702, %v714
    %v719 = vmul.f32 %v715, 1.442695
    %v720 = vpow.pop %v719
    %v721 = vmul.f32 %v716, 1.442695
    %v722 = vpow.pop %v721
    %v723 = vmul.f32 %v717, 1.442695
    %v724 = vpow.pop %v723
    %v725 = vmul.f32 %v718, 1.442695
    %v726 = vpow.pop %v725
    %v727 = vsel %vm349, %v720, 0.0
    %728 = vadd.xlane.f32.xlu0 %v727
    %v729 = vpop.xlane.xlu0 %728
    %v730 = vsel %vm349, %v722, 0.0
    %731 = vadd.xlane.f32.xlu0 %v730
    %v732 = vpop.xlane.xlu0 %731
    %v733 = vsel %vm349, %v724, 0.0
    %734 = vadd.xlane.f32.xlu0 %v733
    %v735 = vpop.xlane.xlu0 %734
    %v736 = vsel %vm349, %v726, 0.0
    %737 = vadd.xlane.f32.xlu0 %v736
    %v738 = vpop.xlane.xlu0 %737
    %v739 = vrcp.pop %v729
    %v740 = vmul.f32 %v720, %v739
    %v741 = vrcp.pop %v732
    %v742 = vmul.f32 %v722, %v741
    %v743 = vrcp.pop %v735
    %v744 = vmul.f32 %v724, %v743
    %v745 = vrcp.pop %v738
    %v746 = vmul.f32 %v726, %v745
    %v747 = vpack.c.bf16 %v742, %v740
    %v748 = vpack.c.bf16 %v746, %v744
    %749 = vrot.lane.b32.xlu0 %v344, 56
    %v750 = vpop.permute.xlu0 %749
    %v752 = vsel %vm349, %v747, 0
    %v755 = vsel %vm154, %v750, 0
    %757 = vmatprep.subr.bf16.mxu0 0
    %758 = vmatpush1.bf16.msra.mxu0 %v755
    %759 = vmatprep.subr.bf16.mxu0 0
    %760 = vmatpush1.bf16.msra.mxu0 0
    %761 = vmatprep.subr.bf16.mxu0 0
    %762 = vmatpush1.bf16.msra.mxu0 0
    %763 = vmatprep.subr.bf16.mxu0 0
    %764 = vmatpush1.bf16.msra.mxu0 0
    %765 = vmatprep.subr.bf16.mxu0 0
    %766 = vmatpush1.bf16.msra.mxu0 0
    %767 = vmatprep.subr.bf16.mxu0 0
    %768 = vmatpush1.bf16.msra.mxu0 0
    %769 = vmatprep.subr.bf16.mxu0 0
    %770 = vmatpush1.bf16.msra.mxu0 0
    %771 = vmatprep.subr.bf16.mxu0 0
    %772 = vmatpush1.bf16.msra.mxu0 0
    %773 = vmatprep.subr.bf16.mxu0 0
    %774 = vmatpush1.bf16.msra.mxu0 0
    %775 = vmatprep.subr.bf16.mxu0 0
    %776 = vmatpush1.bf16.msra.mxu0 0
    %777 = vmatprep.subr.bf16.mxu0 0
    %778 = vmatpush1.bf16.msra.mxu0 0
    %779 = vmatprep.subr.bf16.mxu0 0
    %780 = vmatpush1.bf16.msra.mxu0 0
    %781 = vmatprep.subr.bf16.mxu0 0
    %782 = vmatpush1.bf16.msra.mxu0 0
    %783 = vmatprep.subr.bf16.mxu0 0
    %784 = vmatpush1.bf16.msra.mxu0 0
    %785 = vmatprep.subr.bf16.mxu0 0
    %786 = vmatpush1.bf16.msra.mxu0 0
    %787 = vmatprep.subr.bf16.mxu0 0
    %788 = vmatpush1.bf16.msra.mxu0 0
    %789 = vmatprep.mubr.bf16.mxu0 0
    %790 = vmatmul.mubr.bf16.gmra.mrb[0].mxu0 %v752
    %v791 = vpop.f32.mrb[0].mxu0
    %v792 = vadd.f32 0.0, %v791
    %v793 = vpop.f32.mrb[0].mxu0
    %v794 = vpop.f32.mrb[0].mxu0
    %v795 = vadd.f32 0.0, %v794
    %v796 = vpop.f32.mrb[0].mxu0
    %797 = vdwg.mxu0
    %798 = vrot.lane.b32.xlu0 %v345, 56
    %v799 = vpop.permute.xlu0 %798
    %v801 = vsel %vm349, %v748, 0
    %v804 = vsel %vm154, %v799, 0
    %806 = vmatprep.subr.bf16.mxu0 0
    %807 = vmatpush1.bf16.msra.mxu0 %v804
    %808 = vmatprep.subr.bf16.mxu0 0
    %809 = vmatpush1.bf16.msra.mxu0 0
    %810 = vmatprep.subr.bf16.mxu0 0
    %811 = vmatpush1.bf16.msra.mxu0 0
    %812 = vmatprep.subr.bf16.mxu0 0
    %813 = vmatpush1.bf16.msra.mxu0 0
    %814 = vmatprep.subr.bf16.mxu0 0
    %815 = vmatpush1.bf16.msra.mxu0 0
    %816 = vmatprep.subr.bf16.mxu0 0
    %817 = vmatpush1.bf16.msra.mxu0 0
    %818 = vmatprep.subr.bf16.mxu0 0
    %819 = vmatpush1.bf16.msra.mxu0 0
    %820 = vmatprep.subr.bf16.mxu0 0
    %821 = vmatpush1.bf16.msra.mxu0 0
    %822 = vmatprep.subr.bf16.mxu0 0
    %823 = vmatpush1.bf16.msra.mxu0 0
    %824 = vmatprep.subr.bf16.mxu0 0
    %825 = vmatpush1.bf16.msra.mxu0 0
    %826 = vmatprep.subr.bf16.mxu0 0
    %827 = vmatpush1.bf16.msra.mxu0 0
    %828 = vmatprep.subr.bf16.mxu0 0
    %829 = vmatpush1.bf16.msra.mxu0 0
    %830 = vmatprep.subr.bf16.mxu0 0
    %831 = vmatpush1.bf16.msra.mxu0 0
    %832 = vmatprep.subr.bf16.mxu0 0
    %833 = vmatpush1.bf16.msra.mxu0 0
    %834 = vmatprep.subr.bf16.mxu0 0
    %835 = vmatpush1.bf16.msra.mxu0 0
    %836 = vmatprep.subr.bf16.mxu0 0
    %837 = vmatpush1.bf16.msra.mxu0 0
    %838 = vmatprep.mubr.bf16.mxu0 0
    %839 = vmatmul.mubr.bf16.gmra.mrb[0].mxu0 %v801
    %v840 = vpop.f32.mrb[0].mxu0
    %v841 = vadd.f32 0.0, %v840
    %v842 = vpop.f32.mrb[0].mxu0
    %v843 = vpop.f32.mrb[0].mxu0
    %v844 = vadd.f32 0.0, %v843
    %v845 = vpop.f32.mrb[0].mxu0
    %846 = vdwg.mxu0
    %847 = vrot.lane.b32.xlu0 %v342, 112
    %v848 = vpop.permute.xlu0 %847
    %849 = vrot.lane.b32.xlu0 %v344, 80
    %v850 = vpop.permute.xlu0 %849
    %v852 = vsel %vm349, %v848, 0
    %v855 = vsel %vm349, %v850, 0
    %857 = vmatprep.subr.bf16.mxu0 0
    %858 = vmatpush1.bf16.xpose.msra.mxu0 %v855
    %859 = vmatprep.subr.bf16.mxu0 0
    %860 = vmatpush1.bf16.xpose.msra.mxu0 0
    %861 = vmatprep.subr.bf16.mxu0 0
    %862 = vmatpush1.bf16.xpose.msra.mxu0 0
    %863 = vmatprep.subr.bf16.mxu0 0
    %864 = vmatpush1.bf16.xpose.msra.mxu0 0
    %865 = vmatprep.subr.bf16.mxu0 0
    %866 = vmatpush1.bf16.xpose.msra.mxu0 0
    %867 = vmatprep.subr.bf16.mxu0 0
    %868 = vmatpush1.bf16.xpose.msra.mxu0 0
    %869 = vmatprep.subr.bf16.mxu0 0
    %870 = vmatpush1.bf16.xpose.msra.mxu0 0
    %871 = vmatprep.subr.bf16.mxu0 0
    %872 = vmatpush1.bf16.xpose.msra.mxu0 0
    %873 = vmatprep.subr.bf16.mxu0 0
    %874 = vmatpush1.bf16.xpose.msra.mxu0 0
    %875 = vmatprep.subr.bf16.mxu0 0
    %876 = vmatpush1.bf16.xpose.msra.mxu0 0
    %877 = vmatprep.subr.bf16.mxu0 0
    %878 = vmatpush1.bf16.xpose.msra.mxu0 0
    %879 = vmatprep.subr.bf16.mxu0 0
    %880 = vmatpush1.bf16.xpose.msra.mxu0 0
    %881 = vmatprep.subr.bf16.mxu0 0
    %882 = vmatpush1.bf16.xpose.msra.mxu0 0
    %883 = vmatprep.subr.bf16.mxu0 0
    %884 = vmatpush1.bf16.xpose.msra.mxu0 0
    %885 = vmatprep.subr.bf16.mxu0 0
    %886 = vmatpush1.bf16.xpose.msra.mxu0 0
    %887 = vmatprep.subr.bf16.mxu0 0
    %888 = vmatpush1.bf16.xpose.msra.mxu0 0
    %889 = vmatprep.mubr.bf16.mxu0 0
    %890 = vmatmul.mubr.bf16.gmra.mrb[0].mxu0 %v852
    %v891 = vpop.f32.mrb[0].mxu0
    %v892 = vadd.f32 0.0, %v891
    %v893 = vpop.f32.mrb[0].mxu0
    %v894 = vpop.f32.mrb[0].mxu0
    %v895 = vadd.f32 0.0, %v894
    %v896 = vpop.f32.mrb[0].mxu0
    %897 = vdwg.mxu0
    %898 = vrot.lane.b32.xlu0 %v343, 112
    %v899 = vpop.permute.xlu0 %898
    %900 = vrot.lane.b32.xlu0 %v345, 80
    %v901 = vpop.permute.xlu0 %900
    %v903 = vsel %vm349, %v899, 0
    %v906 = vsel %vm349, %v901, 0
    %908 = vmatprep.subr.bf16.mxu0 0
    %909 = vmatpush1.bf16.xpose.msra.mxu0 %v906
    %910 = vmatprep.subr.bf16.mxu0 0
    %911 = vmatpush1.bf16.xpose.msra.mxu0 0
    %912 = vmatprep.subr.bf16.mxu0 0
    %913 = vmatpush1.bf16.xpose.msra.mxu0 0
    %914 = vmatprep.subr.bf16.mxu0 0
    %915 = vmatpush1.bf16.xpose.msra.mxu0 0
    %916 = vmatprep.subr.bf16.mxu0 0
    %917 = vmatpush1.bf16.xpose.msra.mxu0 0
    %918 = vmatprep.subr.bf16.mxu0 0
    %919 = vmatpush1.bf16.xpose.msra.mxu0 0
    %920 = vmatprep.subr.bf16.mxu0 0
    %921 = vmatpush1.bf16.xpose.msra.mxu0 0
    %922 = vmatprep.subr.bf16.mxu0 0
    %923 = vmatpush1.bf16.xpose.msra.mxu0 0
    %924 = vmatprep.subr.bf16.mxu0 0
    %925 = vmatpush1.bf16.xpose.msra.mxu0 0
    %926 = vmatprep.subr.bf16.mxu0 0
    %927 = vmatpush1.bf16.xpose.msra.mxu0 0
    %928 = vmatprep.subr.bf16.mxu0 0
    %929 = vmatpush1.bf16.xpose.msra.mxu0 0
    %930 = vmatprep.subr.bf16.mxu0 0
    %931 = vmatpush1.bf16.xpose.msra.mxu0 0
    %932 = vmatprep.subr.bf16.mxu0 0
    %933 = vmatpush1.bf16.xpose.msra.mxu0 0
    %934 = vmatprep.subr.bf16.mxu0 0
    %935 = vmatpush1.bf16.xpose.msra.mxu0 0
    %936 = vmatprep.subr.bf16.mxu0 0
    %937 = vmatpush1.bf16.xpose.msra.mxu0 0
    %938 = vmatprep.subr.bf16.mxu0 0
    %939 = vmatpush1.bf16.xpose.msra.mxu0 0
    %940 = vmatprep.mubr.bf16.mxu0 0
    %941 = vmatmul.mubr.bf16.gmra.mrb[0].mxu0 %v903
    %v942 = vpop.f32.mrb[0].mxu0
    %v943 = vadd.f32 0.0, %v942
    %v944 = vpop.f32.mrb[0].mxu0
    %v945 = vpop.f32.mrb[0].mxu0
    %v946 = vadd.f32 0.0, %v945
    %v947 = vpop.f32.mrb[0].mxu0
    %948 = vdwg.mxu0
    %v949 = vmul.f32 %v892, 0.35355338
    %v950 = vmul.f32 %v895, 0.35355338
    %v951 = vmul.f32 %v943, 0.35355338
    %v952 = vmul.f32 %v946, 0.35355338
    %v953 = vsel %vm349, %v949, -inf
    %954 = vmax.xlane.f32.xlu0 %v953
    %v955 = vpop.xlane.xlu0 %954
    %v956 = vsel %vm349, %v950, -inf
    %957 = vmax.xlane.f32.xlu0 %v956
    %v958 = vpop.xlane.xlu0 %957
    %v959 = vsel %vm349, %v951, -inf
    %960 = vmax.xlane.f32.xlu0 %v959
    %v961 = vpop.xlane.xlu0 %960
    %v962 = vsel %vm349, %v952, -inf
    %963 = vmax.xlane.f32.xlu0 %v962
    %v964 = vpop.xlane.xlu0 %963
    %v965 = vsub.f32 %v949, %v955
    %v966 = vsub.f32 %v950, %v958
    %v967 = vsub.f32 %v951, %v961
    %v968 = vsub.f32 %v952, %v964
    %v969 = vmul.f32 %v965, 1.442695
    %v970 = vpow.pop %v969
    %v971 = vmul.f32 %v966, 1.442695
    %v972 = vpow.pop %v971
    %v973 = vmul.f32 %v967, 1.442695
    %v974 = vpow.pop %v973
    %v975 = vmul.f32 %v968, 1.442695
    %v976 = vpow.pop %v975
    %v977 = vsel %vm349, %v970, 0.0
    %978 = vadd.xlane.f32.xlu0 %v977
    %v979 = vpop.xlane.xlu0 %978
    %v980 = vsel %vm349, %v972, 0.0
    %981 = vadd.xlane.f32.xlu0 %v980
    %v982 = vpop.xlane.xlu0 %981
    %v983 = vsel %vm349, %v974, 0.0
    %984 = vadd.xlane.f32.xlu0 %v983
    %v985 = vpop.xlane.xlu0 %984
    %v986 = vsel %vm349, %v976, 0.0
    %987 = vadd.xlane.f32.xlu0 %v986
    %v988 = vpop.xlane.xlu0 %987
    %v989 = vrcp.pop %v979
    %v990 = vmul.f32 %v970, %v989
    %v991 = vrcp.pop %v982
    %v992 = vmul.f32 %v972, %v991
    %v993 = vrcp.pop %v985
    %v994 = vmul.f32 %v974, %v993
    %v995 = vrcp.pop %v988
    %v996 = vmul.f32 %v976, %v995
    %v997 = vpack.c.bf16 %v992, %v990
    %v998 = vpack.c.bf16 %v996, %v994
    %999 = vrot.lane.b32.xlu0 %v344, 48
    %v1000 = vpop.permute.xlu0 %999
    %v1002 = vsel %vm349, %v997, 0
    %v1005 = vsel %vm154, %v1000, 0
    %1007 = vmatprep.subr.bf16.mxu0 0
    %1008 = vmatpush1.bf16.msra.mxu0 %v1005
    %1009 = vmatprep.subr.bf16.mxu0 0
    %1010 = vmatpush1.bf16.msra.mxu0 0
    %1011 = vmatprep.subr.bf16.mxu0 0
    %1012 = vmatpush1.bf16.msra.mxu0 0
    %1013 = vmatprep.subr.bf16.mxu0 0
    %1014 = vmatpush1.bf16.msra.mxu0 0
    %1015 = vmatprep.subr.bf16.mxu0 0
    %1016 = vmatpush1.bf16.msra.mxu0 0
    %1017 = vmatprep.subr.bf16.mxu0 0
    %1018 = vmatpush1.bf16.msra.mxu0 0
    %1019 = vmatprep.subr.bf16.mxu0 0
    %1020 = vmatpush1.bf16.msra.mxu0 0
    %1021 = vmatprep.subr.bf16.mxu0 0
    %1022 = vmatpush1.bf16.msra.mxu0 0
    %1023 = vmatprep.subr.bf16.mxu0 0
    %1024 = vmatpush1.bf16.msra.mxu0 0
    %1025 = vmatprep.subr.bf16.mxu0 0
    %1026 = vmatpush1.bf16.msra.mxu0 0
    %1027 = vmatprep.subr.bf16.mxu0 0
    %1028 = vmatpush1.bf16.msra.mxu0 0
    %1029 = vmatprep.subr.bf16.mxu0 0
    %1030 = vmatpush1.bf16.msra.mxu0 0
    %1031 = vmatprep.subr.bf16.mxu0 0
    %1032 = vmatpush1.bf16.msra.mxu0 0
    %1033 = vmatprep.subr.bf16.mxu0 0
    %1034 = vmatpush1.bf16.msra.mxu0 0
    %1035 = vmatprep.subr.bf16.mxu0 0
    %1036 = vmatpush1.bf16.msra.mxu0 0
    %1037 = vmatprep.subr.bf16.mxu0 0
    %1038 = vmatpush1.bf16.msra.mxu0 0
    %1039 = vmatprep.mubr.bf16.mxu0 0
    %1040 = vmatmul.mubr.bf16.gmra.mrb[0].mxu0 %v1002
    %v1041 = vpop.f32.mrb[0].mxu0
    %v1042 = vadd.f32 0.0, %v1041
    %v1043 = vpop.f32.mrb[0].mxu0
    %v1044 = vpop.f32.mrb[0].mxu0
    %v1045 = vadd.f32 0.0, %v1044
    %v1046 = vpop.f32.mrb[0].mxu0
    %1047 = vdwg.mxu0
    %1048 = vrot.lane.b32.xlu0 %v345, 48
    %v1049 = vpop.permute.xlu0 %1048
    %v1051 = vsel %vm349, %v998, 0
    %v1054 = vsel %vm154, %v1049, 0
    %1056 = vmatprep.subr.bf16.mxu0 0
    %1057 = vmatpush1.bf16.msra.mxu0 %v1054
    %1058 = vmatprep.subr.bf16.mxu0 0
    %1059 = vmatpush1.bf16.msra.mxu0 0
    %1060 = vmatprep.subr.bf16.mxu0 0
    %1061 = vmatpush1.bf16.msra.mxu0 0
    %1062 = vmatprep.subr.bf16.mxu0 0
    %1063 = vmatpush1.bf16.msra.mxu0 0
    %1064 = vmatprep.subr.bf16.mxu0 0
    %1065 = vmatpush1.bf16.msra.mxu0 0
    %1066 = vmatprep.subr.bf16.mxu0 0
    %1067 = vmatpush1.bf16.msra.mxu0 0
    %1068 = vmatprep.subr.bf16.mxu0 0
    %1069 = vmatpush1.bf16.msra.mxu0 0
    %1070 = vmatprep.subr.bf16.mxu0 0
    %1071 = vmatpush1.bf16.msra.mxu0 0
    %1072 = vmatprep.subr.bf16.mxu0 0
    %1073 = vmatpush1.bf16.msra.mxu0 0
    %1074 = vmatprep.subr.bf16.mxu0 0
    %1075 = vmatpush1.bf16.msra.mxu0 0
    %1076 = vmatprep.subr.bf16.mxu0 0
    %1077 = vmatpush1.bf16.msra.mxu0 0
    %1078 = vmatprep.subr.bf16.mxu0 0
    %1079 = vmatpush1.bf16.msra.mxu0 0
    %1080 = vmatprep.subr.bf16.mxu0 0
    %1081 = vmatpush1.bf16.msra.mxu0 0
    %1082 = vmatprep.subr.bf16.mxu0 0
    %1083 = vmatpush1.bf16.msra.mxu0 0
    %1084 = vmatprep.subr.bf16.mxu0 0
    %1085 = vmatpush1.bf16.msra.mxu0 0
    %1086 = vmatprep.subr.bf16.mxu0 0
    %1087 = vmatpush1.bf16.msra.mxu0 0
    %1088 = vmatprep.mubr.bf16.mxu0 0
    %1089 = vmatmul.mubr.bf16.gmra.mrb[0].mxu0 %v1051
    %v1090 = vpop.f32.mrb[0].mxu0
    %v1091 = vadd.f32 0.0, %v1090
    %v1092 = vpop.f32.mrb[0].mxu0
    %v1093 = vpop.f32.mrb[0].mxu0
    %v1094 = vadd.f32 0.0, %v1093
    %v1095 = vpop.f32.mrb[0].mxu0
    %1096 = vdwg.mxu0
    %1097 = vrot.lane.b32.xlu0 %v342, 104
    %v1098 = vpop.permute.xlu0 %1097
    %1099 = vrot.lane.b32.xlu0 %v344, 72
    %v1100 = vpop.permute.xlu0 %1099
    %v1102 = vsel %vm349, %v1098, 0
    %v1105 = vsel %vm349, %v1100, 0
    %1107 = vmatprep.subr.bf16.mxu0 0
    %1108 = vmatpush1.bf16.xpose.msra.mxu0 %v1105
    %1109 = vmatprep.subr.bf16.mxu0 0
    %1110 = vmatpush1.bf16.xpose.msra.mxu0 0
    %1111 = vmatprep.subr.bf16.mxu0 0
    %1112 = vmatpush1.bf16.xpose.msra.mxu0 0
    %1113 = vmatprep.subr.bf16.mxu0 0
    %1114 = vmatpush1.bf16.xpose.msra.mxu0 0
    %1115 = vmatprep.subr.bf16.mxu0 0
    %1116 = vmatpush1.bf16.xpose.msra.mxu0 0
    %1117 = vmatprep.subr.bf16.mxu0 0
    %1118 = vmatpush1.bf16.xpose.msra.mxu0 0
    %1119 = vmatprep.subr.bf16.mxu0 0
    %1120 = vmatpush1.bf16.xpose.msra.mxu0 0
    %1121 = vmatprep.subr.bf16.mxu0 0
    %1122 = vmatpush1.bf16.xpose.msra.mxu0 0
    %1123 = vmatprep.subr.bf16.mxu0 0
    %1124 = vmatpush1.bf16.xpose.msra.mxu0 0
    %1125 = vmatprep.subr.bf16.mxu0 0
    %1126 = vmatpush1.bf16.xpose.msra.mxu0 0
    %1127 = vmatprep.subr.bf16.mxu0 0
    %1128 = vmatpush1.bf16.xpose.msra.mxu0 0
    %1129 = vmatprep.subr.bf16.mxu0 0
    %1130 = vmatpush1.bf16.xpose.msra.mxu0 0
    %1131 = vmatprep.subr.bf16.mxu0 0
    %1132 = vmatpush1.bf16.xpose.msra.mxu0 0
    %1133 = vmatprep.subr.bf16.mxu0 0
    %1134 = vmatpush1.bf16.xpose.msra.mxu0 0
    %1135 = vmatprep.subr.bf16.mxu0 0
    %1136 = vmatpush1.bf16.xpose.msra.mxu0 0
    %1137 = vmatprep.subr.bf16.mxu0 0
    %1138 = vmatpush1.bf16.xpose.msra.mxu0 0
    %1139 = vmatprep.mubr.bf16.mxu0 0
    %1140 = vmatmul.mubr.bf16.gmra.mrb[0].mxu0 %v1102
    %v1141 = vpop.f32.mrb[0].mxu0
    %v1142 = vadd.f32 0.0, %v1141
    %v1143 = vpop.f32.mrb[0].mxu0
    %v1144 = vpop.f32.mrb[0].mxu0
    %v1145 = vadd.f32 0.0, %v1144
    %v1146 = vpop.f32.mrb[0].mxu0
    %1147 = vdwg.mxu0
    %1148 = vrot.lane.b32.xlu0 %v343, 104
    %v1149 = vpop.permute.xlu0 %1148
    %1150 = vrot.lane.b32.xlu0 %v345, 72
    %v1151 = vpop.permute.xlu0 %1150
    %v1153 = vsel %vm349, %v1149, 0
    %v1156 = vsel %vm349, %v1151, 0
    %1158 = vmatprep.subr.bf16.mxu0 0
    %1159 = vmatpush1.bf16.xpose.msra.mxu0 %v1156
    %1160 = vmatprep.subr.bf16.mxu0 0
    %1161 = vmatpush1.bf16.xpose.msra.mxu0 0
    %1162 = vmatprep.subr.bf16.mxu0 0
    %1163 = vmatpush1.bf16.xpose.msra.mxu0 0
    %1164 = vmatprep.subr.bf16.mxu0 0
    %1165 = vmatpush1.bf16.xpose.msra.mxu0 0
    %1166 = vmatprep.subr.bf16.mxu0 0
    %1167 = vmatpush1.bf16.xpose.msra.mxu0 0
    %1168 = vmatprep.subr.bf16.mxu0 0
    %1169 = vmatpush1.bf16.xpose.msra.mxu0 0
    %1170 = vmatprep.subr.bf16.mxu0 0
    %1171 = vmatpush1.bf16.xpose.msra.mxu0 0
    %1172 = vmatprep.subr.bf16.mxu0 0
    %1173 = vmatpush1.bf16.xpose.msra.mxu0 0
    %1174 = vmatprep.subr.bf16.mxu0 0
    %1175 = vmatpush1.bf16.xpose.msra.mxu0 0
    %1176 = vmatprep.subr.bf16.mxu0 0
    %1177 = vmatpush1.bf16.xpose.msra.mxu0 0
    %1178 = vmatprep.subr.bf16.mxu0 0
    %1179 = vmatpush1.bf16.xpose.msra.mxu0 0
    %1180 = vmatprep.subr.bf16.mxu0 0
    %1181 = vmatpush1.bf16.xpose.msra.mxu0 0
    %1182 = vmatprep.subr.bf16.mxu0 0
    %1183 = vmatpush1.bf16.xpose.msra.mxu0 0
    %1184 = vmatprep.subr.bf16.mxu0 0
    %1185 = vmatpush1.bf16.xpose.msra.mxu0 0
    %1186 = vmatprep.subr.bf16.mxu0 0
    %1187 = vmatpush1.bf16.xpose.msra.mxu0 0
    %1188 = vmatprep.subr.bf16.mxu0 0
    %1189 = vmatpush1.bf16.xpose.msra.mxu0 0
    %1190 = vmatprep.mubr.bf16.mxu0 0
    %1191 = vmatmul.mubr.bf16.gmra.mrb[0].mxu0 %v1153
    %v1192 = vpop.f32.mrb[0].mxu0
    %v1193 = vadd.f32 0.0, %v1192
    %v1194 = vpop.f32.mrb[0].mxu0
    %v1195 = vpop.f32.mrb[0].mxu0
    %v1196 = vadd.f32 0.0, %v1195
    %v1197 = vpop.f32.mrb[0].mxu0
    %1198 = vdwg.mxu0
    %v1199 = vmul.f32 %v1142, 0.35355338
    %v1200 = vmul.f32 %v1145, 0.35355338
    %v1201 = vmul.f32 %v1193, 0.35355338
    %v1202 = vmul.f32 %v1196, 0.35355338
    %v1203 = vsel %vm349, %v1199, -inf
    %1204 = vmax.xlane.f32.xlu0 %v1203
    %v1205 = vpop.xlane.xlu0 %1204
    %v1206 = vsel %vm349, %v1200, -inf
    %1207 = vmax.xlane.f32.xlu0 %v1206
    %v1208 = vpop.xlane.xlu0 %1207
    %v1209 = vsel %vm349, %v1201, -inf
    %1210 = vmax.xlane.f32.xlu0 %v1209
    %v1211 = vpop.xlane.xlu0 %1210
    %v1212 = vsel %vm349, %v1202, -inf
    %1213 = vmax.xlane.f32.xlu0 %v1212
    %v1214 = vpop.xlane.xlu0 %1213
    %v1215 = vsub.f32 %v1199, %v1205
    %v1216 = vsub.f32 %v1200, %v1208
    %v1217 = vsub.f32 %v1201, %v1211
    %v1218 = vsub.f32 %v1202, %v1214
    %v1219 = vmul.f32 %v1215, 1.442695
    %v1220 = vpow.pop %v1219
    %v1221 = vmul.f32 %v1216, 1.442695
    %v1222 = vpow.pop %v1221
    %v1223 = vmul.f32 %v1217, 1.442695
    %v1224 = vpow.pop %v1223
    %v1225 = vmul.f32 %v1218, 1.442695
    %v1226 = vpow.pop %v1225
    %v1227 = vsel %vm349, %v1220, 0.0
    %1228 = vadd.xlane.f32.xlu0 %v1227
    %v1229 = vpop.xlane.xlu0 %1228
    %v1230 = vsel %vm349, %v1222, 0.0
    %1231 = vadd.xlane.f32.xlu0 %v1230
    %v1232 = vpop.xlane.xlu0 %1231
    %v1233 = vsel %vm349, %v1224, 0.0
    %1234 = vadd.xlane.f32.xlu0 %v1233
    %v1235 = vpop.xlane.xlu0 %1234
    %v1236 = vsel %vm349, %v1226, 0.0
    %1237 = vadd.xlane.f32.xlu0 %v1236
    %v1238 = vpop.xlane.xlu0 %1237
    %v1239 = vrcp.pop %v1229
    %v1240 = vmul.f32 %v1220, %v1239
    %v1241 = vrcp.pop %v1232
    %v1242 = vmul.f32 %v1222, %v1241
    %v1243 = vrcp.pop %v1235
    %v1244 = vmul.f32 %v1224, %v1243
    %v1245 = vrcp.pop %v1238
    %v1246 = vmul.f32 %v1226, %v1245
    %v1247 = vpack.c.bf16 %v1242, %v1240
    %v1248 = vpack.c.bf16 %v1246, %v1244
    %1249 = vrot.lane.b32.xlu0 %v344, 40
    %v1250 = vpop.permute.xlu0 %1249
    %v1252 = vsel %vm349, %v1247, 0
    %v1255 = vsel %vm154, %v1250, 0
    %1257 = vmatprep.subr.bf16.mxu0 0
    %1258 = vmatpush1.bf16.msra.mxu0 %v1255
    %1259 = vmatprep.subr.bf16.mxu0 0
    %1260 = vmatpush1.bf16.msra.mxu0 0
    %1261 = vmatprep.subr.bf16.mxu0 0
    %1262 = vmatpush1.bf16.msra.mxu0 0
    %1263 = vmatprep.subr.bf16.mxu0 0
    %1264 = vmatpush1.bf16.msra.mxu0 0
    %1265 = vmatprep.subr.bf16.mxu0 0
    %1266 = vmatpush1.bf16.msra.mxu0 0
    %1267 = vmatprep.subr.bf16.mxu0 0
    %1268 = vmatpush1.bf16.msra.mxu0 0
    %1269 = vmatprep.subr.bf16.mxu0 0
    %1270 = vmatpush1.bf16.msra.mxu0 0
    %1271 = vmatprep.subr.bf16.mxu0 0
    %1272 = vmatpush1.bf16.msra.mxu0 0
    %1273 = vmatprep.subr.bf16.mxu0 0
    %1274 = vmatpush1.bf16.msra.mxu0 0
    %1275 = vmatprep.subr.bf16.mxu0 0
    %1276 = vmatpush1.bf16.msra.mxu0 0
    %1277 = vmatprep.subr.bf16.mxu0 0
    %1278 = vmatpush1.bf16.msra.mxu0 0
    %1279 = vmatprep.subr.bf16.mxu0 0
    %1280 = vmatpush1.bf16.msra.mxu0 0
    %1281 = vmatprep.subr.bf16.mxu0 0
    %1282 = vmatpush1.bf16.msra.mxu0 0
    %1283 = vmatprep.subr.bf16.mxu0 0
    %1284 = vmatpush1.bf16.msra.mxu0 0
    %1285 = vmatprep.subr.bf16.mxu0 0
    %1286 = vmatpush1.bf16.msra.mxu0 0
    %1287 = vmatprep.subr.bf16.mxu0 0
    %1288 = vmatpush1.bf16.msra.mxu0 0
    %1289 = vmatprep.mubr.bf16.mxu0 0
    %1290 = vmatmul.mubr.bf16.gmra.mrb[0].mxu0 %v1252
    %v1291 = vpop.f32.mrb[0].mxu0
    %v1292 = vadd.f32 0.0, %v1291
    %v1293 = vpop.f32.mrb[0].mxu0
    %v1294 = vpop.f32.mrb[0].mxu0
    %v1295 = vadd.f32 0.0, %v1294
    %v1296 = vpop.f32.mrb[0].mxu0
    %1297 = vdwg.mxu0
    %1298 = vrot.lane.b32.xlu0 %v345, 40
    %v1299 = vpop.permute.xlu0 %1298
    %v1301 = vsel %vm349, %v1248, 0
    %v1304 = vsel %vm154, %v1299, 0
    %1306 = vmatprep.subr.bf16.mxu0 0
    %1307 = vmatpush1.bf16.msra.mxu0 %v1304
    %1308 = vmatprep.subr.bf16.mxu0 0
    %1309 = vmatpush1.bf16.msra.mxu0 0
    %1310 = vmatprep.subr.bf16.mxu0 0
    %1311 = vmatpush1.bf16.msra.mxu0 0
    %1312 = vmatprep.subr.bf16.mxu0 0
    %1313 = vmatpush1.bf16.msra.mxu0 0
    %1314 = vmatprep.subr.bf16.mxu0 0
    %1315 = vmatpush1.bf16.msra.mxu0 0
    %1316 = vmatprep.subr.bf16.mxu0 0
    %1317 = vmatpush1.bf16.msra.mxu0 0
    %1318 = vmatprep.subr.bf16.mxu0 0
    %1319 = vmatpush1.bf16.msra.mxu0 0
    %1320 = vmatprep.subr.bf16.mxu0 0
    %1321 = vmatpush1.bf16.msra.mxu0 0
    %1322 = vmatprep.subr.bf16.mxu0 0
    %1323 = vmatpush1.bf16.msra.mxu0 0
    %1324 = vmatprep.subr.bf16.mxu0 0
    %1325 = vmatpush1.bf16.msra.mxu0 0
    %1326 = vmatprep.subr.bf16.mxu0 0
    %1327 = vmatpush1.bf16.msra.mxu0 0
    %1328 = vmatprep.subr.bf16.mxu0 0
    %1329 = vmatpush1.bf16.msra.mxu0 0
    %1330 = vmatprep.subr.bf16.mxu0 0
    %1331 = vmatpush1.bf16.msra.mxu0 0
    %1332 = vmatprep.subr.bf16.mxu0 0
    %1333 = vmatpush1.bf16.msra.mxu0 0
    %1334 = vmatprep.subr.bf16.mxu0 0
    %1335 = vmatpush1.bf16.msra.mxu0 0
    %1336 = vmatprep.subr.bf16.mxu0 0
    %1337 = vmatpush1.bf16.msra.mxu0 0
    %1338 = vmatprep.mubr.bf16.mxu0 0
    %1339 = vmatmul.mubr.bf16.gmra.mrb[0].mxu0 %v1301
    %v1340 = vpop.f32.mrb[0].mxu0
    %v1341 = vadd.f32 0.0, %v1340
    %v1342 = vpop.f32.mrb[0].mxu0
    %v1343 = vpop.f32.mrb[0].mxu0
    %v1344 = vadd.f32 0.0, %v1343
    %v1345 = vpop.f32.mrb[0].mxu0
    %1346 = vdwg.mxu0
    %1351 = vrot.lane.b32.xlu0 %v792, 8
    %v1352 = vpop.permute.xlu0 %1351
    %1353 = vrot.lane.b32.xlu0 %v795, 8
    %v1354 = vpop.permute.xlu0 %1353
    %1355 = vrot.lane.b32.xlu0 %v841, 8
    %v1356 = vpop.permute.xlu0 %1355
    %1357 = vrot.lane.b32.xlu0 %v844, 8
    %v1358 = vpop.permute.xlu0 %1357
    %1367 = vrot.lane.b32.xlu0 %v1042, 16
    %v1368 = vpop.permute.xlu0 %1367
    %1369 = vrot.lane.b32.xlu0 %v1045, 16
    %v1370 = vpop.permute.xlu0 %1369
    %1371 = vrot.lane.b32.xlu0 %v1091, 16
    %v1372 = vpop.permute.xlu0 %1371
    %1373 = vrot.lane.b32.xlu0 %v1094, 16
    %v1374 = vpop.permute.xlu0 %1373
    %1383 = vrot.lane.b32.xlu0 %v1292, 24
    %v1384 = vpop.permute.xlu0 %1383
    %1385 = vrot.lane.b32.xlu0 %v1295, 24
    %v1386 = vpop.permute.xlu0 %1385
    %1387 = vrot.lane.b32.xlu0 %v1341, 24
    %v1388 = vpop.permute.xlu0 %1387
    %1389 = vrot.lane.b32.xlu0 %v1344, 24
    %v1390 = vpop.permute.xlu0 %1389
    %v1395 = vsel %vm349, %v540, %v1352
    %v1396 = vsel %vm349, %v543, %v1354
    %v1397 = vsel %vm349, %v589, %v1356
    %v1398 = vsel %vm349, %v592, %v1358
    %vm1399 = vcmask 130048
    %v1400 = vsel %vm1399, %v1395, %v1368
    %v1401 = vsel %vm1399, %v1396, %v1370
    %v1402 = vsel %vm1399, %v1397, %v1372
    %v1403 = vsel %vm1399, %v1398, %v1374
    %v1404 = vsel %vm150, %v1400, %v1384
    %v1405 = vsel %vm150, %v1401, %v1386
    %v1406 = vsel %vm150, %v1402, %v1388
    %v1407 = vsel %vm150, %v1403, %v1390
    %1408 = vrot.lane.b32.xlu0 %v342, 96
    %v1409 = vpop.permute.xlu0 %1408
    %v1411 = vsel %vm349, %v344, 0
    %v1414 = vsel %vm349, %v1409, 0
    %1416 = vmatprep.subr.bf16.mxu0 0
    %1417 = vmatpush1.bf16.xpose.msra.mxu0 %v1414
    %1418 = vmatprep.subr.bf16.mxu0 0
    %1419 = vmatpush1.bf16.xpose.msra.mxu0 0
    %1420 = vmatprep.subr.bf16.mxu0 0
    %1421 = vmatpush1.bf16.xpose.msra.mxu0 0
    %1422 = vmatprep.subr.bf16.mxu0 0
    %1423 = vmatpush1.bf16.xpose.msra.mxu0 0
    %1424 = vmatprep.subr.bf16.mxu0 0
    %1425 = vmatpush1.bf16.xpose.msra.mxu0 0
    %1426 = vmatprep.subr.bf16.mxu0 0
    %1427 = vmatpush1.bf16.xpose.msra.mxu0 0
    %1428 = vmatprep.subr.bf16.mxu0 0
    %1429 = vmatpush1.bf16.xpose.msra.mxu0 0
    %1430 = vmatprep.subr.bf16.mxu0 0
    %1431 = vmatpush1.bf16.xpose.msra.mxu0 0
    %1432 = vmatprep.subr.bf16.mxu0 0
    %1433 = vmatpush1.bf16.xpose.msra.mxu0 0
    %1434 = vmatprep.subr.bf16.mxu0 0
    %1435 = vmatpush1.bf16.xpose.msra.mxu0 0
    %1436 = vmatprep.subr.bf16.mxu0 0
    %1437 = vmatpush1.bf16.xpose.msra.mxu0 0
    %1438 = vmatprep.subr.bf16.mxu0 0
    %1439 = vmatpush1.bf16.xpose.msra.mxu0 0
    %1440 = vmatprep.subr.bf16.mxu0 0
    %1441 = vmatpush1.bf16.xpose.msra.mxu0 0
    %1442 = vmatprep.subr.bf16.mxu0 0
    %1443 = vmatpush1.bf16.xpose.msra.mxu0 0
    %1444 = vmatprep.subr.bf16.mxu0 0
    %1445 = vmatpush1.bf16.xpose.msra.mxu0 0
    %1446 = vmatprep.subr.bf16.mxu0 0
    %1447 = vmatpush1.bf16.xpose.msra.mxu0 0
    %1448 = vmatprep.mubr.bf16.mxu0 0
    %1449 = vmatmul.mubr.bf16.gmra.mrb[0].mxu0 %v1411
    %v1450 = vpop.f32.mrb[0].mxu0
    %v1451 = vadd.f32 0.0, %v1450
    %v1452 = vpop.f32.mrb[0].mxu0
    %v1453 = vpop.f32.mrb[0].mxu0
    %v1454 = vpop.f32.mrb[0].mxu0
    %1455 = vdwg.mxu0
    %1456 = vrot.lane.b32.xlu0 %v343, 96
    %v1457 = vpop.permute.xlu0 %1456
    %v1459 = vsel %vm349, %v345, 0
    %v1462 = vsel %vm349, %v1457, 0
    %1464 = vmatprep.subr.bf16.mxu0 0
    %1465 = vmatpush1.bf16.xpose.msra.mxu0 %v1462
    %1466 = vmatprep.subr.bf16.mxu0 0
    %1467 = vmatpush1.bf16.xpose.msra.mxu0 0
    %1468 = vmatprep.subr.bf16.mxu0 0
    %1469 = vmatpush1.bf16.xpose.msra.mxu0 0
    %1470 = vmatprep.subr.bf16.mxu0 0
    %1471 = vmatpush1.bf16.xpose.msra.mxu0 0
    %1472 = vmatprep.subr.bf16.mxu0 0
    %1473 = vmatpush1.bf16.xpose.msra.mxu0 0
    %1474 = vmatprep.subr.bf16.mxu0 0
    %1475 = vmatpush1.bf16.xpose.msra.mxu0 0
    %1476 = vmatprep.subr.bf16.mxu0 0
    %1477 = vmatpush1.bf16.xpose.msra.mxu0 0
    %1478 = vmatprep.subr.bf16.mxu0 0
    %1479 = vmatpush1.bf16.xpose.msra.mxu0 0
    %1480 = vmatprep.subr.bf16.mxu0 0
    %1481 = vmatpush1.bf16.xpose.msra.mxu0 0
    %1482 = vmatprep.subr.bf16.mxu0 0
    %1483 = vmatpush1.bf16.xpose.msra.mxu0 0
    %1484 = vmatprep.subr.bf16.mxu0 0
    %1485 = vmatpush1.bf16.xpose.msra.mxu0 0
    %1486 = vmatprep.subr.bf16.mxu0 0
    %1487 = vmatpush1.bf16.xpose.msra.mxu0 0
    %1488 = vmatprep.subr.bf16.mxu0 0
    %1489 = vmatpush1.bf16.xpose.msra.mxu0 0
    %1490 = vmatprep.subr.bf16.mxu0 0
    %1491 = vmatpush1.bf16.xpose.msra.mxu0 0
    %1492 = vmatprep.subr.bf16.mxu0 0
    %1493 = vmatpush1.bf16.xpose.msra.mxu0 0
    %1494 = vmatprep.subr.bf16.mxu0 0
    %1495 = vmatpush1.bf16.xpose.msra.mxu0 0
    %1496 = vmatprep.mubr.bf16.mxu0 0
    %1497 = vmatmul.mubr.bf16.gmra.mrb[0].mxu0 %v1459
    %v1498 = vpop.f32.mrb[0].mxu0
    %v1499 = vadd.f32 0.0, %v1498
    %v1500 = vpop.f32.mrb[0].mxu0
    %v1501 = vpop.f32.mrb[0].mxu0
    %v1502 = vpop.f32.mrb[0].mxu0
    %1503 = vdwg.mxu0
    %v1504 = vmul.f32 %v1451, 0.35355338
    %v1505 = vmul.f32 %v1499, 0.35355338
    %v1506 = vsel %vm1399, %v1504, -inf
    %1507 = vmax.xlane.f32.xlu0 %v1506
    %v1508 = vpop.xlane.xlu0 %1507
    %v1509 = vsel %vm1399, %v1505, -inf
    %1510 = vmax.xlane.f32.xlu0 %v1509
    %v1511 = vpop.xlane.xlu0 %1510
    %v1512 = vsub.f32 %v1504, %v1508
    %v1513 = vsub.f32 %v1505, %v1511
    %v1514 = vmul.f32 %v1512, 1.442695
    %v1515 = vpow.pop %v1514
    %v1516 = vmul.f32 %v1513, 1.442695
    %v1517 = vpow.pop %v1516
    %v1518 = vsel %vm1399, %v1515, 0.0
    %1519 = vadd.xlane.f32.xlu0 %v1518
    %v1520 = vpop.xlane.xlu0 %1519
    %v1521 = vsel %vm1399, %v1517, 0.0
    %1522 = vadd.xlane.f32.xlu0 %v1521
    %v1523 = vpop.xlane.xlu0 %1522
    %v1524 = vrcp.pop %v1520
    %v1525 = vmul.f32 %v1515, %v1524
    %v1526 = vrcp.pop %v1523
    %v1527 = vmul.f32 %v1517, %v1526
    %v1528 = vpack.c.bf16 %v1525, %v1525
    %v1529 = vpack.c.bf16 %v1527, %v1527
    %1530 = vrot.lane.b32.xlu0 %v342, 64
    %v1531 = vpop.permute.xlu0 %1530
    %v1534 = vsel %vm1399, %v1528, 0
    %1536 = vmatprep.subr.bf16.mxu0 0
    %1537 = vmatpush1.bf16.msra.mxu0 %v1531
    %1538 = vmatprep.subr.bf16.mxu0 0
    %1539 = vmatpush1.bf16.msra.mxu0 0
    %1540 = vmatprep.subr.bf16.mxu0 0
    %1541 = vmatpush1.bf16.msra.mxu0 0
    %1542 = vmatprep.subr.bf16.mxu0 0
    %1543 = vmatpush1.bf16.msra.mxu0 0
    %1544 = vmatprep.subr.bf16.mxu0 0
    %1545 = vmatpush1.bf16.msra.mxu0 0
    %1546 = vmatprep.subr.bf16.mxu0 0
    %1547 = vmatpush1.bf16.msra.mxu0 0
    %1548 = vmatprep.subr.bf16.mxu0 0
    %1549 = vmatpush1.bf16.msra.mxu0 0
    %1550 = vmatprep.subr.bf16.mxu0 0
    %1551 = vmatpush1.bf16.msra.mxu0 0
    %1552 = vmatprep.subr.bf16.mxu0 0
    %1553 = vmatpush1.bf16.msra.mxu0 0
    %1554 = vmatprep.subr.bf16.mxu0 0
    %1555 = vmatpush1.bf16.msra.mxu0 0
    %1556 = vmatprep.subr.bf16.mxu0 0
    %1557 = vmatpush1.bf16.msra.mxu0 0
    %1558 = vmatprep.subr.bf16.mxu0 0
    %1559 = vmatpush1.bf16.msra.mxu0 0
    %1560 = vmatprep.subr.bf16.mxu0 0
    %1561 = vmatpush1.bf16.msra.mxu0 0
    %1562 = vmatprep.subr.bf16.mxu0 0
    %1563 = vmatpush1.bf16.msra.mxu0 0
    %1564 = vmatprep.subr.bf16.mxu0 0
    %1565 = vmatpush1.bf16.msra.mxu0 0
    %1566 = vmatprep.subr.bf16.mxu0 0
    %1567 = vmatpush1.bf16.msra.mxu0 0
    %1568 = vmatprep.mubr.bf16.mxu0 0
    %1569 = vmatmul.mubr.bf16.gmra.mrb[0].mxu0 %v1534
    %v1570 = vpop.f32.mrb[0].mxu0
    %v1571 = vadd.f32 0.0, %v1570
    %v1572 = vpop.f32.mrb[0].mxu0
    %v1573 = vpop.f32.mrb[0].mxu0
    %v1574 = vpop.f32.mrb[0].mxu0
    %1575 = vdwg.mxu0
    %1576 = vrot.lane.b32.xlu0 %v343, 64
    %v1577 = vpop.permute.xlu0 %1576
    %v1580 = vsel %vm1399, %v1529, 0
    %1582 = vmatprep.subr.bf16.mxu0 0
    %1583 = vmatpush1.bf16.msra.mxu0 %v1577
    %1584 = vmatprep.subr.bf16.mxu0 0
    %1585 = vmatpush1.bf16.msra.mxu0 0
    %1586 = vmatprep.subr.bf16.mxu0 0
    %1587 = vmatpush1.bf16.msra.mxu0 0
    %1588 = vmatprep.subr.bf16.mxu0 0
    %1589 = vmatpush1.bf16.msra.mxu0 0
    %1590 = vmatprep.subr.bf16.mxu0 0
    %1591 = vmatpush1.bf16.msra.mxu0 0
    %1592 = vmatprep.subr.bf16.mxu0 0
    %1593 = vmatpush1.bf16.msra.mxu0 0
    %1594 = vmatprep.subr.bf16.mxu0 0
    %1595 = vmatpush1.bf16.msra.mxu0 0
    %1596 = vmatprep.subr.bf16.mxu0 0
    %1597 = vmatpush1.bf16.msra.mxu0 0
    %1598 = vmatprep.subr.bf16.mxu0 0
    %1599 = vmatpush1.bf16.msra.mxu0 0
    %1600 = vmatprep.subr.bf16.mxu0 0
    %1601 = vmatpush1.bf16.msra.mxu0 0
    %1602 = vmatprep.subr.bf16.mxu0 0
    %1603 = vmatpush1.bf16.msra.mxu0 0
    %1604 = vmatprep.subr.bf16.mxu0 0
    %1605 = vmatpush1.bf16.msra.mxu0 0
    %1606 = vmatprep.subr.bf16.mxu0 0
    %1607 = vmatpush1.bf16.msra.mxu0 0
    %1608 = vmatprep.subr.bf16.mxu0 0
    %1609 = vmatpush1.bf16.msra.mxu0 0
    %1610 = vmatprep.subr.bf16.mxu0 0
    %1611 = vmatpush1.bf16.msra.mxu0 0
    %1612 = vmatprep.subr.bf16.mxu0 0
    %1613 = vmatpush1.bf16.msra.mxu0 0
    %1614 = vmatprep.mubr.bf16.mxu0 0
    %1615 = vmatmul.mubr.bf16.gmra.mrb[0].mxu0 %v1580
    %v1616 = vpop.f32.mrb[0].mxu0
    %v1617 = vadd.f32 0.0, %v1616
    %v1618 = vpop.f32.mrb[0].mxu0
    %v1619 = vpop.f32.mrb[0].mxu0
    %v1620 = vpop.f32.mrb[0].mxu0
    %1621 = vdwg.mxu0
    %1622 = vrot.lane.b32.xlu0 %v344, 120
    %v1623 = vpop.permute.xlu0 %1622
    %1624 = vrot.lane.b32.xlu0 %v342, 88
    %v1625 = vpop.permute.xlu0 %1624
    %v1627 = vsel %vm349, %v1623, 0
    %v1630 = vsel %vm349, %v1625, 0
    %1632 = vmatprep.subr.bf16.mxu0 0
    %1633 = vmatpush1.bf16.xpose.msra.mxu0 %v1630
    %1634 = vmatprep.subr.bf16.mxu0 0
    %1635 = vmatpush1.bf16.xpose.msra.mxu0 0
    %1636 = vmatprep.subr.bf16.mxu0 0
    %1637 = vmatpush1.bf16.xpose.msra.mxu0 0
    %1638 = vmatprep.subr.bf16.mxu0 0
    %1639 = vmatpush1.bf16.xpose.msra.mxu0 0
    %1640 = vmatprep.subr.bf16.mxu0 0
    %1641 = vmatpush1.bf16.xpose.msra.mxu0 0
    %1642 = vmatprep.subr.bf16.mxu0 0
    %1643 = vmatpush1.bf16.xpose.msra.mxu0 0
    %1644 = vmatprep.subr.bf16.mxu0 0
    %1645 = vmatpush1.bf16.xpose.msra.mxu0 0
    %1646 = vmatprep.subr.bf16.mxu0 0
    %1647 = vmatpush1.bf16.xpose.msra.mxu0 0
    %1648 = vmatprep.subr.bf16.mxu0 0
    %1649 = vmatpush1.bf16.xpose.msra.mxu0 0
    %1650 = vmatprep.subr.bf16.mxu0 0
    %1651 = vmatpush1.bf16.xpose.msra.mxu0 0
    %1652 = vmatprep.subr.bf16.mxu0 0
    %1653 = vmatpush1.bf16.xpose.msra.mxu0 0
    %1654 = vmatprep.subr.bf16.mxu0 0
    %1655 = vmatpush1.bf16.xpose.msra.mxu0 0
    %1656 = vmatprep.subr.bf16.mxu0 0
    %1657 = vmatpush1.bf16.xpose.msra.mxu0 0
    %1658 = vmatprep.subr.bf16.mxu0 0
    %1659 = vmatpush1.bf16.xpose.msra.mxu0 0
    %1660 = vmatprep.subr.bf16.mxu0 0
    %1661 = vmatpush1.bf16.xpose.msra.mxu0 0
    %1662 = vmatprep.subr.bf16.mxu0 0
    %1663 = vmatpush1.bf16.xpose.msra.mxu0 0
    %1664 = vmatprep.mubr.bf16.mxu0 0
    %1665 = vmatmul.mubr.bf16.gmra.mrb[0].mxu0 %v1627
    %v1666 = vpop.f32.mrb[0].mxu0
    %v1667 = vadd.f32 0.0, %v1666
    %v1668 = vpop.f32.mrb[0].mxu0
    %v1669 = vpop.f32.mrb[0].mxu0
    %v1670 = vpop.f32.mrb[0].mxu0
    %1671 = vdwg.mxu0
    %1672 = vrot.lane.b32.xlu0 %v345, 120
    %v1673 = vpop.permute.xlu0 %1672
    %1674 = vrot.lane.b32.xlu0 %v343, 88
    %v1675 = vpop.permute.xlu0 %1674
    %v1677 = vsel %vm349, %v1673, 0
    %v1680 = vsel %vm349, %v1675, 0
    %1682 = vmatprep.subr.bf16.mxu0 0
    %1683 = vmatpush1.bf16.xpose.msra.mxu0 %v1680
    %1684 = vmatprep.subr.bf16.mxu0 0
    %1685 = vmatpush1.bf16.xpose.msra.mxu0 0
    %1686 = vmatprep.subr.bf16.mxu0 0
    %1687 = vmatpush1.bf16.xpose.msra.mxu0 0
    %1688 = vmatprep.subr.bf16.mxu0 0
    %1689 = vmatpush1.bf16.xpose.msra.mxu0 0
    %1690 = vmatprep.subr.bf16.mxu0 0
    %1691 = vmatpush1.bf16.xpose.msra.mxu0 0
    %1692 = vmatprep.subr.bf16.mxu0 0
    %1693 = vmatpush1.bf16.xpose.msra.mxu0 0
    %1694 = vmatprep.subr.bf16.mxu0 0
    %1695 = vmatpush1.bf16.xpose.msra.mxu0 0
    %1696 = vmatprep.subr.bf16.mxu0 0
    %1697 = vmatpush1.bf16.xpose.msra.mxu0 0
    %1698 = vmatprep.subr.bf16.mxu0 0
    %1699 = vmatpush1.bf16.xpose.msra.mxu0 0
    %1700 = vmatprep.subr.bf16.mxu0 0
    %1701 = vmatpush1.bf16.xpose.msra.mxu0 0
    %1702 = vmatprep.subr.bf16.mxu0 0
    %1703 = vmatpush1.bf16.xpose.msra.mxu0 0
    %1704 = vmatprep.subr.bf16.mxu0 0
    %1705 = vmatpush1.bf16.xpose.msra.mxu0 0
    %1706 = vmatprep.subr.bf16.mxu0 0
    %1707 = vmatpush1.bf16.xpose.msra.mxu0 0
    %1708 = vmatprep.subr.bf16.mxu0 0
    %1709 = vmatpush1.bf16.xpose.msra.mxu0 0
    %1710 = vmatprep.subr.bf16.mxu0 0
    %1711 = vmatpush1.bf16.xpose.msra.mxu0 0
    %1712 = vmatprep.subr.bf16.mxu0 0
    %1713 = vmatpush1.bf16.xpose.msra.mxu0 0
    %1714 = vmatprep.mubr.bf16.mxu0 0
    %1715 = vmatmul.mubr.bf16.gmra.mrb[0].mxu0 %v1677
    %v1716 = vpop.f32.mrb[0].mxu0
    %v1717 = vadd.f32 0.0, %v1716
    %v1718 = vpop.f32.mrb[0].mxu0
    %v1719 = vpop.f32.mrb[0].mxu0
    %v1720 = vpop.f32.mrb[0].mxu0
    %1721 = vdwg.mxu0
    %v1722 = vmul.f32 %v1667, 0.35355338
    %v1723 = vmul.f32 %v1717, 0.35355338
    %v1724 = vsel %vm1399, %v1722, -inf
    %1725 = vmax.xlane.f32.xlu0 %v1724
    %v1726 = vpop.xlane.xlu0 %1725
    %v1727 = vsel %vm1399, %v1723, -inf
    %1728 = vmax.xlane.f32.xlu0 %v1727
    %v1729 = vpop.xlane.xlu0 %1728
    %v1730 = vsub.f32 %v1722, %v1726
    %v1731 = vsub.f32 %v1723, %v1729
    %v1732 = vmul.f32 %v1730, 1.442695
    %v1733 = vpow.pop %v1732
    %v1734 = vmul.f32 %v1731, 1.442695
    %v1735 = vpow.pop %v1734
    %v1736 = vsel %vm1399, %v1733, 0.0
    %1737 = vadd.xlane.f32.xlu0 %v1736
    %v1738 = vpop.xlane.xlu0 %1737
    %v1739 = vsel %vm1399, %v1735, 0.0
    %1740 = vadd.xlane.f32.xlu0 %v1739
    %v1741 = vpop.xlane.xlu0 %1740
    %v1742 = vrcp.pop %v1738
    %v1743 = vmul.f32 %v1733, %v1742
    %v1744 = vrcp.pop %v1741
    %v1745 = vmul.f32 %v1735, %v1744
    %v1746 = vpack.c.bf16 %v1743, %v1743
    %v1747 = vpack.c.bf16 %v1745, %v1745
    %1748 = vrot.lane.b32.xlu0 %v342, 56
    %v1749 = vpop.permute.xlu0 %1748
    %v1752 = vsel %vm1399, %v1746, 0
    %1754 = vmatprep.subr.bf16.mxu0 0
    %1755 = vmatpush1.bf16.msra.mxu0 %v1749
    %1756 = vmatprep.subr.bf16.mxu0 0
    %1757 = vmatpush1.bf16.msra.mxu0 0
    %1758 = vmatprep.subr.bf16.mxu0 0
    %1759 = vmatpush1.bf16.msra.mxu0 0
    %1760 = vmatprep.subr.bf16.mxu0 0
    %1761 = vmatpush1.bf16.msra.mxu0 0
    %1762 = vmatprep.subr.bf16.mxu0 0
    %1763 = vmatpush1.bf16.msra.mxu0 0
    %1764 = vmatprep.subr.bf16.mxu0 0
    %1765 = vmatpush1.bf16.msra.mxu0 0
    %1766 = vmatprep.subr.bf16.mxu0 0
    %1767 = vmatpush1.bf16.msra.mxu0 0
    %1768 = vmatprep.subr.bf16.mxu0 0
    %1769 = vmatpush1.bf16.msra.mxu0 0
    %1770 = vmatprep.subr.bf16.mxu0 0
    %1771 = vmatpush1.bf16.msra.mxu0 0
    %1772 = vmatprep.subr.bf16.mxu0 0
    %1773 = vmatpush1.bf16.msra.mxu0 0
    %1774 = vmatprep.subr.bf16.mxu0 0
    %1775 = vmatpush1.bf16.msra.mxu0 0
    %1776 = vmatprep.subr.bf16.mxu0 0
    %1777 = vmatpush1.bf16.msra.mxu0 0
    %1778 = vmatprep.subr.bf16.mxu0 0
    %1779 = vmatpush1.bf16.msra.mxu0 0
    %1780 = vmatprep.subr.bf16.mxu0 0
    %1781 = vmatpush1.bf16.msra.mxu0 0
    %1782 = vmatprep.subr.bf16.mxu0 0
    %1783 = vmatpush1.bf16.msra.mxu0 0
    %1784 = vmatprep.subr.bf16.mxu0 0
    %1785 = vmatpush1.bf16.msra.mxu0 0
    %1786 = vmatprep.mubr.bf16.mxu0 0
    %1787 = vmatmul.mubr.bf16.gmra.mrb[0].mxu0 %v1752
    %v1788 = vpop.f32.mrb[0].mxu0
    %v1789 = vadd.f32 0.0, %v1788
    %v1790 = vpop.f32.mrb[0].mxu0
    %v1791 = vpop.f32.mrb[0].mxu0
    %v1792 = vpop.f32.mrb[0].mxu0
    %1793 = vdwg.mxu0
    %1794 = vrot.lane.b32.xlu0 %v343, 56
    %v1795 = vpop.permute.xlu0 %1794
    %v1798 = vsel %vm1399, %v1747, 0
    %1800 = vmatprep.subr.bf16.mxu0 0
    %1801 = vmatpush1.bf16.msra.mxu0 %v1795
    %1802 = vmatprep.subr.bf16.mxu0 0
    %1803 = vmatpush1.bf16.msra.mxu0 0
    %1804 = vmatprep.subr.bf16.mxu0 0
    %1805 = vmatpush1.bf16.msra.mxu0 0
    %1806 = vmatprep.subr.bf16.mxu0 0
    %1807 = vmatpush1.bf16.msra.mxu0 0
    %1808 = vmatprep.subr.bf16.mxu0 0
    %1809 = vmatpush1.bf16.msra.mxu0 0
    %1810 = vmatprep.subr.bf16.mxu0 0
    %1811 = vmatpush1.bf16.msra.mxu0 0
    %1812 = vmatprep.subr.bf16.mxu0 0
    %1813 = vmatpush1.bf16.msra.mxu0 0
    %1814 = vmatprep.subr.bf16.mxu0 0
    %1815 = vmatpush1.bf16.msra.mxu0 0
    %1816 = vmatprep.subr.bf16.mxu0 0
    %1817 = vmatpush1.bf16.msra.mxu0 0
    %1818 = vmatprep.subr.bf16.mxu0 0
    %1819 = vmatpush1.bf16.msra.mxu0 0
    %1820 = vmatprep.subr.bf16.mxu0 0
    %1821 = vmatpush1.bf16.msra.mxu0 0
    %1822 = vmatprep.subr.bf16.mxu0 0
    %1823 = vmatpush1.bf16.msra.mxu0 0
    %1824 = vmatprep.subr.bf16.mxu0 0
    %1825 = vmatpush1.bf16.msra.mxu0 0
    %1826 = vmatprep.subr.bf16.mxu0 0
    %1827 = vmatpush1.bf16.msra.mxu0 0
    %1828 = vmatprep.subr.bf16.mxu0 0
    %1829 = vmatpush1.bf16.msra.mxu0 0
    %1830 = vmatprep.subr.bf16.mxu0 0
    %1831 = vmatpush1.bf16.msra.mxu0 0
    %1832 = vmatprep.mubr.bf16.mxu0 0
    %1833 = vmatmul.mubr.bf16.gmra.mrb[0].mxu0 %v1798
    %v1834 = vpop.f32.mrb[0].mxu0
    %v1835 = vadd.f32 0.0, %v1834
    %v1836 = vpop.f32.mrb[0].mxu0
    %v1837 = vpop.f32.mrb[0].mxu0
    %v1838 = vpop.f32.mrb[0].mxu0
    %1839 = vdwg.mxu0
    %1840 = vrot.lane.b32.xlu0 %v344, 112
    %v1841 = vpop.permute.xlu0 %1840
    %1842 = vrot.lane.b32.xlu0 %v342, 80
    %v1843 = vpop.permute.xlu0 %1842
    %v1845 = vsel %vm349, %v1841, 0
    %v1848 = vsel %vm349, %v1843, 0
    %1850 = vmatprep.subr.bf16.mxu0 0
    %1851 = vmatpush1.bf16.xpose.msra.mxu0 %v1848
    %1852 = vmatprep.subr.bf16.mxu0 0
    %1853 = vmatpush1.bf16.xpose.msra.mxu0 0
    %1854 = vmatprep.subr.bf16.mxu0 0
    %1855 = vmatpush1.bf16.xpose.msra.mxu0 0
    %1856 = vmatprep.subr.bf16.mxu0 0
    %1857 = vmatpush1.bf16.xpose.msra.mxu0 0
    %1858 = vmatprep.subr.bf16.mxu0 0
    %1859 = vmatpush1.bf16.xpose.msra.mxu0 0
    %1860 = vmatprep.subr.bf16.mxu0 0
    %1861 = vmatpush1.bf16.xpose.msra.mxu0 0
    %1862 = vmatprep.subr.bf16.mxu0 0
    %1863 = vmatpush1.bf16.xpose.msra.mxu0 0
    %1864 = vmatprep.subr.bf16.mxu0 0
    %1865 = vmatpush1.bf16.xpose.msra.mxu0 0
    %1866 = vmatprep.subr.bf16.mxu0 0
    %1867 = vmatpush1.bf16.xpose.msra.mxu0 0
    %1868 = vmatprep.subr.bf16.mxu0 0
    %1869 = vmatpush1.bf16.xpose.msra.mxu0 0
    %1870 = vmatprep.subr.bf16.mxu0 0
    %1871 = vmatpush1.bf16.xpose.msra.mxu0 0
    %1872 = vmatprep.subr.bf16.mxu0 0
    %1873 = vmatpush1.bf16.xpose.msra.mxu0 0
    %1874 = vmatprep.subr.bf16.mxu0 0
    %1875 = vmatpush1.bf16.xpose.msra.mxu0 0
    %1876 = vmatprep.subr.bf16.mxu0 0
    %1877 = vmatpush1.bf16.xpose.msra.mxu0 0
    %1878 = vmatprep.subr.bf16.mxu0 0
    %1879 = vmatpush1.bf16.xpose.msra.mxu0 0
    %1880 = vmatprep.subr.bf16.mxu0 0
    %1881 = vmatpush1.bf16.xpose.msra.mxu0 0
    %1882 = vmatprep.mubr.bf16.mxu0 0
    %1883 = vmatmul.mubr.bf16.gmra.mrb[0].mxu0 %v1845
    %v1884 = vpop.f32.mrb[0].mxu0
    %v1885 = vadd.f32 0.0, %v1884
    %v1886 = vpop.f32.mrb[0].mxu0
    %v1887 = vpop.f32.mrb[0].mxu0
    %v1888 = vpop.f32.mrb[0].mxu0
    %1889 = vdwg.mxu0
    %1890 = vrot.lane.b32.xlu0 %v345, 112
    %v1891 = vpop.permute.xlu0 %1890
    %1892 = vrot.lane.b32.xlu0 %v343, 80
    %v1893 = vpop.permute.xlu0 %1892
    %v1895 = vsel %vm349, %v1891, 0
    %v1898 = vsel %vm349, %v1893, 0
    %1900 = vmatprep.subr.bf16.mxu0 0
    %1901 = vmatpush1.bf16.xpose.msra.mxu0 %v1898
    %1902 = vmatprep.subr.bf16.mxu0 0
    %1903 = vmatpush1.bf16.xpose.msra.mxu0 0
    %1904 = vmatprep.subr.bf16.mxu0 0
    %1905 = vmatpush1.bf16.xpose.msra.mxu0 0
    %1906 = vmatprep.subr.bf16.mxu0 0
    %1907 = vmatpush1.bf16.xpose.msra.mxu0 0
    %1908 = vmatprep.subr.bf16.mxu0 0
    %1909 = vmatpush1.bf16.xpose.msra.mxu0 0
    %1910 = vmatprep.subr.bf16.mxu0 0
    %1911 = vmatpush1.bf16.xpose.msra.mxu0 0
    %1912 = vmatprep.subr.bf16.mxu0 0
    %1913 = vmatpush1.bf16.xpose.msra.mxu0 0
    %1914 = vmatprep.subr.bf16.mxu0 0
    %1915 = vmatpush1.bf16.xpose.msra.mxu0 0
    %1916 = vmatprep.subr.bf16.mxu0 0
    %1917 = vmatpush1.bf16.xpose.msra.mxu0 0
    %1918 = vmatprep.subr.bf16.mxu0 0
    %1919 = vmatpush1.bf16.xpose.msra.mxu0 0
    %1920 = vmatprep.subr.bf16.mxu0 0
    %1921 = vmatpush1.bf16.xpose.msra.mxu0 0
    %1922 = vmatprep.subr.bf16.mxu0 0
    %1923 = vmatpush1.bf16.xpose.msra.mxu0 0
    %1924 = vmatprep.subr.bf16.mxu0 0
    %1925 = vmatpush1.bf16.xpose.msra.mxu0 0
    %1926 = vmatprep.subr.bf16.mxu0 0
    %1927 = vmatpush1.bf16.xpose.msra.mxu0 0
    %1928 = vmatprep.subr.bf16.mxu0 0
    %1929 = vmatpush1.bf16.xpose.msra.mxu0 0
    %1930 = vmatprep.subr.bf16.mxu0 0
    %1931 = vmatpush1.bf16.xpose.msra.mxu0 0
    %1932 = vmatprep.mubr.bf16.mxu0 0
    %1933 = vmatmul.mubr.bf16.gmra.mrb[0].mxu0 %v1895
    %v1934 = vpop.f32.mrb[0].mxu0
    %v1935 = vadd.f32 0.0, %v1934
    %v1936 = vpop.f32.mrb[0].mxu0
    %v1937 = vpop.f32.mrb[0].mxu0
    %v1938 = vpop.f32.mrb[0].mxu0
    %1939 = vdwg.mxu0
    %v1940 = vmul.f32 %v1885, 0.35355338
    %v1941 = vmul.f32 %v1935, 0.35355338
    %v1942 = vsel %vm1399, %v1940, -inf
    %1943 = vmax.xlane.f32.xlu0 %v1942
    %v1944 = vpop.xlane.xlu0 %1943
    %v1945 = vsel %vm1399, %v1941, -inf
    %1946 = vmax.xlane.f32.xlu0 %v1945
    %v1947 = vpop.xlane.xlu0 %1946
    %v1948 = vsub.f32 %v1940, %v1944
    %v1949 = vsub.f32 %v1941, %v1947
    %v1950 = vmul.f32 %v1948, 1.442695
    %v1951 = vpow.pop %v1950
    %v1952 = vmul.f32 %v1949, 1.442695
    %v1953 = vpow.pop %v1952
    %v1954 = vsel %vm1399, %v1951, 0.0
    %1955 = vadd.xlane.f32.xlu0 %v1954
    %v1956 = vpop.xlane.xlu0 %1955
    %v1957 = vsel %vm1399, %v1953, 0.0
    %1958 = vadd.xlane.f32.xlu0 %v1957
    %v1959 = vpop.xlane.xlu0 %1958
    %v1960 = vrcp.pop %v1956
    %v1961 = vmul.f32 %v1951, %v1960
    %v1962 = vrcp.pop %v1959
    %v1963 = vmul.f32 %v1953, %v1962
    %v1964 = vpack.c.bf16 %v1961, %v1961
    %v1965 = vpack.c.bf16 %v1963, %v1963
    %1966 = vrot.lane.b32.xlu0 %v342, 48
    %v1967 = vpop.permute.xlu0 %1966
    %v1970 = vsel %vm1399, %v1964, 0
    %1972 = vmatprep.subr.bf16.mxu0 0
    %1973 = vmatpush1.bf16.msra.mxu0 %v1967
    %1974 = vmatprep.subr.bf16.mxu0 0
    %1975 = vmatpush1.bf16.msra.mxu0 0
    %1976 = vmatprep.subr.bf16.mxu0 0
    %1977 = vmatpush1.bf16.msra.mxu0 0
    %1978 = vmatprep.subr.bf16.mxu0 0
    %1979 = vmatpush1.bf16.msra.mxu0 0
    %1980 = vmatprep.subr.bf16.mxu0 0
    %1981 = vmatpush1.bf16.msra.mxu0 0
    %1982 = vmatprep.subr.bf16.mxu0 0
    %1983 = vmatpush1.bf16.msra.mxu0 0
    %1984 = vmatprep.subr.bf16.mxu0 0
    %1985 = vmatpush1.bf16.msra.mxu0 0
    %1986 = vmatprep.subr.bf16.mxu0 0
    %1987 = vmatpush1.bf16.msra.mxu0 0
    %1988 = vmatprep.subr.bf16.mxu0 0
    %1989 = vmatpush1.bf16.msra.mxu0 0
    %1990 = vmatprep.subr.bf16.mxu0 0
    %1991 = vmatpush1.bf16.msra.mxu0 0
    %1992 = vmatprep.subr.bf16.mxu0 0
    %1993 = vmatpush1.bf16.msra.mxu0 0
    %1994 = vmatprep.subr.bf16.mxu0 0
    %1995 = vmatpush1.bf16.msra.mxu0 0
    %1996 = vmatprep.subr.bf16.mxu0 0
    %1997 = vmatpush1.bf16.msra.mxu0 0
    %1998 = vmatprep.subr.bf16.mxu0 0
    %1999 = vmatpush1.bf16.msra.mxu0 0
    %2000 = vmatprep.subr.bf16.mxu0 0
    %2001 = vmatpush1.bf16.msra.mxu0 0
    %2002 = vmatprep.subr.bf16.mxu0 0
    %2003 = vmatpush1.bf16.msra.mxu0 0
    %2004 = vmatprep.mubr.bf16.mxu0 0
    %2005 = vmatmul.mubr.bf16.gmra.mrb[0].mxu0 %v1970
    %v2006 = vpop.f32.mrb[0].mxu0
    %v2007 = vadd.f32 0.0, %v2006
    %v2008 = vpop.f32.mrb[0].mxu0
    %v2009 = vpop.f32.mrb[0].mxu0
    %v2010 = vpop.f32.mrb[0].mxu0
    %2011 = vdwg.mxu0
    %2012 = vrot.lane.b32.xlu0 %v343, 48
    %v2013 = vpop.permute.xlu0 %2012
    %v2016 = vsel %vm1399, %v1965, 0
    %2018 = vmatprep.subr.bf16.mxu0 0
    %2019 = vmatpush1.bf16.msra.mxu0 %v2013
    %2020 = vmatprep.subr.bf16.mxu0 0
    %2021 = vmatpush1.bf16.msra.mxu0 0
    %2022 = vmatprep.subr.bf16.mxu0 0
    %2023 = vmatpush1.bf16.msra.mxu0 0
    %2024 = vmatprep.subr.bf16.mxu0 0
    %2025 = vmatpush1.bf16.msra.mxu0 0
    %2026 = vmatprep.subr.bf16.mxu0 0
    %2027 = vmatpush1.bf16.msra.mxu0 0
    %2028 = vmatprep.subr.bf16.mxu0 0
    %2029 = vmatpush1.bf16.msra.mxu0 0
    %2030 = vmatprep.subr.bf16.mxu0 0
    %2031 = vmatpush1.bf16.msra.mxu0 0
    %2032 = vmatprep.subr.bf16.mxu0 0
    %2033 = vmatpush1.bf16.msra.mxu0 0
    %2034 = vmatprep.subr.bf16.mxu0 0
    %2035 = vmatpush1.bf16.msra.mxu0 0
    %2036 = vmatprep.subr.bf16.mxu0 0
    %2037 = vmatpush1.bf16.msra.mxu0 0
    %2038 = vmatprep.subr.bf16.mxu0 0
    %2039 = vmatpush1.bf16.msra.mxu0 0
    %2040 = vmatprep.subr.bf16.mxu0 0
    %2041 = vmatpush1.bf16.msra.mxu0 0
    %2042 = vmatprep.subr.bf16.mxu0 0
    %2043 = vmatpush1.bf16.msra.mxu0 0
    %2044 = vmatprep.subr.bf16.mxu0 0
    %2045 = vmatpush1.bf16.msra.mxu0 0
    %2046 = vmatprep.subr.bf16.mxu0 0
    %2047 = vmatpush1.bf16.msra.mxu0 0
    %2048 = vmatprep.subr.bf16.mxu0 0
    %2049 = vmatpush1.bf16.msra.mxu0 0
    %2050 = vmatprep.mubr.bf16.mxu0 0
    %2051 = vmatmul.mubr.bf16.gmra.mrb[0].mxu0 %v2016
    %v2052 = vpop.f32.mrb[0].mxu0
    %v2053 = vadd.f32 0.0, %v2052
    %v2054 = vpop.f32.mrb[0].mxu0
    %v2055 = vpop.f32.mrb[0].mxu0
    %v2056 = vpop.f32.mrb[0].mxu0
    %2057 = vdwg.mxu0
    %2058 = vrot.lane.b32.xlu0 %v344, 104
    %v2059 = vpop.permute.xlu0 %2058
    %2060 = vrot.lane.b32.xlu0 %v342, 72
    %v2061 = vpop.permute.xlu0 %2060
    %v2063 = vsel %vm349, %v2059, 0
    %v2066 = vsel %vm349, %v2061, 0
    %2068 = vmatprep.subr.bf16.mxu0 0
    %2069 = vmatpush1.bf16.xpose.msra.mxu0 %v2066
    %2070 = vmatprep.subr.bf16.mxu0 0
    %2071 = vmatpush1.bf16.xpose.msra.mxu0 0
    %2072 = vmatprep.subr.bf16.mxu0 0
    %2073 = vmatpush1.bf16.xpose.msra.mxu0 0
    %2074 = vmatprep.subr.bf16.mxu0 0
    %2075 = vmatpush1.bf16.xpose.msra.mxu0 0
    %2076 = vmatprep.subr.bf16.mxu0 0
    %2077 = vmatpush1.bf16.xpose.msra.mxu0 0
    %2078 = vmatprep.subr.bf16.mxu0 0
    %2079 = vmatpush1.bf16.xpose.msra.mxu0 0
    %2080 = vmatprep.subr.bf16.mxu0 0
    %2081 = vmatpush1.bf16.xpose.msra.mxu0 0
    %2082 = vmatprep.subr.bf16.mxu0 0
    %2083 = vmatpush1.bf16.xpose.msra.mxu0 0
    %2084 = vmatprep.subr.bf16.mxu0 0
    %2085 = vmatpush1.bf16.xpose.msra.mxu0 0
    %2086 = vmatprep.subr.bf16.mxu0 0
    %2087 = vmatpush1.bf16.xpose.msra.mxu0 0
    %2088 = vmatprep.subr.bf16.mxu0 0
    %2089 = vmatpush1.bf16.xpose.msra.mxu0 0
    %2090 = vmatprep.subr.bf16.mxu0 0
    %2091 = vmatpush1.bf16.xpose.msra.mxu0 0
    %2092 = vmatprep.subr.bf16.mxu0 0
    %2093 = vmatpush1.bf16.xpose.msra.mxu0 0
    %2094 = vmatprep.subr.bf16.mxu0 0
    %2095 = vmatpush1.bf16.xpose.msra.mxu0 0
    %2096 = vmatprep.subr.bf16.mxu0 0
    %2097 = vmatpush1.bf16.xpose.msra.mxu0 0
    %2098 = vmatprep.subr.bf16.mxu0 0
    %2099 = vmatpush1.bf16.xpose.msra.mxu0 0
    %2100 = vmatprep.mubr.bf16.mxu0 0
    %2101 = vmatmul.mubr.bf16.gmra.mrb[0].mxu0 %v2063
    %v2102 = vpop.f32.mrb[0].mxu0
    %v2103 = vadd.f32 0.0, %v2102
    %v2104 = vpop.f32.mrb[0].mxu0
    %v2105 = vpop.f32.mrb[0].mxu0
    %v2106 = vpop.f32.mrb[0].mxu0
    %2107 = vdwg.mxu0
    %2108 = vrot.lane.b32.xlu0 %v345, 104
    %v2109 = vpop.permute.xlu0 %2108
    %2110 = vrot.lane.b32.xlu0 %v343, 72
    %v2111 = vpop.permute.xlu0 %2110
    %v2113 = vsel %vm349, %v2109, 0
    %v2116 = vsel %vm349, %v2111, 0
    %2118 = vmatprep.subr.bf16.mxu0 0
    %2119 = vmatpush1.bf16.xpose.msra.mxu0 %v2116
    %2120 = vmatprep.subr.bf16.mxu0 0
    %2121 = vmatpush1.bf16.xpose.msra.mxu0 0
    %2122 = vmatprep.subr.bf16.mxu0 0
    %2123 = vmatpush1.bf16.xpose.msra.mxu0 0
    %2124 = vmatprep.subr.bf16.mxu0 0
    %2125 = vmatpush1.bf16.xpose.msra.mxu0 0
    %2126 = vmatprep.subr.bf16.mxu0 0
    %2127 = vmatpush1.bf16.xpose.msra.mxu0 0
    %2128 = vmatprep.subr.bf16.mxu0 0
    %2129 = vmatpush1.bf16.xpose.msra.mxu0 0
    %2130 = vmatprep.subr.bf16.mxu0 0
    %2131 = vmatpush1.bf16.xpose.msra.mxu0 0
    %2132 = vmatprep.subr.bf16.mxu0 0
    %2133 = vmatpush1.bf16.xpose.msra.mxu0 0
    %2134 = vmatprep.subr.bf16.mxu0 0
    %2135 = vmatpush1.bf16.xpose.msra.mxu0 0
    %2136 = vmatprep.subr.bf16.mxu0 0
    %2137 = vmatpush1.bf16.xpose.msra.mxu0 0
    %2138 = vmatprep.subr.bf16.mxu0 0
    %2139 = vmatpush1.bf16.xpose.msra.mxu0 0
    %2140 = vmatprep.subr.bf16.mxu0 0
    %2141 = vmatpush1.bf16.xpose.msra.mxu0 0
    %2142 = vmatprep.subr.bf16.mxu0 0
    %2143 = vmatpush1.bf16.xpose.msra.mxu0 0
    %2144 = vmatprep.subr.bf16.mxu0 0
    %2145 = vmatpush1.bf16.xpose.msra.mxu0 0
    %2146 = vmatprep.subr.bf16.mxu0 0
    %2147 = vmatpush1.bf16.xpose.msra.mxu0 0
    %2148 = vmatprep.subr.bf16.mxu0 0
    %2149 = vmatpush1.bf16.xpose.msra.mxu0 0
    %2150 = vmatprep.mubr.bf16.mxu0 0
    %2151 = vmatmul.mubr.bf16.gmra.mrb[0].mxu0 %v2113
    %v2152 = vpop.f32.mrb[0].mxu0
    %v2153 = vadd.f32 0.0, %v2152
    %v2154 = vpop.f32.mrb[0].mxu0
    %v2155 = vpop.f32.mrb[0].mxu0
    %v2156 = vpop.f32.mrb[0].mxu0
    %2157 = vdwg.mxu0
    %v2158 = vmul.f32 %v2103, 0.35355338
    %v2159 = vmul.f32 %v2153, 0.35355338
    %v2160 = vsel %vm1399, %v2158, -inf
    %2161 = vmax.xlane.f32.xlu0 %v2160
    %v2162 = vpop.xlane.xlu0 %2161
    %v2163 = vsel %vm1399, %v2159, -inf
    %2164 = vmax.xlane.f32.xlu0 %v2163
    %v2165 = vpop.xlane.xlu0 %2164
    %v2166 = vsub.f32 %v2158, %v2162
    %v2167 = vsub.f32 %v2159, %v2165
    %v2168 = vmul.f32 %v2166, 1.442695
    %v2169 = vpow.pop %v2168
    %v2170 = vmul.f32 %v2167, 1.442695
    %v2171 = vpow.pop %v2170
    %v2172 = vsel %vm1399, %v2169, 0.0
    %2173 = vadd.xlane.f32.xlu0 %v2172
    %v2174 = vpop.xlane.xlu0 %2173
    %v2175 = vsel %vm1399, %v2171, 0.0
    %2176 = vadd.xlane.f32.xlu0 %v2175
    %v2177 = vpop.xlane.xlu0 %2176
    %v2178 = vrcp.pop %v2174
    %v2179 = vmul.f32 %v2169, %v2178
    %v2180 = vrcp.pop %v2177
    %v2181 = vmul.f32 %v2171, %v2180
    %v2182 = vpack.c.bf16 %v2179, %v2179
    %v2183 = vpack.c.bf16 %v2181, %v2181
    %2184 = vrot.lane.b32.xlu0 %v342, 40
    %v2185 = vpop.permute.xlu0 %2184
    %v2188 = vsel %vm1399, %v2182, 0
    %2190 = vmatprep.subr.bf16.mxu0 0
    %2191 = vmatpush1.bf16.msra.mxu0 %v2185
    %2192 = vmatprep.subr.bf16.mxu0 0
    %2193 = vmatpush1.bf16.msra.mxu0 0
    %2194 = vmatprep.subr.bf16.mxu0 0
    %2195 = vmatpush1.bf16.msra.mxu0 0
    %2196 = vmatprep.subr.bf16.mxu0 0
    %2197 = vmatpush1.bf16.msra.mxu0 0
    %2198 = vmatprep.subr.bf16.mxu0 0
    %2199 = vmatpush1.bf16.msra.mxu0 0
    %2200 = vmatprep.subr.bf16.mxu0 0
    %2201 = vmatpush1.bf16.msra.mxu0 0
    %2202 = vmatprep.subr.bf16.mxu0 0
    %2203 = vmatpush1.bf16.msra.mxu0 0
    %2204 = vmatprep.subr.bf16.mxu0 0
    %2205 = vmatpush1.bf16.msra.mxu0 0
    %2206 = vmatprep.subr.bf16.mxu0 0
    %2207 = vmatpush1.bf16.msra.mxu0 0
    %2208 = vmatprep.subr.bf16.mxu0 0
    %2209 = vmatpush1.bf16.msra.mxu0 0
    %2210 = vmatprep.subr.bf16.mxu0 0
    %2211 = vmatpush1.bf16.msra.mxu0 0
    %2212 = vmatprep.subr.bf16.mxu0 0
    %2213 = vmatpush1.bf16.msra.mxu0 0
    %2214 = vmatprep.subr.bf16.mxu0 0
    %2215 = vmatpush1.bf16.msra.mxu0 0
    %2216 = vmatprep.subr.bf16.mxu0 0
    %2217 = vmatpush1.bf16.msra.mxu0 0
    %2218 = vmatprep.subr.bf16.mxu0 0
    %2219 = vmatpush1.bf16.msra.mxu0 0
    %2220 = vmatprep.subr.bf16.mxu0 0
    %2221 = vmatpush1.bf16.msra.mxu0 0
    %2222 = vmatprep.mubr.bf16.mxu0 0
    %2223 = vmatmul.mubr.bf16.gmra.mrb[0].mxu0 %v2188
    %v2224 = vpop.f32.mrb[0].mxu0
    %v2225 = vadd.f32 0.0, %v2224
    %v2226 = vpop.f32.mrb[0].mxu0
    %v2227 = vpop.f32.mrb[0].mxu0
    %v2228 = vpop.f32.mrb[0].mxu0
    %2229 = vdwg.mxu0
    %2230 = vrot.lane.b32.xlu0 %v343, 40
    %v2231 = vpop.permute.xlu0 %2230
    %v2234 = vsel %vm1399, %v2183, 0
    %2236 = vmatprep.subr.bf16.mxu0 0
    %2237 = vmatpush1.bf16.msra.mxu0 %v2231
    %2238 = vmatprep.subr.bf16.mxu0 0
    %2239 = vmatpush1.bf16.msra.mxu0 0
    %2240 = vmatprep.subr.bf16.mxu0 0
    %2241 = vmatpush1.bf16.msra.mxu0 0
    %2242 = vmatprep.subr.bf16.mxu0 0
    %2243 = vmatpush1.bf16.msra.mxu0 0
    %2244 = vmatprep.subr.bf16.mxu0 0
    %2245 = vmatpush1.bf16.msra.mxu0 0
    %2246 = vmatprep.subr.bf16.mxu0 0
    %2247 = vmatpush1.bf16.msra.mxu0 0
    %2248 = vmatprep.subr.bf16.mxu0 0
    %2249 = vmatpush1.bf16.msra.mxu0 0
    %2250 = vmatprep.subr.bf16.mxu0 0
    %2251 = vmatpush1.bf16.msra.mxu0 0
    %2252 = vmatprep.subr.bf16.mxu0 0
    %2253 = vmatpush1.bf16.msra.mxu0 0
    %2254 = vmatprep.subr.bf16.mxu0 0
    %2255 = vmatpush1.bf16.msra.mxu0 0
    %2256 = vmatprep.subr.bf16.mxu0 0
    %2257 = vmatpush1.bf16.msra.mxu0 0
    %2258 = vmatprep.subr.bf16.mxu0 0
    %2259 = vmatpush1.bf16.msra.mxu0 0
    %2260 = vmatprep.subr.bf16.mxu0 0
    %2261 = vmatpush1.bf16.msra.mxu0 0
    %2262 = vmatprep.subr.bf16.mxu0 0
    %2263 = vmatpush1.bf16.msra.mxu0 0
    %2264 = vmatprep.subr.bf16.mxu0 0
    %2265 = vmatpush1.bf16.msra.mxu0 0
    %2266 = vmatprep.subr.bf16.mxu0 0
    %2267 = vmatpush1.bf16.msra.mxu0 0
    %2268 = vmatprep.mubr.bf16.mxu0 0
    %2269 = vmatmul.mubr.bf16.gmra.mrb[0].mxu0 %v2234
    %v2270 = vpop.f32.mrb[0].mxu0
    %v2271 = vadd.f32 0.0, %v2270
    %v2272 = vpop.f32.mrb[0].mxu0
    %v2273 = vpop.f32.mrb[0].mxu0
    %v2274 = vpop.f32.mrb[0].mxu0
    %2275 = vdwg.mxu0
    %2278 = vrot.lane.b32.xlu0 %v1789, 8
    %v2279 = vpop.permute.xlu0 %2278
    %2280 = vrot.lane.b32.xlu0 %v1835, 8
    %v2281 = vpop.permute.xlu0 %2280
    %2286 = vrot.lane.b32.xlu0 %v2007, 16
    %v2287 = vpop.permute.xlu0 %2286
    %2288 = vrot.lane.b32.xlu0 %v2053, 16
    %v2289 = vpop.permute.xlu0 %2288
    %2294 = vrot.lane.b32.xlu0 %v2225, 24
    %v2295 = vpop.permute.xlu0 %2294
    %2296 = vrot.lane.b32.xlu0 %v2271, 24
    %v2297 = vpop.permute.xlu0 %2296
    %v2300 = vsel %vm349, %v1571, %v2279
    %v2301 = vsel %vm349, %v1617, %v2281
    %v2302 = vsel %vm1399, %v2300, %v2287
    %v2303 = vsel %vm1399, %v2301, %v2289
    %v2304 = vsel %vm150, %v2302, %v2295
    %v2305 = vsel %vm150, %v2303, %v2297
    %v2306 = vld [vmem:[%s5] sm:$0xf]
    %v2307 = vld [vmem:[%s5 + $0x4] sm:$0xf]
    %v2308 = vld [vmem:[%s5 + $0x8] sm:$0xf]
    %v2309 = vld [vmem:[%s5 + $0xc] sm:$0xf]
    %v2310 = vpack.c.bf16 %v1405, %v1404
    %v2311 = vpack.c.bf16 %v1407, %v1406
    %v2312 = vlaneseq
    %v2313 = vshrl.u32 %v2312, 7
    %v2314 = vsub.s32 4, %v2313
    %v2315 = vrot.slane %v34, %v2314
    %v2320 = vunpack.c.l.b16 %v2306
    %v2321 = vunpack.c.l.b16 %v2307
    %v2322 = vunpack.c.l.b16 %v2308
    %v2323 = vunpack.c.l.b16 %v2309
    %v2324 = vpack.c.b16 %v2321, %v2320
    %v2325 = vpack.c.b16 %v2323, %v2322
    %v2329 = vsel %vm221, %v2310, 0
    %v2332 = vsel %vm221, %v2311, 0
    %2334 = vmatprep.subr.bf16.mxu0 0
    %2335 = vmatpush1.bf16.msra.mxu0 %v2324
    %2336 = vmatprep.subr.bf16.mxu0 0
    %2337 = vmatpush1.bf16.msra.mxu0 %v2325
    %2338 = vmatprep.subr.bf16.mxu0 0
    %2339 = vmatpush1.bf16.msra.mxu0 0
    %2340 = vmatprep.subr.bf16.mxu0 0
    %2341 = vmatpush1.bf16.msra.mxu0 0
    %2342 = vmatprep.subr.bf16.mxu0 0
    %2343 = vmatpush1.bf16.msra.mxu0 0
    %2344 = vmatprep.subr.bf16.mxu0 0
    %2345 = vmatpush1.bf16.msra.mxu0 0
    %2346 = vmatprep.subr.bf16.mxu0 0
    %2347 = vmatpush1.bf16.msra.mxu0 0
    %2348 = vmatprep.subr.bf16.mxu0 0
    %2349 = vmatpush1.bf16.msra.mxu0 0
    %2350 = vmatprep.subr.bf16.mxu0 0
    %2351 = vmatpush1.bf16.msra.mxu0 0
    %2352 = vmatprep.subr.bf16.mxu0 0
    %2353 = vmatpush1.bf16.msra.mxu0 0
    %2354 = vmatprep.subr.bf16.mxu0 0
    %2355 = vmatpush1.bf16.msra.mxu0 0
    %2356 = vmatprep.subr.bf16.mxu0 0
    %2357 = vmatpush1.bf16.msra.mxu0 0
    %2358 = vmatprep.subr.bf16.mxu0 0
    %2359 = vmatpush1.bf16.msra.mxu0 0
    %2360 = vmatprep.subr.bf16.mxu0 0
    %2361 = vmatpush1.bf16.msra.mxu0 0
    %2362 = vmatprep.subr.bf16.mxu0 0
    %2363 = vmatpush1.bf16.msra.mxu0 0
    %2364 = vmatprep.subr.bf16.mxu0 0
    %2365 = vmatpush1.bf16.msra.mxu0 0
    %2366 = vmatprep.mubr.bf16.mxu0 0
    %2367 = vmatmul.mubr.bf16.gmra.mrb[0].mxu0 %v2329
    %v2368 = vpop.f32.mrb[0].mxu0
    %v2369 = vadd.f32 %v2315, %v2368
    %v2370 = vpop.f32.mrb[0].mxu0
    %v2371 = vpop.f32.mrb[0].mxu0
    %v2372 = vadd.f32 %v2315, %v2371
    %v2373 = vpop.f32.mrb[0].mxu0
    %2374 = vmatprep.mubr.bf16.mxu0 0
    %2375 = vmatmul.mubr.bf16.gmra.mrb[0].mxu0 %v2332
    %v2376 = vpop.f32.mrb[0].mxu0
    %v2377 = vadd.f32 %v2315, %v2376
    %v2378 = vpop.f32.mrb[0].mxu0
    %v2379 = vpop.f32.mrb[0].mxu0
    %v2380 = vadd.f32 %v2315, %v2379
    %v2381 = vpop.f32.mrb[0].mxu0
    %2382 = vdwg.mxu0
    %v2383 = vld [vmem:[%s5 + $0x10] sm:$0xf]
    %v2384 = vld [vmem:[%s5 + $0x14] sm:$0xf]
    %v2385 = vld [vmem:[%s5 + $0x18] sm:$0xf]
    %v2386 = vld [vmem:[%s5 + $0x1c] sm:$0xf]
    %v2387 = vpack.c.bf16 %v2305, %v2304
    %v2388 = vlaneseq
    %v2389 = vshrl.u32 %v2388, 7
    %v2390 = vsub.s32 5, %v2389
    %v2391 = vrot.slane %v34, %v2390
    %v2396 = vunpack.c.l.b16 %v2383
    %v2397 = vunpack.c.l.b16 %v2384
    %v2398 = vunpack.c.l.b16 %v2385
    %v2399 = vunpack.c.l.b16 %v2386
    %v2400 = vpack.c.b16 %v2397, %v2396
    %v2401 = vpack.c.b16 %v2399, %v2398
    %v2405 = vsel %vm221, %v2387, 0
    %2407 = vmatprep.subr.bf16.mxu0 0
    %2408 = vmatpush1.bf16.msra.mxu0 %v2400
    %2409 = vmatprep.subr.bf16.mxu0 0
    %2410 = vmatpush1.bf16.msra.mxu0 %v2401
    %2411 = vmatprep.subr.bf16.mxu0 0
    %2412 = vmatpush1.bf16.msra.mxu0 0
    %2413 = vmatprep.subr.bf16.mxu0 0
    %2414 = vmatpush1.bf16.msra.mxu0 0
    %2415 = vmatprep.subr.bf16.mxu0 0
    %2416 = vmatpush1.bf16.msra.mxu0 0
    %2417 = vmatprep.subr.bf16.mxu0 0
    %2418 = vmatpush1.bf16.msra.mxu0 0
    %2419 = vmatprep.subr.bf16.mxu0 0
    %2420 = vmatpush1.bf16.msra.mxu0 0
    %2421 = vmatprep.subr.bf16.mxu0 0
    %2422 = vmatpush1.bf16.msra.mxu0 0
    %2423 = vmatprep.subr.bf16.mxu0 0
    %2424 = vmatpush1.bf16.msra.mxu0 0
    %2425 = vmatprep.subr.bf16.mxu0 0
    %2426 = vmatpush1.bf16.msra.mxu0 0
    %2427 = vmatprep.subr.bf16.mxu0 0
    %2428 = vmatpush1.bf16.msra.mxu0 0
    %2429 = vmatprep.subr.bf16.mxu0 0
    %2430 = vmatpush1.bf16.msra.mxu0 0
    %2431 = vmatprep.subr.bf16.mxu0 0
    %2432 = vmatpush1.bf16.msra.mxu0 0
    %2433 = vmatprep.subr.bf16.mxu0 0
    %2434 = vmatpush1.bf16.msra.mxu0 0
    %2435 = vmatprep.subr.bf16.mxu0 0
    %2436 = vmatpush1.bf16.msra.mxu0 0
    %2437 = vmatprep.subr.bf16.mxu0 0
    %2438 = vmatpush1.bf16.msra.mxu0 0
    %2439 = vmatprep.mubr.bf16.mxu0 0
    %2440 = vmatmul.mubr.bf16.gmra.mrb[0].mxu0 %v2405
    %v2441 = vpop.f32.mrb[0].mxu0
    %v2442 = vadd.f32 %v2391, %v2441
    %v2443 = vpop.f32.mrb[0].mxu0
    %v2444 = vpop.f32.mrb[0].mxu0
    %v2445 = vadd.f32 %v2391, %v2444
    %v2446 = vpop.f32.mrb[0].mxu0
    %2447 = vdwg.mxu0
    %v2448 = vadd.f32 %v113, %v2369
    %v2449 = vadd.f32 %v116, %v2372
    %v2450 = vadd.f32 %v121, %v2377
    %v2451 = vadd.f32 %v124, %v2380
    %v2452 = vsel %vm221, %v2448, 0.0
    %2453 = vadd.xlane.f32.xlu0 %v2452
    %v2454 = vpop.xlane.xlu0 %2453
    %v2455 = vsel %vm221, %v2449, 0.0
    %2456 = vadd.xlane.f32.xlu0 %v2455
    %v2457 = vpop.xlane.xlu0 %2456
    %v2458 = vsel %vm221, %v2450, 0.0
    %2459 = vadd.xlane.f32.xlu0 %v2458
    %v2460 = vpop.xlane.xlu0 %2459
    %v2461 = vsel %vm221, %v2451, 0.0
    %2462 = vadd.xlane.f32.xlu0 %v2461
    %v2463 = vpop.xlane.xlu0 %2462
    %v2464 = vrcp.pop 32.0
    %v2465 = vmul.f32 %v2454, %v2464
    %v2466 = vmul.f32 %v2457, %v2464
    %v2467 = vmul.f32 %v2460, %v2464
    %v2468 = vmul.f32 %v2463, %v2464
    %v2469 = vsub.f32 %v2448, %v2465
    %v2470 = vsub.f32 %v2449, %v2466
    %v2471 = vsub.f32 %v2450, %v2467
    %v2472 = vsub.f32 %v2451, %v2468
    %v2473 = vmul.f32 %v2469, %v2469
    %v2474 = vmul.f32 %v2470, %v2470
    %v2475 = vmul.f32 %v2471, %v2471
    %v2476 = vmul.f32 %v2472, %v2472
    %v2477 = vsel %vm221, %v2473, 0.0
    %2478 = vadd.xlane.f32.xlu0 %v2477
    %v2479 = vpop.xlane.xlu0 %2478
    %v2480 = vsel %vm221, %v2474, 0.0
    %2481 = vadd.xlane.f32.xlu0 %v2480
    %v2482 = vpop.xlane.xlu0 %2481
    %v2483 = vsel %vm221, %v2475, 0.0
    %2484 = vadd.xlane.f32.xlu0 %v2483
    %v2485 = vpop.xlane.xlu0 %2484
    %v2486 = vsel %vm221, %v2476, 0.0
    %2487 = vadd.xlane.f32.xlu0 %v2486
    %v2488 = vpop.xlane.xlu0 %2487
    %v2489 = vmul.f32 %v2479, 0.032258064
    %v2490 = vmul.f32 %v2482, 0.032258064
    %v2491 = vmul.f32 %v2485, 0.032258064
    %v2492 = vmul.f32 %v2488, 0.032258064
    %v2493 = vrsqrt.pop %v2489
    %v2494 = vmul.f32 %v2489, %v2493
    %vm2495 = vcmp.eq.f32.partialorder %v2489, inf
    %v2496 = vsel %vm2495, %v2489, %v2494
    %vm2497 = vcmp.eq.f32.partialorder %v2489, 0.0
    %v2498 = vand.u32 %v2489, 2147483648
    %v2499 = vsel %vm2497, %v2498, %v2496
    %v2500 = vrsqrt.pop %v2490
    %v2501 = vmul.f32 %v2490, %v2500
    %vm2502 = vcmp.eq.f32.partialorder %v2490, inf
    %v2503 = vsel %vm2502, %v2490, %v2501
    %vm2504 = vcmp.eq.f32.partialorder %v2490, 0.0
    %v2505 = vand.u32 %v2490, 2147483648
    %v2506 = vsel %vm2504, %v2505, %v2503
    %v2507 = vrsqrt.pop %v2491
    %v2508 = vmul.f32 %v2491, %v2507
    %vm2509 = vcmp.eq.f32.partialorder %v2491, inf
    %v2510 = vsel %vm2509, %v2491, %v2508
    %vm2511 = vcmp.eq.f32.partialorder %v2491, 0.0
    %v2512 = vand.u32 %v2491, 2147483648
    %v2513 = vsel %vm2511, %v2512, %v2510
    %v2514 = vrsqrt.pop %v2492
    %v2515 = vmul.f32 %v2492, %v2514
    %vm2516 = vcmp.eq.f32.partialorder %v2492, inf
    %v2517 = vsel %vm2516, %v2492, %v2515
    %vm2518 = vcmp.eq.f32.partialorder %v2492, 0.0
    %v2519 = vand.u32 %v2492, 2147483648
    %v2520 = vsel %vm2518, %v2519, %v2517
    %v2521 = vadd.f32 %v2499, 1e-06
    %v2522 = vadd.f32 %v2506, 1e-06
    %v2523 = vadd.f32 %v2513, 1e-06
    %v2524 = vadd.f32 %v2520, 1e-06
    %v2525 = vrcp.pop %v2521
    %v2526 = vmul.f32 %v2469, %v2525
    %v2527 = vrcp.pop %v2522
    %v2528 = vmul.f32 %v2470, %v2527
    %v2529 = vrcp.pop %v2523
    %v2530 = vmul.f32 %v2471, %v2529
    %v2531 = vrcp.pop %v2524
    %v2532 = vmul.f32 %v2472, %v2531
    %v2533 = vlaneseq
    %v2534 = vshrl.u32 %v2533, 7
    %v2535 = vsub.s32 6, %v2534
    %v2536 = vrot.slane %v34, %v2535
    %v2537 = vmul.f32 %v2536, %v2526
    %v2538 = vmul.f32 %v2536, %v2528
    %v2539 = vmul.f32 %v2536, %v2530
    %v2540 = vmul.f32 %v2536, %v2532
    %v2541 = vlaneseq
    %v2542 = vshrl.u32 %v2541, 7
    %v2543 = vsub.s32 7, %v2542
    %v2544 = vrot.slane %v34, %v2543
    %v2545 = vadd.f32 %v2537, %v2544
    %v2546 = vadd.f32 %v2538, %v2544
    %v2547 = vadd.f32 %v2539, %v2544
    %v2548 = vadd.f32 %v2540, %v2544
    %v2549 = vadd.f32 %v193, %v2442
    %v2550 = vadd.f32 %v196, %v2445
    %v2551 = vsel %vm221, %v2549, 0.0
    %2552 = vadd.xlane.f32.xlu0 %v2551
    %v2553 = vpop.xlane.xlu0 %2552
    %v2554 = vsel %vm221, %v2550, 0.0
    %2555 = vadd.xlane.f32.xlu0 %v2554
    %v2556 = vpop.xlane.xlu0 %2555
    %v2557 = vmul.f32 %v2553, %v2464
    %v2558 = vmul.f32 %v2556, %v2464
    %v2559 = vsub.f32 %v2549, %v2557
    %v2560 = vsub.f32 %v2550, %v2558
    %v2561 = vmul.f32 %v2559, %v2559
    %v2562 = vmul.f32 %v2560, %v2560
    %v2563 = vsel %vm221, %v2561, 0.0
    %2564 = vadd.xlane.f32.xlu0 %v2563
    %v2565 = vpop.xlane.xlu0 %2564
    %v2566 = vsel %vm221, %v2562, 0.0
    %2567 = vadd.xlane.f32.xlu0 %v2566
    %v2568 = vpop.xlane.xlu0 %2567
    %v2569 = vmul.f32 %v2565, 0.032258064
    %v2570 = vmul.f32 %v2568, 0.032258064
    %v2571 = vrsqrt.pop %v2569
    %v2572 = vmul.f32 %v2569, %v2571
    %vm2573 = vcmp.eq.f32.partialorder %v2569, inf
    %v2574 = vsel %vm2573, %v2569, %v2572
    %vm2575 = vcmp.eq.f32.partialorder %v2569, 0.0
    %v2576 = vand.u32 %v2569, 2147483648
    %v2577 = vsel %vm2575, %v2576, %v2574
    %v2578 = vrsqrt.pop %v2570
    %v2579 = vmul.f32 %v2570, %v2578
    %vm2580 = vcmp.eq.f32.partialorder %v2570, inf
    %v2581 = vsel %vm2580, %v2570, %v2579
    %vm2582 = vcmp.eq.f32.partialorder %v2570, 0.0
    %v2583 = vand.u32 %v2570, 2147483648
    %v2584 = vsel %vm2582, %v2583, %v2581
    %v2585 = vadd.f32 %v2577, 1e-06
    %v2586 = vadd.f32 %v2584, 1e-06
    %v2587 = vrcp.pop %v2585
    %v2588 = vmul.f32 %v2559, %v2587
    %v2589 = vrcp.pop %v2586
    %v2590 = vmul.f32 %v2560, %v2589
    %v2591 = vlaneseq
    %v2592 = vshrl.u32 %v2591, 7
    %v2593 = vsub.s32 0, %v2592
    %v2594 = vrot.slane %v35, %v2593
    %v2595 = vmul.f32 %v2594, %v2588
    %v2596 = vmul.f32 %v2594, %v2590
    %v2597 = vlaneseq
    %v2598 = vshrl.u32 %v2597, 7
    %v2599 = vsub.s32 1, %v2598
    %v2600 = vrot.slane %v35, %v2599
    %v2601 = vadd.f32 %v2595, %v2600
    %v2602 = vadd.f32 %v2596, %v2600
    %v2603 = vld [vmem:[%s6] sm:$0xf]
    %v2604 = vld [vmem:[%s6 + $0x4] sm:$0xf]
    %v2605 = vld [vmem:[%s6 + $0x8] sm:$0xf]
    %v2606 = vld [vmem:[%s6 + $0xc] sm:$0xf]
    %v2607 = vld [vmem:[%s7] sm:$0xf]
    %v2608 = vld [vmem:[%s7 + $0x4] sm:$0xf]
    %v2609 = vld [vmem:[%s7 + $0x8] sm:$0xf]
    %v2610 = vld [vmem:[%s7 + $0xc] sm:$0xf]
    %v2611 = vld [vmem:[%s7 + $0x10] sm:$0xf]
    %v2612 = vld [vmem:[%s7 + $0x14] sm:$0xf]
    %v2613 = vld [vmem:[%s7 + $0x18] sm:$0xf]
    %v2614 = vld [vmem:[%s7 + $0x1c] sm:$0xf]
    %v2615 = vld [vmem:[%s7 + $0x20] sm:$0xf]
    %v2616 = vld [vmem:[%s7 + $0x24] sm:$0xf]
    %v2617 = vld [vmem:[%s7 + $0x28] sm:$0xf]
    %v2618 = vld [vmem:[%s7 + $0x2c] sm:$0xf]
    %v2619 = vld [vmem:[%s7 + $0x30] sm:$0xf]
    %v2620 = vld [vmem:[%s7 + $0x34] sm:$0xf]
    %v2621 = vld [vmem:[%s7 + $0x38] sm:$0xf]
    %v2622 = vld [vmem:[%s7 + $0x3c] sm:$0xf]
    %v2623 = vpack.c.bf16 %v2546, %v2545
    %v2624 = vpack.c.bf16 %v2548, %v2547
    %v2625 = vlaneseq
    %v2626 = vshrl.u32 %v2625, 7
    %v2627 = vsub.s32 2, %v2626
    %v2628 = vrot.slane %v35, %v2627
    %v2633 = vunpack.c.l.b16 %v2603
    %v2634 = vunpack.c.l.b16 %v2604
    %v2635 = vunpack.c.l.b16 %v2605
    %v2636 = vunpack.c.l.b16 %v2606
    %v2637 = vpack.c.b16 %v2634, %v2633
    %v2638 = vpack.c.b16 %v2636, %v2635
    %v2642 = vsel %vm221, %v2623, 0
    %v2645 = vsel %vm221, %v2624, 0
    %2647 = vmatprep.subr.bf16.mxu0 0
    %2648 = vmatpush1.bf16.msra.mxu0 %v2637
    %2649 = vmatprep.subr.bf16.mxu0 0
    %2650 = vmatpush1.bf16.msra.mxu0 %v2638
    %2651 = vmatprep.subr.bf16.mxu0 0
    %2652 = vmatpush1.bf16.msra.mxu0 0
    %2653 = vmatprep.subr.bf16.mxu0 0
    %2654 = vmatpush1.bf16.msra.mxu0 0
    %2655 = vmatprep.subr.bf16.mxu0 0
    %2656 = vmatpush1.bf16.msra.mxu0 0
    %2657 = vmatprep.subr.bf16.mxu0 0
    %2658 = vmatpush1.bf16.msra.mxu0 0
    %2659 = vmatprep.subr.bf16.mxu0 0
    %2660 = vmatpush1.bf16.msra.mxu0 0
    %2661 = vmatprep.subr.bf16.mxu0 0
    %2662 = vmatpush1.bf16.msra.mxu0 0
    %2663 = vmatprep.subr.bf16.mxu0 0
    %2664 = vmatpush1.bf16.msra.mxu0 0
    %2665 = vmatprep.subr.bf16.mxu0 0
    %2666 = vmatpush1.bf16.msra.mxu0 0
    %2667 = vmatprep.subr.bf16.mxu0 0
    %2668 = vmatpush1.bf16.msra.mxu0 0
    %2669 = vmatprep.subr.bf16.mxu0 0
    %2670 = vmatpush1.bf16.msra.mxu0 0
    %2671 = vmatprep.subr.bf16.mxu0 0
    %2672 = vmatpush1.bf16.msra.mxu0 0
    %2673 = vmatprep.subr.bf16.mxu0 0
    %2674 = vmatpush1.bf16.msra.mxu0 0
    %2675 = vmatprep.subr.bf16.mxu0 0
    %2676 = vmatpush1.bf16.msra.mxu0 0
    %2677 = vmatprep.subr.bf16.mxu0 0
    %2678 = vmatpush1.bf16.msra.mxu0 0
    %2679 = vmatprep.mubr.bf16.mxu0 0
    %2680 = vmatmul.mubr.bf16.gmra.mrb[0].mxu0 %v2642
    %v2681 = vpop.f32.mrb[0].mxu0
    %v2682 = vadd.f32 %v2628, %v2681
    %v2683 = vpop.f32.mrb[0].mxu0
    %v2684 = vpop.f32.mrb[0].mxu0
    %v2685 = vadd.f32 %v2628, %v2684
    %v2686 = vpop.f32.mrb[0].mxu0
    %2687 = vmatprep.mubr.bf16.mxu0 0
    %2688 = vmatmul.mubr.bf16.gmra.mrb[0].mxu0 %v2645
    %v2689 = vpop.f32.mrb[0].mxu0
    %v2690 = vadd.f32 %v2628, %v2689
    %v2691 = vpop.f32.mrb[0].mxu0
    %v2692 = vpop.f32.mrb[0].mxu0
    %v2693 = vadd.f32 %v2628, %v2692
    %v2694 = vpop.f32.mrb[0].mxu0
    %2695 = vdwg.mxu0
    %v2696 = vmax.f32 %v2682, 0.0
    %v2697 = vmax.f32 %v2685, 0.0
    %v2698 = vmax.f32 %v2690, 0.0
    %v2699 = vmax.f32 %v2693, 0.0
    %v2700 = vpack.c.bf16 %v2697, %v2696
    %v2701 = vpack.c.bf16 %v2699, %v2698
    %v2702 = vlaneseq
    %v2703 = vshrl.u32 %v2702, 7
    %v2704 = vsub.s32 4, %v2703
    %v2705 = vrot.slane %v35, %v2704
    %v2722 = vunpack.c.l.b16 %v2607
    %v2723 = vunpack.c.l.b16 %v2608
    %v2724 = vunpack.c.l.b16 %v2609
    %v2725 = vunpack.c.l.b16 %v2610
    %v2726 = vunpack.c.l.b16 %v2611
    %v2727 = vunpack.c.l.b16 %v2612
    %v2728 = vunpack.c.l.b16 %v2613
    %v2729 = vunpack.c.l.b16 %v2614
    %v2730 = vunpack.c.l.b16 %v2615
    %v2731 = vunpack.c.l.b16 %v2616
    %v2732 = vunpack.c.l.b16 %v2617
    %v2733 = vunpack.c.l.b16 %v2618
    %v2734 = vunpack.c.l.b16 %v2619
    %v2735 = vunpack.c.l.b16 %v2620
    %v2736 = vunpack.c.l.b16 %v2621
    %v2737 = vunpack.c.l.b16 %v2622
    %v2738 = vpack.c.b16 %v2723, %v2722
    %v2739 = vpack.c.b16 %v2725, %v2724
    %v2740 = vpack.c.b16 %v2727, %v2726
    %v2741 = vpack.c.b16 %v2729, %v2728
    %v2742 = vpack.c.b16 %v2731, %v2730
    %v2743 = vpack.c.b16 %v2733, %v2732
    %v2744 = vpack.c.b16 %v2735, %v2734
    %v2745 = vpack.c.b16 %v2737, %v2736
    %2754 = vmatprep.subr.bf16.mxu0 0
    %2755 = vmatpush1.bf16.msra.mxu0 %v2738
    %2756 = vmatprep.subr.bf16.mxu0 0
    %2757 = vmatpush1.bf16.msra.mxu0 %v2739
    %2758 = vmatprep.subr.bf16.mxu0 0
    %2759 = vmatpush1.bf16.msra.mxu0 %v2740
    %2760 = vmatprep.subr.bf16.mxu0 0
    %2761 = vmatpush1.bf16.msra.mxu0 %v2741
    %2762 = vmatprep.subr.bf16.mxu0 0
    %2763 = vmatpush1.bf16.msra.mxu0 %v2742
    %2764 = vmatprep.subr.bf16.mxu0 0
    %2765 = vmatpush1.bf16.msra.mxu0 %v2743
    %2766 = vmatprep.subr.bf16.mxu0 0
    %2767 = vmatpush1.bf16.msra.mxu0 %v2744
    %2768 = vmatprep.subr.bf16.mxu0 0
    %2769 = vmatpush1.bf16.msra.mxu0 %v2745
    %2770 = vmatprep.subr.bf16.mxu0 0
    %2771 = vmatpush1.bf16.msra.mxu0 0
    %2772 = vmatprep.subr.bf16.mxu0 0
    %2773 = vmatpush1.bf16.msra.mxu0 0
    %2774 = vmatprep.subr.bf16.mxu0 0
    %2775 = vmatpush1.bf16.msra.mxu0 0
    %2776 = vmatprep.subr.bf16.mxu0 0
    %2777 = vmatpush1.bf16.msra.mxu0 0
    %2778 = vmatprep.subr.bf16.mxu0 0
    %2779 = vmatpush1.bf16.msra.mxu0 0
    %2780 = vmatprep.subr.bf16.mxu0 0
    %2781 = vmatpush1.bf16.msra.mxu0 0
    %2782 = vmatprep.subr.bf16.mxu0 0
    %2783 = vmatpush1.bf16.msra.mxu0 0
    %2784 = vmatprep.subr.bf16.mxu0 0
    %2785 = vmatpush1.bf16.msra.mxu0 0
    %2786 = vmatprep.mubr.bf16.mxu0 0
    %2787 = vmatmul.mubr.bf16.gmra.mrb[0].mxu0 %v2700
    %v2788 = vpop.f32.mrb[0].mxu0
    %v2789 = vadd.f32 %v2705, %v2788
    %v2790 = vpop.f32.mrb[0].mxu0
    %v2791 = vpop.f32.mrb[0].mxu0
    %v2792 = vadd.f32 %v2705, %v2791
    %v2793 = vpop.f32.mrb[0].mxu0
    %2794 = vmatprep.mubr.bf16.mxu0 0
    %2795 = vmatmul.mubr.bf16.gmra.mrb[0].mxu0 %v2701
    %v2796 = vpop.f32.mrb[0].mxu0
    %v2797 = vadd.f32 %v2705, %v2796
    %v2798 = vpop.f32.mrb[0].mxu0
    %v2799 = vpop.f32.mrb[0].mxu0
    %v2800 = vadd.f32 %v2705, %v2799
    %v2801 = vpop.f32.mrb[0].mxu0
    %2802 = vdwg.mxu0
    %v2803 = vadd.f32 %v2545, %v2789
    %v2804 = vadd.f32 %v2546, %v2792
    %v2805 = vadd.f32 %v2547, %v2797
    %v2806 = vadd.f32 %v2548, %v2800
    %v2807 = vsel %vm221, %v2803, 0.0
    %2808 = vadd.xlane.f32.xlu0 %v2807
    %v2809 = vpop.xlane.xlu0 %2808
    %v2810 = vsel %vm221, %v2804, 0.0
    %2811 = vadd.xlane.f32.xlu0 %v2810
    %v2812 = vpop.xlane.xlu0 %2811
    %v2813 = vsel %vm221, %v2805, 0.0
    %2814 = vadd.xlane.f32.xlu0 %v2813
    %v2815 = vpop.xlane.xlu0 %2814
    %v2816 = vsel %vm221, %v2806, 0.0
    %2817 = vadd.xlane.f32.xlu0 %v2816
    %v2818 = vpop.xlane.xlu0 %2817
    %v2819 = vmul.f32 %v2809, %v2464
    %v2820 = vmul.f32 %v2812, %v2464
    %v2821 = vmul.f32 %v2815, %v2464
    %v2822 = vmul.f32 %v2818, %v2464
    %v2823 = vsub.f32 %v2803, %v2819
    %v2824 = vsub.f32 %v2804, %v2820
    %v2825 = vsub.f32 %v2805, %v2821
    %v2826 = vsub.f32 %v2806, %v2822
    %v2827 = vmul.f32 %v2823, %v2823
    %v2828 = vmul.f32 %v2824, %v2824
    %v2829 = vmul.f32 %v2825, %v2825
    %v2830 = vmul.f32 %v2826, %v2826
    %v2831 = vsel %vm221, %v2827, 0.0
    %2832 = vadd.xlane.f32.xlu0 %v2831
    %v2833 = vpop.xlane.xlu0 %2832
    %v2834 = vsel %vm221, %v2828, 0.0
    %2835 = vadd.xlane.f32.xlu0 %v2834
    %v2836 = vpop.xlane.xlu0 %2835
    %v2837 = vsel %vm221, %v2829, 0.0
    %2838 = vadd.xlane.f32.xlu0 %v2837
    %v2839 = vpop.xlane.xlu0 %2838
    %v2840 = vsel %vm221, %v2830, 0.0
    %2841 = vadd.xlane.f32.xlu0 %v2840
    %v2842 = vpop.xlane.xlu0 %2841
    %v2843 = vmul.f32 %v2833, 0.032258064
    %v2844 = vmul.f32 %v2836, 0.032258064
    %v2845 = vmul.f32 %v2839, 0.032258064
    %v2846 = vmul.f32 %v2842, 0.032258064
    %v2847 = vrsqrt.pop %v2843
    %v2848 = vmul.f32 %v2843, %v2847
    %vm2849 = vcmp.eq.f32.partialorder %v2843, inf
    %v2850 = vsel %vm2849, %v2843, %v2848
    %vm2851 = vcmp.eq.f32.partialorder %v2843, 0.0
    %v2852 = vand.u32 %v2843, 2147483648
    %v2853 = vsel %vm2851, %v2852, %v2850
    %v2854 = vrsqrt.pop %v2844
    %v2855 = vmul.f32 %v2844, %v2854
    %vm2856 = vcmp.eq.f32.partialorder %v2844, inf
    %v2857 = vsel %vm2856, %v2844, %v2855
    %vm2858 = vcmp.eq.f32.partialorder %v2844, 0.0
    %v2859 = vand.u32 %v2844, 2147483648
    %v2860 = vsel %vm2858, %v2859, %v2857
    %v2861 = vrsqrt.pop %v2845
    %v2862 = vmul.f32 %v2845, %v2861
    %vm2863 = vcmp.eq.f32.partialorder %v2845, inf
    %v2864 = vsel %vm2863, %v2845, %v2862
    %vm2865 = vcmp.eq.f32.partialorder %v2845, 0.0
    %v2866 = vand.u32 %v2845, 2147483648
    %v2867 = vsel %vm2865, %v2866, %v2864
    %v2868 = vrsqrt.pop %v2846
    %v2869 = vmul.f32 %v2846, %v2868
    %vm2870 = vcmp.eq.f32.partialorder %v2846, inf
    %v2871 = vsel %vm2870, %v2846, %v2869
    %vm2872 = vcmp.eq.f32.partialorder %v2846, 0.0
    %v2873 = vand.u32 %v2846, 2147483648
    %v2874 = vsel %vm2872, %v2873, %v2871
    %v2875 = vadd.f32 %v2853, 1e-06
    %v2876 = vadd.f32 %v2860, 1e-06
    %v2877 = vadd.f32 %v2867, 1e-06
    %v2878 = vadd.f32 %v2874, 1e-06
    %v2879 = vrcp.pop %v2875
    %v2880 = vmul.f32 %v2823, %v2879
    %v2881 = vrcp.pop %v2876
    %v2882 = vmul.f32 %v2824, %v2881
    %v2883 = vrcp.pop %v2877
    %v2884 = vmul.f32 %v2825, %v2883
    %v2885 = vrcp.pop %v2878
    %v2886 = vmul.f32 %v2826, %v2885
    %v2887 = vlaneseq
    %v2888 = vshrl.u32 %v2887, 7
    %v2889 = vsub.s32 6, %v2888
    %v2890 = vrot.slane %v35, %v2889
    %v2891 = vmul.f32 %v2890, %v2880
    %v2892 = vmul.f32 %v2890, %v2882
    %v2893 = vmul.f32 %v2890, %v2884
    %v2894 = vmul.f32 %v2890, %v2886
    %v2895 = vlaneseq
    %v2896 = vshrl.u32 %v2895, 7
    %v2897 = vsub.s32 7, %v2896
    %v2898 = vrot.slane %v35, %v2897
    %v2899 = vadd.f32 %v2891, %v2898
    %v2900 = vadd.f32 %v2892, %v2898
    %v2901 = vadd.f32 %v2893, %v2898
    %v2902 = vadd.f32 %v2894, %v2898
    %v2903 = vld [vmem:[%s6 + $0x10] sm:$0xf]
    %v2904 = vld [vmem:[%s6 + $0x14] sm:$0xf]
    %v2905 = vld [vmem:[%s6 + $0x18] sm:$0xf]
    %v2906 = vld [vmem:[%s6 + $0x1c] sm:$0xf]
    %v2907 = vld [vmem:[%s7 + $0x40] sm:$0xf]
    %v2908 = vld [vmem:[%s7 + $0x44] sm:$0xf]
    %v2909 = vld [vmem:[%s7 + $0x48] sm:$0xf]
    %v2910 = vld [vmem:[%s7 + $0x4c] sm:$0xf]
    %v2911 = vld [vmem:[%s7 + $0x50] sm:$0xf]
    %v2912 = vld [vmem:[%s7 + $0x54] sm:$0xf]
    %v2913 = vld [vmem:[%s7 + $0x58] sm:$0xf]
    %v2914 = vld [vmem:[%s7 + $0x5c] sm:$0xf]
    %v2915 = vld [vmem:[%s7 + $0x60] sm:$0xf]
    %v2916 = vld [vmem:[%s7 + $0x64] sm:$0xf]
    %v2917 = vld [vmem:[%s7 + $0x68] sm:$0xf]
    %v2918 = vld [vmem:[%s7 + $0x6c] sm:$0xf]
    %v2919 = vld [vmem:[%s7 + $0x70] sm:$0xf]
    %v2920 = vld [vmem:[%s7 + $0x74] sm:$0xf]
    %v2921 = vld [vmem:[%s7 + $0x78] sm:$0xf]
    %v2922 = vld [vmem:[%s7 + $0x7c] sm:$0xf]
    %v2923 = vpack.c.bf16 %v2602, %v2601
    %v2924 = vlaneseq
    %v2925 = vshrl.u32 %v2924, 7
    %v2926 = vsub.s32 3, %v2925
    %v2927 = vrot.slane %v35, %v2926
    %v2932 = vunpack.c.l.b16 %v2903
    %v2933 = vunpack.c.l.b16 %v2904
    %v2934 = vunpack.c.l.b16 %v2905
    %v2935 = vunpack.c.l.b16 %v2906
    %v2936 = vpack.c.b16 %v2933, %v2932
    %v2937 = vpack.c.b16 %v2935, %v2934
    %v2941 = vsel %vm221, %v2923, 0
    %2943 = vmatprep.subr.bf16.mxu0 0
    %2944 = vmatpush1.bf16.msra.mxu0 %v2936
    %2945 = vmatprep.subr.bf16.mxu0 0
    %2946 = vmatpush1.bf16.msra.mxu0 %v2937
    %2947 = vmatprep.subr.bf16.mxu0 0
    %2948 = vmatpush1.bf16.msra.mxu0 0
    %2949 = vmatprep.subr.bf16.mxu0 0
    %2950 = vmatpush1.bf16.msra.mxu0 0
    %2951 = vmatprep.subr.bf16.mxu0 0
    %2952 = vmatpush1.bf16.msra.mxu0 0
    %2953 = vmatprep.subr.bf16.mxu0 0
    %2954 = vmatpush1.bf16.msra.mxu0 0
    %2955 = vmatprep.subr.bf16.mxu0 0
    %2956 = vmatpush1.bf16.msra.mxu0 0
    %2957 = vmatprep.subr.bf16.mxu0 0
    %2958 = vmatpush1.bf16.msra.mxu0 0
    %2959 = vmatprep.subr.bf16.mxu0 0
    %2960 = vmatpush1.bf16.msra.mxu0 0
    %2961 = vmatprep.subr.bf16.mxu0 0
    %2962 = vmatpush1.bf16.msra.mxu0 0
    %2963 = vmatprep.subr.bf16.mxu0 0
    %2964 = vmatpush1.bf16.msra.mxu0 0
    %2965 = vmatprep.subr.bf16.mxu0 0
    %2966 = vmatpush1.bf16.msra.mxu0 0
    %2967 = vmatprep.subr.bf16.mxu0 0
    %2968 = vmatpush1.bf16.msra.mxu0 0
    %2969 = vmatprep.subr.bf16.mxu0 0
    %2970 = vmatpush1.bf16.msra.mxu0 0
    %2971 = vmatprep.subr.bf16.mxu0 0
    %2972 = vmatpush1.bf16.msra.mxu0 0
    %2973 = vmatprep.subr.bf16.mxu0 0
    %2974 = vmatpush1.bf16.msra.mxu0 0
    %2975 = vmatprep.mubr.bf16.mxu0 0
    %2976 = vmatmul.mubr.bf16.gmra.mrb[0].mxu0 %v2941
    %v2977 = vpop.f32.mrb[0].mxu0
    %v2978 = vadd.f32 %v2927, %v2977
    %v2979 = vpop.f32.mrb[0].mxu0
    %v2980 = vpop.f32.mrb[0].mxu0
    %v2981 = vadd.f32 %v2927, %v2980
    %v2982 = vpop.f32.mrb[0].mxu0
    %2983 = vdwg.mxu0
    %v2984 = vmax.f32 %v2978, 0.0
    %v2985 = vmax.f32 %v2981, 0.0
    %v2986 = vpack.c.bf16 %v2985, %v2984
    %v2987 = vlaneseq
    %v2988 = vshrl.u32 %v2987, 7
    %v2989 = vsub.s32 5, %v2988
    %v2990 = vrot.slane %v35, %v2989
    %v3007 = vunpack.c.l.b16 %v2907
    %v3008 = vunpack.c.l.b16 %v2908
    %v3009 = vunpack.c.l.b16 %v2909
    %v3010 = vunpack.c.l.b16 %v2910
    %v3011 = vunpack.c.l.b16 %v2911
    %v3012 = vunpack.c.l.b16 %v2912
    %v3013 = vunpack.c.l.b16 %v2913
    %v3014 = vunpack.c.l.b16 %v2914
    %v3015 = vunpack.c.l.b16 %v2915
    %v3016 = vunpack.c.l.b16 %v2916
    %v3017 = vunpack.c.l.b16 %v2917
    %v3018 = vunpack.c.l.b16 %v2918
    %v3019 = vunpack.c.l.b16 %v2919
    %v3020 = vunpack.c.l.b16 %v2920
    %v3021 = vunpack.c.l.b16 %v2921
    %v3022 = vunpack.c.l.b16 %v2922
    %v3023 = vpack.c.b16 %v3008, %v3007
    %v3024 = vpack.c.b16 %v3010, %v3009
    %v3025 = vpack.c.b16 %v3012, %v3011
    %v3026 = vpack.c.b16 %v3014, %v3013
    %v3027 = vpack.c.b16 %v3016, %v3015
    %v3028 = vpack.c.b16 %v3018, %v3017
    %v3029 = vpack.c.b16 %v3020, %v3019
    %v3030 = vpack.c.b16 %v3022, %v3021
    %3039 = vmatprep.subr.bf16.mxu0 0
    %3040 = vmatpush1.bf16.msra.mxu0 %v3023
    %3041 = vmatprep.subr.bf16.mxu0 0
    %3042 = vmatpush1.bf16.msra.mxu0 %v3024
    %3043 = vmatprep.subr.bf16.mxu0 0
    %3044 = vmatpush1.bf16.msra.mxu0 %v3025
    %3045 = vmatprep.subr.bf16.mxu0 0
    %3046 = vmatpush1.bf16.msra.mxu0 %v3026
    %3047 = vmatprep.subr.bf16.mxu0 0
    %3048 = vmatpush1.bf16.msra.mxu0 %v3027
    %3049 = vmatprep.subr.bf16.mxu0 0
    %3050 = vmatpush1.bf16.msra.mxu0 %v3028
    %3051 = vmatprep.subr.bf16.mxu0 0
    %3052 = vmatpush1.bf16.msra.mxu0 %v3029
    %3053 = vmatprep.subr.bf16.mxu0 0
    %3054 = vmatpush1.bf16.msra.mxu0 %v3030
    %3055 = vmatprep.subr.bf16.mxu0 0
    %3056 = vmatpush1.bf16.msra.mxu0 0
    %3057 = vmatprep.subr.bf16.mxu0 0
    %3058 = vmatpush1.bf16.msra.mxu0 0
    %3059 = vmatprep.subr.bf16.mxu0 0
    %3060 = vmatpush1.bf16.msra.mxu0 0
    %3061 = vmatprep.subr.bf16.mxu0 0
    %3062 = vmatpush1.bf16.msra.mxu0 0
    %3063 = vmatprep.subr.bf16.mxu0 0
    %3064 = vmatpush1.bf16.msra.mxu0 0
    %3065 = vmatprep.subr.bf16.mxu0 0
    %3066 = vmatpush1.bf16.msra.mxu0 0
    %3067 = vmatprep.subr.bf16.mxu0 0
    %3068 = vmatpush1.bf16.msra.mxu0 0
    %3069 = vmatprep.subr.bf16.mxu0 0
    %3070 = vmatpush1.bf16.msra.mxu0 0
    %3071 = vmatprep.mubr.bf16.mxu0 0
    %3072 = vmatmul.mubr.bf16.gmra.mrb[0].mxu0 %v2986
    %v3073 = vpop.f32.mrb[0].mxu0
    %v3074 = vadd.f32 %v2990, %v3073
    %v3075 = vpop.f32.mrb[0].mxu0
    %v3076 = vpop.f32.mrb[0].mxu0
    %v3077 = vadd.f32 %v2990, %v3076
    %v3078 = vpop.f32.mrb[0].mxu0
    %3079 = vdwg.mxu0
    %v3080 = vadd.f32 %v2601, %v3074
    %v3081 = vadd.f32 %v2602, %v3077
    %v3082 = vsel %vm221, %v3080, 0.0
    %3083 = vadd.xlane.f32.xlu0 %v3082
    %v3084 = vpop.xlane.xlu0 %3083
    %v3085 = vsel %vm221, %v3081, 0.0
    %3086 = vadd.xlane.f32.xlu0 %v3085
    %v3087 = vpop.xlane.xlu0 %3086
    %v3088 = vmul.f32 %v3084, %v2464
    %v3089 = vmul.f32 %v3087, %v2464
    %v3090 = vsub.f32 %v3080, %v3088
    %v3091 = vsub.f32 %v3081, %v3089
    %v3092 = vmul.f32 %v3090, %v3090
    %v3093 = vmul.f32 %v3091, %v3091
    %v3094 = vsel %vm221, %v3092, 0.0
    %3095 = vadd.xlane.f32.xlu0 %v3094
    %v3096 = vpop.xlane.xlu0 %3095
    %v3097 = vsel %vm221, %v3093, 0.0
    %3098 = vadd.xlane.f32.xlu0 %v3097
    %v3099 = vpop.xlane.xlu0 %3098
    %v3100 = vmul.f32 %v3096, 0.032258064
    %v3101 = vmul.f32 %v3099, 0.032258064
    %v3102 = vrsqrt.pop %v3100
    %v3103 = vmul.f32 %v3100, %v3102
    %vm3104 = vcmp.eq.f32.partialorder %v3100, inf
    %v3105 = vsel %vm3104, %v3100, %v3103
    %vm3106 = vcmp.eq.f32.partialorder %v3100, 0.0
    %v3107 = vand.u32 %v3100, 2147483648
    %v3108 = vsel %vm3106, %v3107, %v3105
    %v3109 = vrsqrt.pop %v3101
    %v3110 = vmul.f32 %v3101, %v3109
    %vm3111 = vcmp.eq.f32.partialorder %v3101, inf
    %v3112 = vsel %vm3111, %v3101, %v3110
    %vm3113 = vcmp.eq.f32.partialorder %v3101, 0.0
    %v3114 = vand.u32 %v3101, 2147483648
    %v3115 = vsel %vm3113, %v3114, %v3112
    %v3116 = vadd.f32 %v3108, 1e-06
    %v3117 = vadd.f32 %v3115, 1e-06
    %v3118 = vrcp.pop %v3116
    %v3119 = vmul.f32 %v3090, %v3118
    %v3120 = vrcp.pop %v3117
    %v3121 = vmul.f32 %v3091, %v3120
    %v3122 = vlaneseq
    %v3123 = vshrl.u32 %v3122, 7
    %v3124 = vsub.s32 0, %v3123
    %v3125 = vrot.slane %v36, %v3124
    %v3126 = vmul.f32 %v3125, %v3119
    %v3127 = vmul.f32 %v3125, %v3121
    %v3128 = vlaneseq
    %v3129 = vshrl.u32 %v3128, 7
    %v3130 = vsub.s32 1, %v3129
    %v3131 = vrot.slane %v36, %v3130
    %v3132 = vadd.f32 %v3126, %v3131
    %v3133 = vadd.f32 %v3127, %v3131
    %3134 = vst.msk [vmem:[#allocation2] sm:$0xff] %vm221, %v2899
    %3135 = vst.msk [vmem:[#allocation2 + $0x8] sm:$0xff] %vm221, %v2900
    %3136 = vst.msk [vmem:[#allocation2 + $0x18] sm:$0xff] %vm221, %v2901
    %3137 = vst.msk [vmem:[#allocation2 + $0x20] sm:$0xff] %vm221, %v2902
    %3138 = vst.msk [vmem:[#allocation2 + $0x10] sm:$0xff] %vm221, %v3132
    %3139 = vst.msk [vmem:[#allocation2 + $0x28] sm:$0xff] %vm221, %v3133
    // Predicated region
    $region38: #{tpu_custom_call.1} parent=1 // pred_check
      _
    $region39: #{tpu_custom_call.1} parent=1 // pred_check_branch
      %3141 = sbr.rel (0) target = $region41
    $region40: #{tpu_custom_call.1} parent=1 // pred_region
      %s3143 = ssub.s32 768, 768
      %3144 = vsyncadd [#allocation3], %s3143
      %s3145 = sshll.u32 [#allocation2], 4
      %s3146 = int_to_ptr.vmem [resolvable:$true] %s3145
      %3151 = dma.vmem_to_hbm [thread:$0]  %s3146, 768, %s9, [#allocation3], 128, 128, 8
    $region41: #{tpu_custom_call.1} parent=1 // pred_fallthru
      _
    // Predicated region
    $region42: #{tpu_custom_call.1} parent=1 // pred_check
      _
    $region43: #{tpu_custom_call.1} parent=1 // pred_check_branch
      %3153 = sbr.rel (0) target = $region45
    $region44: #{tpu_custom_call.1} parent=1 // pred_region
      %3154 = dma.done [#allocation3], 768
    $region45: #{tpu_custom_call.1} parent=1 // pred_fallthru
      _
    %3155 = vsyncpa [#allocation3], 1

</llo_original>
